<compile_context>
chip_gen: v7x
topology: tpu7x:2x2x1
jax: 0.10.0
libtpu: 0.0.40
codegen_flags: <defaults>
</compile_context>

<pallas_src>
import functools
import math

import jax
import jax.numpy as jnp
from jax import lax
from jax.experimental import pallas as pl
from jax.experimental.pallas import tpu as pltpu


# ---------------------------------------------------------------------------
# Kernel 1: fused Q/K/V input projections (full-width MXU matmuls).
# ---------------------------------------------------------------------------
def _qkv_proj_kernel(q_ref, k_ref, v_ref,
                     wq_ref, bq_ref, wk_ref, bk_ref, wv_ref, bv_ref,
                     qo_ref, ko_ref, vo_ref, *, q_scale):
    # y = x @ W + b, f32 accumulation, stored in compute dtype (bf16 default).
    qo_ref[0] = ((jnp.dot(q_ref[0], wq_ref[...],
                          preferred_element_type=jnp.float32)
                  + bq_ref[...]) * q_scale).astype(qo_ref.dtype)
    ko_ref[0] = (jnp.dot(k_ref[0], wk_ref[...],
                         preferred_element_type=jnp.float32)
                 + bk_ref[...]).astype(ko_ref.dtype)
    vo_ref[0] = (jnp.dot(v_ref[0], wv_ref[...],
                         preferred_element_type=jnp.float32)
                 + bv_ref[...]).astype(vo_ref.dtype)


# ---------------------------------------------------------------------------
# Kernel 2: flash-attention over pre-projected Q/K/V + fused output projection.
# ---------------------------------------------------------------------------
def _attn_kernel(qp_ref, kp_ref, vp_ref, wo_ref, bo_ref,
                 o_ref,
                 m_sc, l_sc, acc_h, acc_o, *, approx_recip):
    h = pl.program_id(2)
    kb = pl.program_id(3)
    num_heads = pl.num_programs(2)
    num_kv = pl.num_programs(3)

    # Init the per-(batch, q-tile) output accumulator at the start of its group.
    @pl.when(jnp.logical_and(h == 0, kb == 0))
    def _():
        acc_o[...] = jnp.zeros_like(acc_o)

    # Per (q-tile, head): reset the online-softmax state.
    @pl.when(kb == 0)
    def _():
        m_sc[...] = jnp.full_like(m_sc, -jnp.inf)
        l_sc[...] = jnp.zeros_like(l_sc)
        acc_h[...] = jnp.zeros_like(acc_h)

    # Scores: Q was pre-scaled by 1/sqrt(d_k) at projection time; contract the
    # last dim of both operands directly (no K transpose -> no XLU work).
    s = lax.dot_general(qp_ref[0], kp_ref[0],
                        dimension_numbers=(((1,), (1,)), ((), ())),
                        preferred_element_type=jnp.float32)

    # TODO(synk): optional attention mask (masked_fill with -10000.0) not wired
    # in; this kernel implements the mask=None forward path.

    # Online softmax update (f32 running state).
    m_new = jnp.maximum(m_sc[...], jnp.max(s, axis=-1, keepdims=True))
    alpha = jnp.exp(m_sc[...] - m_new)
    p = jnp.exp(s - m_new)
    l_sc[...] = alpha * l_sc[...] + jnp.sum(p, axis=-1, keepdims=True)
    acc_h[...] = alpha * acc_h[...] + jnp.dot(
        p.astype(vp_ref.dtype), vp_ref[0],
        preferred_element_type=jnp.float32)
    m_sc[...] = m_new

    # Last KV block: normalize once (deferred 1/l) and fold this head's output
    # through its W_o row slice into the output accumulator (replaces concat).
    @pl.when(kb == num_kv - 1)
    def _():
        inv_l = pl.reciprocal(l_sc[...], approx=approx_recip)
        head_out = (acc_h[...] * inv_l).astype(wo_ref.dtype)
        acc_o[...] += jnp.dot(head_out, wo_ref[...],
                              preferred_element_type=jnp.float32)

    # Final head & KV block: add the output bias and write the tile.
    @pl.when(jnp.logical_and(h == num_heads - 1, kb == num_kv - 1))
    def _():
        o_ref[0] = (acc_o[...] + bo_ref[...]).astype(o_ref.dtype)


# ---------------------------------------------------------------------------
# Wrapper
# ---------------------------------------------------------------------------
def multi_head_attention(q, k, v, params, *, num_heads,
                         compute_dtype=jnp.bfloat16,
                         q_block_size=256, kv_block_size=512,
                         proj_block_size=512):
    """Fused MHA forward (mask=None path).

    q, k, v: (B, S, D).  params: weights stored as (d_in, d_out), biases (1, D).
    """
    B, S, D = q.shape
    assert k.shape == q.shape and v.shape == q.shape, "q/k/v must share a shape"
    assert D % num_heads == 0, "d_model must be divisible by num_heads"
    d_k = D // num_heads
    assert d_k % 128 == 0, "per-head dim must be lane-aligned (multiple of 128)"
    out_dtype = q.dtype
    cd = jnp.dtype(compute_dtype)
    approx_recip = (cd != jnp.dtype(jnp.float32))

    # MXU operands in compute_dtype (bf16 default); biases stay f32; all
    # accumulation and softmax math is f32 inside the kernels.
    qc, kc, vc = q.astype(cd), k.astype(cd), v.astype(cd)
    wq, wk = params["wq"].astype(cd), params["wk"].astype(cd)
    wv, wo = params["wv"].astype(cd), params["wo"].astype(cd)
    bq = params["bq"].astype(jnp.float32)
    bk = params["bk"].astype(jnp.float32)
    bv = params["bv"].astype(jnp.float32)
    bo = params["bo"].astype(jnp.float32)

    compiler_params = lambda sem: pltpu.CompilerParams(
        dimension_semantics=sem, vmem_limit_bytes=64 * 1024 * 1024)

    # ---- Pass 1: Q/K/V projections (1/sqrt(d_k) folded into Q). -------------
    ts = min(proj_block_size, S)
    assert S % ts == 0, "seq len must divide the projection block size"
    x_spec = pl.BlockSpec((1, ts, D), lambda b, sb: (b, sb, 0))
    w_spec = pl.BlockSpec((D, D), lambda b, sb: (0, 0))
    b_spec = pl.BlockSpec((1, D), lambda b, sb: (0, 0))

    proj_cost = pl.CostEstimate(
        flops=6 * B * S * D * D,
        transcendentals=0,
        bytes_accessed=(6 * B * S * D + 3 * D * D) * cd.itemsize + 3 * D * 4)

    qp, kp, vp = pl.pallas_call(
        functools.partial(_qkv_proj_kernel,
                          q_scale=1.0 / math.sqrt(float(d_k))),
        out_shape=(jax.ShapeDtypeStruct((B, S, D), cd),
                   jax.ShapeDtypeStruct((B, S, D), cd),
                   jax.ShapeDtypeStruct((B, S, D), cd)),
        grid_spec=pltpu.PrefetchScalarGridSpec(
            num_scalar_prefetch=0,
            grid=(B, S // ts),
            in_specs=[x_spec, x_spec, x_spec,
                      w_spec, b_spec,     # W_q, b_q
                      w_spec, b_spec,     # W_k, b_k
                      w_spec, b_spec],    # W_v, b_v
            out_specs=[x_spec, x_spec, x_spec],
        ),
        compiler_params=compiler_params(("parallel", "parallel")),
        cost_estimate=proj_cost,
    )(qc, kc, vc, wq, bq, wk, bk, wv, bv)

    # ---- Pass 2: flash attention + fused W_o projection. ---------------------
    tq = min(q_block_size, S)
    tk = min(kv_block_size, S)
    assert S % tq == 0 and S % tk == 0, "seq len must divide the block sizes"
    n_qb = S // tq
    n_kb = S // tk

    # Per-head slices straight out of the projected (B, S, D) tensors: the
    # head axis is a lane-aligned block index along the last dim.
    q_spec = pl.BlockSpec((1, tq, d_k), lambda b, qb, h, kb: (b, qb, h))
    kv_spec = pl.BlockSpec((1, tk, d_k), lambda b, qb, h, kb: (b, kb, h))
    wo_spec = pl.BlockSpec((d_k, D), lambda b, qb, h, kb: (h, 0))   # head rows
    bo_spec = pl.BlockSpec((1, D), lambda b, qb, h, kb: (0, 0))
    o_spec = pl.BlockSpec((1, tq, D), lambda b, qb, h, kb: (b, qb, 0))

    attn_cost = pl.CostEstimate(
        flops=4 * B * S * S * D + 2 * B * S * D * D,
        transcendentals=B * num_heads * S * S,
        bytes_accessed=((1 + 2 * n_qb) * B * S * D + B * n_qb * D * D)
        * cd.itemsize + B * S * D * jnp.dtype(out_dtype).itemsize)

    return pl.pallas_call(
        functools.partial(_attn_kernel, approx_recip=approx_recip),
        out_shape=jax.ShapeDtypeStruct((B, S, D), out_dtype),
        grid_spec=pltpu.PrefetchScalarGridSpec(
            num_scalar_prefetch=0,
            grid=(B, n_qb, num_heads, n_kb),
            in_specs=[q_spec, kv_spec, kv_spec, wo_spec, bo_spec],
            out_specs=o_spec,
            scratch_shapes=[
                pltpu.VMEM((tq, 1), jnp.float32),    # running max m
                pltpu.VMEM((tq, 1), jnp.float32),    # running denom l
                pltpu.VMEM((tq, d_k), jnp.float32),  # per-head attention accum
                pltpu.VMEM((tq, D), jnp.float32),    # output accum across heads
            ],
        ),
        compiler_params=compiler_params(
            ("parallel", "parallel", "arbitrary", "arbitrary")),
        cost_estimate=attn_cost,
    )(qp, kp, vp, wo, bo)


# ---------------------------------------------------------------------------
# Pure-JAX reference + init + demo
# ---------------------------------------------------------------------------
def _reference(q, k, v, params, num_heads):
    """Pure-JAX f32 reference matching the PyTorch forward exactly (mask=None)."""
    B, S, D = q.shape
    d_k = D // num_heads

    def lin(x, w, b):
        return x @ w + b

    qp = lin(q, params["wq"], params["bq"])
    kp = lin(k, params["wk"], params["bk"])
    vp = lin(v, params["wv"], params["bv"])

    def split(x):  # (B,S,D) -> (B,H,S,d_k)
        return x.reshape(B, S, num_heads, d_k).transpose(0, 2, 1, 3)

    qh, kh, vh = split(qp), split(kp), split(vp)
    scores = jnp.einsum("bhqd,bhkd->bhqk", qh, kh) / jnp.sqrt(jnp.float32(d_k))
    probs = jax.nn.softmax(scores, axis=-1)
    out = jnp.einsum("bhqk,bhkd->bhqd", probs, vh)
    out = out.transpose(0, 2, 1, 3).reshape(B, S, D)
    return lin(out, params["wo"], params["bo"])


def _init_params(key, d_model):
    """Mimic nn.Linear's uniform(-1/sqrt(fan_in), 1/sqrt(fan_in)) init.
    Weights stored as (d_in, d_out) (already transposed for x @ W)."""
    bound = 1.0 / math.sqrt(d_model)
    names = ["wq", "bq", "wk", "bk", "wv", "bv", "wo", "bo"]
    keys = jax.random.split(key, len(names))
    params = {}
    for n, kk in zip(names, keys):
        shape = (d_model, d_model) if n.startswith("w") else (1, d_model)
        params[n] = jax.random.uniform(kk, shape, jnp.float32,
                                       minval=-bound, maxval=bound)
    return params


if __name__ == "__main__":
    d_model = 256
    num_heads = 2      # d_k = 128 -> lane-aligned per-head slices
    batch = 2
    seq = 512          # 2 query blocks x 2 KV blocks of 256 exercise the
                       # online-softmax and head-accumulation paths;
                       # B * n_qb = 4 (even, >= 2) for v7x megacore.

    root = jax.random.PRNGKey(0)
    kq, kk, kv, kp = jax.random.split(root, 4)
    Q = jax.random.normal(kq, (batch, seq, d_model), jnp.float32)
    K = jax.random.normal(kk, (batch, seq, d_model), jnp.float32)
    V = jax.random.normal(kv, (batch, seq, d_model), jnp.float32)
    params = _init_params(kp, d_model)

    out = multi_head_attention(Q, K, V, params, num_heads=num_heads,
                               q_block_size=256, kv_block_size=256)
    out = jax.block_until_ready(out)

    ref = _reference(Q, K, V, params, num_heads)
    assert out.shape == (batch, seq, d_model)
    # bf16 MXU operands with f32 accumulation: compare against the f32 reference
    # at bf16-level tolerance.
    assert jnp.allclose(out, ref, atol=3e-2, rtol=3e-2), "mismatch vs JAX reference"

    print("KERNEL_OK")
</pallas_src>

<mosaic_0001>
module attributes {stable_mosaic.version = 11 : i64} {
  func.func @_qkv_proj_kernel(%arg0: i32, %arg1: i32, %arg2: memref<1x512x256xbf16, #tpu.memory_space<vmem>>, %arg3: memref<1x512x256xbf16, #tpu.memory_space<vmem>>, %arg4: memref<1x512x256xbf16, #tpu.memory_space<vmem>>, %arg5: memref<256x256xbf16, #tpu.memory_space<vmem>>, %arg6: memref<1x256xf32, #tpu.memory_space<vmem>>, %arg7: memref<256x256xbf16, #tpu.memory_space<vmem>>, %arg8: memref<1x256xf32, #tpu.memory_space<vmem>>, %arg9: memref<256x256xbf16, #tpu.memory_space<vmem>>, %arg10: memref<1x256xf32, #tpu.memory_space<vmem>>, %arg11: memref<1x512x256xbf16, #tpu.memory_space<vmem>>, %arg12: memref<1x512x256xbf16, #tpu.memory_space<vmem>>, %arg13: memref<1x512x256xbf16, #tpu.memory_space<vmem>>) attributes {dimension_semantics = [#tpu.dimension_semantics<parallel>, #tpu.dimension_semantics<parallel>], iteration_bounds = array<i64: 2, 1>, scalar_prefetch = 0 : i64, scratch_operands = 0 : i64, tpu.core_type = #tpu.core_type<tc>, window_params = [{transform_indices = @transform_0, window_bounds = array<i64: 1, 512, 256>}, {transform_indices = @transform_1, window_bounds = array<i64: 1, 512, 256>}, {transform_indices = @transform_2, window_bounds = array<i64: 1, 512, 256>}, {pipeline_mode = #tpu.pipeline_mode<synchronous>, transform_indices = @transform_3, window_bounds = array<i64: 256, 256>}, {pipeline_mode = #tpu.pipeline_mode<synchronous>, transform_indices = @transform_4, window_bounds = array<i64: 1, 256>}, {pipeline_mode = #tpu.pipeline_mode<synchronous>, transform_indices = @transform_5, window_bounds = array<i64: 256, 256>}, {pipeline_mode = #tpu.pipeline_mode<synchronous>, transform_indices = @transform_6, window_bounds = array<i64: 1, 256>}, {pipeline_mode = #tpu.pipeline_mode<synchronous>, transform_indices = @transform_7, window_bounds = array<i64: 256, 256>}, {pipeline_mode = #tpu.pipeline_mode<synchronous>, transform_indices = @transform_8, window_bounds = array<i64: 1, 256>}, {transform_indices = @transform_9, window_bounds = array<i64: 1, 512, 256>}, {transform_indices = @transform_10, window_bounds = array<i64: 1, 512, 256>}, {transform_indices = @transform_11, window_bounds = array<i64: 1, 512, 256>}]} {
    %c0 = arith.constant 0 : index
    %c0_0 = arith.constant 0 : index
    %c0_1 = arith.constant 0 : index
    %0 = vector.load %arg2[%c0, %c0_0, %c0_1] : memref<1x512x256xbf16, #tpu.memory_space<vmem>>, vector<1x512x256xbf16>
    %1 = vector.shape_cast %0 : vector<1x512x256xbf16> to vector<512x256xbf16>
    %c0_2 = arith.constant 0 : index
    %c0_3 = arith.constant 0 : index
    %2 = vector.load %arg5[%c0_2, %c0_3] : memref<256x256xbf16, #tpu.memory_space<vmem>>, vector<256x256xbf16>
    %cst = arith.constant dense<0.000000e+00> : vector<512x256xf32>
    %3 = tpu.matmul %1, %2, %cst {dimension_numbers = #tpu.dot_dimension_numbers<[1], [0], [0], [1], [0, 0, 1, 1], [], []>} : vector<512x256xbf16>, vector<256x256xbf16>, vector<512x256xf32> -> vector<512x256xf32>
    %c0_4 = arith.constant 0 : index
    %c0_5 = arith.constant 0 : index
    %4 = vector.load %arg6[%c0_4, %c0_5] : memref<1x256xf32, #tpu.memory_space<vmem>>, vector<1x256xf32>
    %5 = vector.broadcast %4 : vector<1x256xf32> to vector<512x256xf32>
    %6 = arith.addf %3, %5 : vector<512x256xf32>
    %cst_6 = arith.constant 0.0883883461 : f32
    %7 = vector.broadcast %cst_6 : f32 to vector<512x256xf32>
    %8 = arith.mulf %6, %7 : vector<512x256xf32>
    %9 = arith.truncf %8 : vector<512x256xf32> to vector<512x256xbf16>
    %c0_7 = arith.constant 0 : index
    %c0_8 = arith.constant 0 : index
    %c0_9 = arith.constant 0 : index
    %10 = vector.load %arg11[%c0_7, %c0_8, %c0_9] : memref<1x512x256xbf16, #tpu.memory_space<vmem>>, vector<1x512x256xbf16>
    %11 = vector.shape_cast %10 : vector<1x512x256xbf16> to vector<512x256xbf16>
    %12 = vector.shape_cast %9 : vector<512x256xbf16> to vector<1x512x256xbf16>
    tpu.vector_store %arg11[%c0_7, %c0_8, %c0_9], %12 {strides = array<i32>} : memref<1x512x256xbf16, #tpu.memory_space<vmem>>, vector<1x512x256xbf16>,
    %c0_10 = arith.constant 0 : index
    %c0_11 = arith.constant 0 : index
    %c0_12 = arith.constant 0 : index
    %13 = vector.load %arg3[%c0_10, %c0_11, %c0_12] : memref<1x512x256xbf16, #tpu.memory_space<vmem>>, vector<1x512x256xbf16>
    %14 = vector.shape_cast %13 : vector<1x512x256xbf16> to vector<512x256xbf16>
    %c0_13 = arith.constant 0 : index
    %c0_14 = arith.constant 0 : index
    %15 = vector.load %arg7[%c0_13, %c0_14] : memref<256x256xbf16, #tpu.memory_space<vmem>>, vector<256x256xbf16>
    %cst_15 = arith.constant dense<0.000000e+00> : vector<512x256xf32>
    %16 = tpu.matmul %14, %15, %cst_15 {dimension_numbers = #tpu.dot_dimension_numbers<[1], [0], [0], [1], [0, 0, 1, 1], [], []>} : vector<512x256xbf16>, vector<256x256xbf16>, vector<512x256xf32> -> vector<512x256xf32>
    %c0_16 = arith.constant 0 : index
    %c0_17 = arith.constant 0 : index
    %17 = vector.load %arg8[%c0_16, %c0_17] : memref<1x256xf32, #tpu.memory_space<vmem>>, vector<1x256xf32>
    %18 = vector.broadcast %17 : vector<1x256xf32> to vector<512x256xf32>
    %19 = arith.addf %16, %18 : vector<512x256xf32>
    %20 = arith.truncf %19 : vector<512x256xf32> to vector<512x256xbf16>
    %c0_18 = arith.constant 0 : index
    %c0_19 = arith.constant 0 : index
    %c0_20 = arith.constant 0 : index
    %21 = vector.load %arg12[%c0_18, %c0_19, %c0_20] : memref<1x512x256xbf16, #tpu.memory_space<vmem>>, vector<1x512x256xbf16>
    %22 = vector.shape_cast %21 : vector<1x512x256xbf16> to vector<512x256xbf16>
    %23 = vector.shape_cast %20 : vector<512x256xbf16> to vector<1x512x256xbf16>
    tpu.vector_store %arg12[%c0_18, %c0_19, %c0_20], %23 {strides = array<i32>} : memref<1x512x256xbf16, #tpu.memory_space<vmem>>, vector<1x512x256xbf16>,
    %c0_21 = arith.constant 0 : index
    %c0_22 = arith.constant 0 : index
    %c0_23 = arith.constant 0 : index
    %24 = vector.load %arg4[%c0_21, %c0_22, %c0_23] : memref<1x512x256xbf16, #tpu.memory_space<vmem>>, vector<1x512x256xbf16>
    %25 = vector.shape_cast %24 : vector<1x512x256xbf16> to vector<512x256xbf16>
    %c0_24 = arith.constant 0 : index
    %c0_25 = arith.constant 0 : index
    %26 = vector.load %arg9[%c0_24, %c0_25] : memref<256x256xbf16, #tpu.memory_space<vmem>>, vector<256x256xbf16>
    %cst_26 = arith.constant dense<0.000000e+00> : vector<512x256xf32>
    %27 = tpu.matmul %25, %26, %cst_26 {dimension_numbers = #tpu.dot_dimension_numbers<[1], [0], [0], [1], [0, 0, 1, 1], [], []>} : vector<512x256xbf16>, vector<256x256xbf16>, vector<512x256xf32> -> vector<512x256xf32>
    %c0_27 = arith.constant 0 : index
    %c0_28 = arith.constant 0 : index
    %28 = vector.load %arg10[%c0_27, %c0_28] : memref<1x256xf32, #tpu.memory_space<vmem>>, vector<1x256xf32>
    %29 = vector.broadcast %28 : vector<1x256xf32> to vector<512x256xf32>
    %30 = arith.addf %27, %29 : vector<512x256xf32>
    %31 = arith.truncf %30 : vector<512x256xf32> to vector<512x256xbf16>
    %c0_29 = arith.constant 0 : index
    %c0_30 = arith.constant 0 : index
    %c0_31 = arith.constant 0 : index
    %32 = vector.load %arg13[%c0_29, %c0_30, %c0_31] : memref<1x512x256xbf16, #tpu.memory_space<vmem>>, vector<1x512x256xbf16>
    %33 = vector.shape_cast %32 : vector<1x512x256xbf16> to vector<512x256xbf16>
    %34 = vector.shape_cast %31 : vector<512x256xbf16> to vector<1x512x256xbf16>
    tpu.vector_store %arg13[%c0_29, %c0_30, %c0_31], %34 {strides = array<i32>} : memref<1x512x256xbf16, #tpu.memory_space<vmem>>, vector<1x512x256xbf16>,
    return
  }
  func.func @transform_0(%arg0: i32, %arg1: i32) -> (i32, i32, i32) {
    %c0_i32 = arith.constant 0 : i32
    %c0_i32_0 = arith.constant 0 : i32
    return %arg0, %arg1, %c0_i32 : i32, i32, i32
  }
  func.func @transform_1(%arg0: i32, %arg1: i32) -> (i32, i32, i32) {
    %c0_i32 = arith.constant 0 : i32
    %c0_i32_0 = arith.constant 0 : i32
    return %arg0, %arg1, %c0_i32 : i32, i32, i32
  }
  func.func @transform_2(%arg0: i32, %arg1: i32) -> (i32, i32, i32) {
    %c0_i32 = arith.constant 0 : i32
    %c0_i32_0 = arith.constant 0 : i32
    return %arg0, %arg1, %c0_i32 : i32, i32, i32
  }
  func.func @transform_3(%arg0: i32, %arg1: i32) -> (i32, i32) {
    %c0_i32 = arith.constant 0 : i32
    %c0_i32_0 = arith.constant 0 : i32
    %c0_i32_1 = arith.constant 0 : i32
    return %c0_i32, %c0_i32_0 : i32, i32
  }
  func.func @transform_4(%arg0: i32, %arg1: i32) -> (i32, i32) {
    %c0_i32 = arith.constant 0 : i32
    %c0_i32_0 = arith.constant 0 : i32
    %c0_i32_1 = arith.constant 0 : i32
    return %c0_i32, %c0_i32_0 : i32, i32
  }
  func.func @transform_5(%arg0: i32, %arg1: i32) -> (i32, i32) {
    %c0_i32 = arith.constant 0 : i32
    %c0_i32_0 = arith.constant 0 : i32
    %c0_i32_1 = arith.constant 0 : i32
    return %c0_i32, %c0_i32_0 : i32, i32
  }
  func.func @transform_6(%arg0: i32, %arg1: i32) -> (i32, i32) {
    %c0_i32 = arith.constant 0 : i32
    %c0_i32_0 = arith.constant 0 : i32
    %c0_i32_1 = arith.constant 0 : i32
    return %c0_i32, %c0_i32_0 : i32, i32
  }
  func.func @transform_7(%arg0: i32, %arg1: i32) -> (i32, i32) {
    %c0_i32 = arith.constant 0 : i32
    %c0_i32_0 = arith.constant 0 : i32
    %c0_i32_1 = arith.constant 0 : i32
    return %c0_i32, %c0_i32_0 : i32, i32
  }
  func.func @transform_8(%arg0: i32, %arg1: i32) -> (i32, i32) {
    %c0_i32 = arith.constant 0 : i32
    %c0_i32_0 = arith.constant 0 : i32
    %c0_i32_1 = arith.constant 0 : i32
    return %c0_i32, %c0_i32_0 : i32, i32
  }
  func.func @transform_9(%arg0: i32, %arg1: i32) -> (i32, i32, i32) {
    %c0_i32 = arith.constant 0 : i32
    %c0_i32_0 = arith.constant 0 : i32
    return %arg0, %arg1, %c0_i32 : i32, i32, i32
  }
  func.func @transform_10(%arg0: i32, %arg1: i32) -> (i32, i32, i32) {
    %c0_i32 = arith.constant 0 : i32
    %c0_i32_0 = arith.constant 0 : i32
    return %arg0, %arg1, %c0_i32 : i32, i32, i32
  }
  func.func @transform_11(%arg0: i32, %arg1: i32) -> (i32, i32, i32) {
    %c0_i32 = arith.constant 0 : i32
    %c0_i32_0 = arith.constant 0 : i32
    return %arg0, %arg1, %c0_i32 : i32, i32, i32
  }
}

</mosaic_0001>

<llo_original>
// kernel: tpu_custom_call.1
$region0: #{tpu_custom_call.1}
  #allocation0 [shape = 'u32[]', space=smem, size = 0x4, offset = 0x4, fixed_abs, tag = 'smem constant byte address 0x4 - core index']
  #allocation1 [shape = 'u32[144,128]{1,0:T(1,128)}', space=vmem, size = 0x12000, scoped, tag = 'internal scratch']
  %s0 = inlined_call_operand.hbm [shape: bf16[2,512,256], index: 0, kind: input, shape index: {}]
  %s1 = inlined_call_operand.hbm [shape: bf16[2,512,256], index: 1, kind: input, shape index: {}]
  %s2 = inlined_call_operand.hbm [shape: bf16[2,512,256], index: 2, kind: input, shape index: {}]
  %s3 = inlined_call_operand.hbm [shape: bf16[256,256], index: 3, kind: input, shape index: {}]
  %s4 = inlined_call_operand.hbm [shape: f32[1,256], index: 4, kind: input, shape index: {}]
  %s5 = inlined_call_operand.hbm [shape: bf16[256,256], index: 5, kind: input, shape index: {}]
  %s6 = inlined_call_operand.hbm [shape: f32[1,256], index: 6, kind: input, shape index: {}]
  %s7 = inlined_call_operand.hbm [shape: bf16[256,256], index: 7, kind: input, shape index: {}]
  %s8 = inlined_call_operand.hbm [shape: f32[1,256], index: 8, kind: input, shape index: {}]
  %s9 = inlined_call_operand.hbm [shape: bf16[2,512,256], index: 9, kind: output, shape index: {0}]
  %s10 = inlined_call_operand.hbm [shape: bf16[2,512,256], index: 10, kind: output, shape index: {1}]
  %s11 = inlined_call_operand.hbm [shape: bf16[2,512,256], index: 11, kind: output, shape index: {2}]
  %12 = xla_tuple %s9, %s10, %s11
  %s13 = sld [smem:[#allocation0]]
  $region121: #{tpu_custom_call.1} parent=0
    _
  %s15 = ssub.s32 1, %s13
  %s16 = scalar_select 0, %s15, %s13
  $region1: #{tpu_custom_call.1} parent=0
    #allocation2 [shape = 'u8[524288]{0}', space=vmem, size = 0x80000, scoped, tag = 'input window, operand 0']
    #allocation3 [shape = 's32[2]{0}', space=sflag, size = 0x8, scoped, tag = 'scoped memory for tpu_custom_call.1']
    #allocation4 [shape = 's32[2]{0}', space=sflag, size = 0x8, scoped, tag = 'scoped memory for tpu_custom_call.1']
    #allocation5 [shape = 'u8[524288]{0}', space=vmem, size = 0x80000, scoped, tag = 'input window, operand 1']
    #allocation6 [shape = 's32[2]{0}', space=sflag, size = 0x8, scoped, tag = 'scoped memory for tpu_custom_call.1']
    #allocation7 [shape = 'u8[524288]{0}', space=vmem, size = 0x80000, scoped, tag = 'input window, operand 2']
    #allocation8 [shape = 'u8[131072]{0}', space=vmem, size = 0x20000, scoped, tag = 'input window, operand 3, single buffered']
    #allocation9 [shape = 's32[1]{0}', space=sflag, size = 0x4, scoped, tag = 'scoped memory for tpu_custom_call.1']
    #allocation10 [shape = 'u8[1024]{0}', space=vmem, size = 0x400, scoped, tag = 'input window, operand 4, single buffered']
    #allocation11 [shape = 'u8[131072]{0}', space=vmem, size = 0x20000, scoped, tag = 'input window, operand 5, single buffered']
    #allocation12 [shape = 's32[1]{0}', space=sflag, size = 0x4, scoped, tag = 'scoped memory for tpu_custom_call.1']
    #allocation13 [shape = 'u8[1024]{0}', space=vmem, size = 0x400, scoped, tag = 'input window, operand 6, single buffered']
    #allocation14 [shape = 'u8[131072]{0}', space=vmem, size = 0x20000, scoped, tag = 'input window, operand 7, single buffered']
    #allocation15 [shape = 's32[1]{0}', space=sflag, size = 0x4, scoped, tag = 'scoped memory for tpu_custom_call.1']
    #allocation16 [shape = 'u8[1024]{0}', space=vmem, size = 0x400, scoped, tag = 'input window, operand 8, single buffered']
    #allocation17 [shape = 'u8[524288]{0}', space=vmem, size = 0x80000, scoped, tag = 'output window, operand 0']
    #allocation18 [shape = 'u8[524288]{0}', space=vmem, size = 0x80000, scoped, tag = 'output window, operand 1']
    #allocation19 [shape = 's32[2]{0}', space=sflag, size = 0x8, scoped, tag = 'scoped memory for tpu_custom_call.1']
    #allocation20 [shape = 'u8[524288]{0}', space=vmem, size = 0x80000, scoped, tag = 'output window, operand 2']
    %17 = vsyncpa [#allocation3], 0
    %s18 = scalar_lea.sflag [#allocation3], 1
    %19 = vsyncpa %s18, 0
    %20 = vsyncpa [#allocation6], 0
    %s21 = scalar_lea.sflag [#allocation6], 1
    %22 = vsyncpa %s21, 0
    %23 = vsyncpa [#allocation9], 0
    %24 = vsyncpa [#allocation12], 0
    %25 = vsyncpa [#allocation15], 0
    %26 = vsyncpa [#allocation4], 0
    %s27 = scalar_lea.sflag [#allocation4], 1
    %28 = vsyncpa %s27, 0
    %29 = vsyncpa [#allocation19], 0
    %s30 = scalar_lea.sflag [#allocation19], 1
    %31 = vsyncpa %s30, 0
    loop: start=0, step=1, limit=4
    $region2: #{tpu_custom_call.1} parent=1 // loop_pre_header
      _
    $region3: #{tpu_custom_call.1} parent=1 // loop_header
      %s33 = sphi 0, %s37
      %p34 = scmp.ge.s32.totalorder %s33, 4
      %s40 = sphi 0, %s52
      %s41 = sphi 0, %s48
      %s42 = sphi 0, %s40
      %s43 = sphi 0, %s41
      %s44 = sphi 0, %s42
      %s45 = sphi 0, %s43
      %s57 = sphi 0, %s59
      %s60 = sphi 0, %s57
      %s61 = sphi 0, %s60
      %s77 = sphi 0, %s61
      %s85 = sphi 0, %s87
      %s88 = sphi 0, %s85
      %s89 = sphi 0, %s88
      %s105 = sphi 0, %s89
      %s113 = sphi 0, %s115
      %s116 = sphi 0, %s113
      %s117 = sphi 0, %s116
      %s133 = sphi 0, %s117
      %s137 = sphi 0, %s137
      %s139 = sphi 0, %s137
      %s140 = sphi 0, %s139
      %s154 = sphi 0, %s140
      %s158 = sphi 0, %s158
      %s160 = sphi 0, %s158
      %s161 = sphi 0, %s160
      %s175 = sphi 0, %s161
      %s179 = sphi 0, %s179
      %s181 = sphi 0, %s179
      %s182 = sphi 0, %s181
      %s196 = sphi 0, %s182
      %s200 = sphi 0, %s200
      %s202 = sphi 0, %s200
      %s203 = sphi 0, %s202
      %s217 = sphi 0, %s203
      %s221 = sphi 0, %s221
      %s223 = sphi 0, %s221
      %s224 = sphi 0, %s223
      %s238 = sphi 0, %s224
      %s242 = sphi 0, %s242
      %s244 = sphi 0, %s242
      %s245 = sphi 0, %s244
      %s259 = sphi 0, %s245
      %s267 = sphi 0, %s269
      %s270 = sphi 0, %s267
      %s271 = sphi 0, %s270
      %s287 = sphi 0, %s271
      %s295 = sphi 0, %s297
      %s298 = sphi 0, %s295
      %s299 = sphi 0, %s298
      %s315 = sphi 0, %s299
      %s323 = sphi 0, %s325
      %s326 = sphi 0, %s323
      %s327 = sphi 0, %s326
      %s343 = sphi 0, %s327
    $region4: #{tpu_custom_call.1} parent=1 // loop_header_branch
      %36 = sbr.rel (%p34) target = $region8
    $region5: #{tpu_custom_call.1} parent=1 // loop_body
      %s38 = ssub.s32 %s33, 1
      %s39 = ssub.s32 %s33, 2
      %s46 = sadd.s32 1, %s41
      %p47 = scmp.ge.s32.totalorder %s46, 1
      %s48 = scalar_select %p47, 0, %s46
      %s49 = sadd.s32 1, %s40
      %s50 = scalar_select %p47, %s49, %s40
      %p51 = scmp.ge.s32.totalorder %s50, 2
      %s52 = scalar_select %p51, 0, %s50
      %s53 = ssub.s32 %s40, %s52
      %s54 = ssub.s32 %s41, %s48
      %s55 = sor.u32 %s53, %s54
      %p56 = scmp.eq.s32.totalorder %s55, 0
      %s58 = sadd.s32 %s57, 1
      %s59 = scalar_select %p56, %s57, %s58
      %p62 = pneg %p56
      %p63 = scmp.eq.s32.totalorder %s33, 1
      %p64 = por %p62, %p63
      %p65 = scmp.ne.s32.totalorder %s57, %s60
      %p66 = scmp.eq.s32.totalorder %s33, 0
      %p67 = por %p65, %p66
      %p68 = scmp.ne.s32.totalorder %s57, %s60
      %p69 = scmp.eq.s32.totalorder %s38, 1
      %p70 = por %p68, %p69
      %p71 = scmp.ne.s32.totalorder %s60, %s61
      %p72 = scmp.eq.s32.totalorder %s38, 0
      %p73 = por %p71, %p72
      %p74 = scmp.ne.s32.totalorder %s60, %s61
      %p75 = scmp.eq.s32.totalorder %s39, 1
      %p76 = por %p74, %p75
      %p78 = scmp.ne.s32.totalorder %s61, %s77
      %p79 = scmp.eq.s32.totalorder %s39, 0
      %p80 = por %p78, %p79
      %s81 = ssub.s32 %s40, %s52
      %s82 = ssub.s32 %s41, %s48
      %s83 = sor.u32 %s81, %s82
      %p84 = scmp.eq.s32.totalorder %s83, 0
      %s86 = sadd.s32 %s85, 1
      %s87 = scalar_select %p84, %s85, %s86
      %p90 = pneg %p84
      %p91 = scmp.eq.s32.totalorder %s33, 1
      %p92 = por %p90, %p91
      %p93 = scmp.ne.s32.totalorder %s85, %s88
      %p94 = scmp.eq.s32.totalorder %s33, 0
      %p95 = por %p93, %p94
      %p96 = scmp.ne.s32.totalorder %s85, %s88
      %p97 = scmp.eq.s32.totalorder %s38, 1
      %p98 = por %p96, %p97
      %p99 = scmp.ne.s32.totalorder %s88, %s89
      %p100 = scmp.eq.s32.totalorder %s38, 0
      %p101 = por %p99, %p100
      %p102 = scmp.ne.s32.totalorder %s88, %s89
      %p103 = scmp.eq.s32.totalorder %s39, 1
      %p104 = por %p102, %p103
      %p106 = scmp.ne.s32.totalorder %s89, %s105
      %p107 = scmp.eq.s32.totalorder %s39, 0
      %p108 = por %p106, %p107
      %s109 = ssub.s32 %s40, %s52
      %s110 = ssub.s32 %s41, %s48
      %s111 = sor.u32 %s109, %s110
      %p112 = scmp.eq.s32.totalorder %s111, 0
      %s114 = sadd.s32 %s113, 1
      %s115 = scalar_select %p112, %s113, %s114
      %p118 = pneg %p112
      %p119 = scmp.eq.s32.totalorder %s33, 1
      %p120 = por %p118, %p119
      %p121 = scmp.ne.s32.totalorder %s113, %s116
      %p122 = scmp.eq.s32.totalorder %s33, 0
      %p123 = por %p121, %p122
      %p124 = scmp.ne.s32.totalorder %s113, %s116
      %p125 = scmp.eq.s32.totalorder %s38, 1
      %p126 = por %p124, %p125
      %p127 = scmp.ne.s32.totalorder %s116, %s117
      %p128 = scmp.eq.s32.totalorder %s38, 0
      %p129 = por %p127, %p128
      %p130 = scmp.ne.s32.totalorder %s116, %s117
      %p131 = scmp.eq.s32.totalorder %s39, 1
      %p132 = por %p130, %p131
      %p134 = scmp.ne.s32.totalorder %s117, %s133
      %p135 = scmp.eq.s32.totalorder %s39, 0
      %p136 = por %p134, %p135
      %s138 = sadd.s32 %s137, 1
      %p141 = scmp.eq.s32.totalorder %s33, 1
      %p142 = scmp.ne.s32.totalorder %s137, %s139
      %p143 = scmp.eq.s32.totalorder %s33, 0
      %p144 = por %p142, %p143
      %p145 = scmp.ne.s32.totalorder %s137, %s139
      %p146 = scmp.eq.s32.totalorder %s38, 1
      %p147 = por %p145, %p146
      %p148 = scmp.ne.s32.totalorder %s139, %s140
      %p149 = scmp.eq.s32.totalorder %s38, 0
      %p150 = por %p148, %p149
      %p151 = scmp.ne.s32.totalorder %s139, %s140
      %p152 = scmp.eq.s32.totalorder %s39, 1
      %p153 = por %p151, %p152
      %p155 = scmp.ne.s32.totalorder %s140, %s154
      %p156 = scmp.eq.s32.totalorder %s39, 0
      %p157 = por %p155, %p156
      %s159 = sadd.s32 %s158, 1
      %p162 = scmp.eq.s32.totalorder %s33, 1
      %p163 = scmp.ne.s32.totalorder %s158, %s160
      %p164 = scmp.eq.s32.totalorder %s33, 0
      %p165 = por %p163, %p164
      %p166 = scmp.ne.s32.totalorder %s158, %s160
      %p167 = scmp.eq.s32.totalorder %s38, 1
      %p168 = por %p166, %p167
      %p169 = scmp.ne.s32.totalorder %s160, %s161
      %p170 = scmp.eq.s32.totalorder %s38, 0
      %p171 = por %p169, %p170
      %p172 = scmp.ne.s32.totalorder %s160, %s161
      %p173 = scmp.eq.s32.totalorder %s39, 1
      %p174 = por %p172, %p173
      %p176 = scmp.ne.s32.totalorder %s161, %s175
      %p177 = scmp.eq.s32.totalorder %s39, 0
      %p178 = por %p176, %p177
      %s180 = sadd.s32 %s179, 1
      %p183 = scmp.eq.s32.totalorder %s33, 1
      %p184 = scmp.ne.s32.totalorder %s179, %s181
      %p185 = scmp.eq.s32.totalorder %s33, 0
      %p186 = por %p184, %p185
      %p187 = scmp.ne.s32.totalorder %s179, %s181
      %p188 = scmp.eq.s32.totalorder %s38, 1
      %p189 = por %p187, %p188
      %p190 = scmp.ne.s32.totalorder %s181, %s182
      %p191 = scmp.eq.s32.totalorder %s38, 0
      %p192 = por %p190, %p191
      %p193 = scmp.ne.s32.totalorder %s181, %s182
      %p194 = scmp.eq.s32.totalorder %s39, 1
      %p195 = por %p193, %p194
      %p197 = scmp.ne.s32.totalorder %s182, %s196
      %p198 = scmp.eq.s32.totalorder %s39, 0
      %p199 = por %p197, %p198
      %s201 = sadd.s32 %s200, 1
      %p204 = scmp.eq.s32.totalorder %s33, 1
      %p205 = scmp.ne.s32.totalorder %s200, %s202
      %p206 = scmp.eq.s32.totalorder %s33, 0
      %p207 = por %p205, %p206
      %p208 = scmp.ne.s32.totalorder %s200, %s202
      %p209 = scmp.eq.s32.totalorder %s38, 1
      %p210 = por %p208, %p209
      %p211 = scmp.ne.s32.totalorder %s202, %s203
      %p212 = scmp.eq.s32.totalorder %s38, 0
      %p213 = por %p211, %p212
      %p214 = scmp.ne.s32.totalorder %s202, %s203
      %p215 = scmp.eq.s32.totalorder %s39, 1
      %p216 = por %p214, %p215
      %p218 = scmp.ne.s32.totalorder %s203, %s217
      %p219 = scmp.eq.s32.totalorder %s39, 0
      %p220 = por %p218, %p219
      %s222 = sadd.s32 %s221, 1
      %p225 = scmp.eq.s32.totalorder %s33, 1
      %p226 = scmp.ne.s32.totalorder %s221, %s223
      %p227 = scmp.eq.s32.totalorder %s33, 0
      %p228 = por %p226, %p227
      %p229 = scmp.ne.s32.totalorder %s221, %s223
      %p230 = scmp.eq.s32.totalorder %s38, 1
      %p231 = por %p229, %p230
      %p232 = scmp.ne.s32.totalorder %s223, %s224
      %p233 = scmp.eq.s32.totalorder %s38, 0
      %p234 = por %p232, %p233
      %p235 = scmp.ne.s32.totalorder %s223, %s224
      %p236 = scmp.eq.s32.totalorder %s39, 1
      %p237 = por %p235, %p236
      %p239 = scmp.ne.s32.totalorder %s224, %s238
      %p240 = scmp.eq.s32.totalorder %s39, 0
      %p241 = por %p239, %p240
      %s243 = sadd.s32 %s242, 1
      %p246 = scmp.eq.s32.totalorder %s33, 1
      %p247 = scmp.ne.s32.totalorder %s242, %s244
      %p248 = scmp.eq.s32.totalorder %s33, 0
      %p249 = por %p247, %p248
      %p250 = scmp.ne.s32.totalorder %s242, %s244
      %p251 = scmp.eq.s32.totalorder %s38, 1
      %p252 = por %p250, %p251
      %p253 = scmp.ne.s32.totalorder %s244, %s245
      %p254 = scmp.eq.s32.totalorder %s38, 0
      %p255 = por %p253, %p254
      %p256 = scmp.ne.s32.totalorder %s244, %s245
      %p257 = scmp.eq.s32.totalorder %s39, 1
      %p258 = por %p256, %p257
      %p260 = scmp.ne.s32.totalorder %s245, %s259
      %p261 = scmp.eq.s32.totalorder %s39, 0
      %p262 = por %p260, %p261
      %s263 = ssub.s32 %s40, %s52
      %s264 = ssub.s32 %s41, %s48
      %s265 = sor.u32 %s263, %s264
      %p266 = scmp.eq.s32.totalorder %s265, 0
      %s268 = sadd.s32 %s267, 1
      %s269 = scalar_select %p266, %s267, %s268
      %p272 = pneg %p266
      %p273 = scmp.eq.s32.totalorder %s33, 1
      %p274 = por %p272, %p273
      %p275 = scmp.ne.s32.totalorder %s267, %s270
      %p276 = scmp.eq.s32.totalorder %s33, 0
      %p277 = por %p275, %p276
      %p278 = scmp.ne.s32.totalorder %s267, %s270
      %p279 = scmp.eq.s32.totalorder %s38, 1
      %p280 = por %p278, %p279
      %p281 = scmp.ne.s32.totalorder %s270, %s271
      %p282 = scmp.eq.s32.totalorder %s38, 0
      %p283 = por %p281, %p282
      %p284 = scmp.ne.s32.totalorder %s270, %s271
      %p285 = scmp.eq.s32.totalorder %s39, 1
      %p286 = por %p284, %p285
      %p288 = scmp.ne.s32.totalorder %s271, %s287
      %p289 = scmp.eq.s32.totalorder %s39, 0
      %p290 = por %p288, %p289
      %s291 = ssub.s32 %s40, %s52
      %s292 = ssub.s32 %s41, %s48
      %s293 = sor.u32 %s291, %s292
      %p294 = scmp.eq.s32.totalorder %s293, 0
      %s296 = sadd.s32 %s295, 1
      %s297 = scalar_select %p294, %s295, %s296
      %p300 = pneg %p294
      %p301 = scmp.eq.s32.totalorder %s33, 1
      %p302 = por %p300, %p301
      %p303 = scmp.ne.s32.totalorder %s295, %s298
      %p304 = scmp.eq.s32.totalorder %s33, 0
      %p305 = por %p303, %p304
      %p306 = scmp.ne.s32.totalorder %s295, %s298
      %p307 = scmp.eq.s32.totalorder %s38, 1
      %p308 = por %p306, %p307
      %p309 = scmp.ne.s32.totalorder %s298, %s299
      %p310 = scmp.eq.s32.totalorder %s38, 0
      %p311 = por %p309, %p310
      %p312 = scmp.ne.s32.totalorder %s298, %s299
      %p313 = scmp.eq.s32.totalorder %s39, 1
      %p314 = por %p312, %p313
      %p316 = scmp.ne.s32.totalorder %s299, %s315
      %p317 = scmp.eq.s32.totalorder %s39, 0
      %p318 = por %p316, %p317
      %s319 = ssub.s32 %s40, %s52
      %s320 = ssub.s32 %s41, %s48
      %s321 = sor.u32 %s319, %s320
      %p322 = scmp.eq.s32.totalorder %s321, 0
      %s324 = sadd.s32 %s323, 1
      %s325 = scalar_select %p322, %s323, %s324
      %p328 = pneg %p322
      %p329 = scmp.eq.s32.totalorder %s33, 1
      %p330 = por %p328, %p329
      %p331 = scmp.ne.s32.totalorder %s323, %s326
      %p332 = scmp.eq.s32.totalorder %s33, 0
      %p333 = por %p331, %p332
      %p334 = scmp.ne.s32.totalorder %s323, %s326
      %p335 = scmp.eq.s32.totalorder %s38, 1
      %p336 = por %p334, %p335
      %p337 = scmp.ne.s32.totalorder %s326, %s327
      %p338 = scmp.eq.s32.totalorder %s38, 0
      %p339 = por %p337, %p338
      %p340 = scmp.ne.s32.totalorder %s326, %s327
      %p341 = scmp.eq.s32.totalorder %s39, 1
      %p342 = por %p340, %p341
      %p344 = scmp.ne.s32.totalorder %s327, %s343
      %p345 = scmp.eq.s32.totalorder %s39, 0
      %p346 = por %p344, %p345
      %p347 = scmp.le.s32.totalorder 1, %s33
      %p348 = scmp.lt.s32.totalorder %s33, 3
      %p349 = pnand %p347, %p348
      %p350 = pneg %p349
      // Predicated region
      $region9: #{tpu_custom_call.1} parent=5 // pred_check
        _
      $region10: #{tpu_custom_call.1} parent=5 // pred_check_branch
        %352 = sbr.rel (%p349) target = $region12
      $region11: #{tpu_custom_call.1} parent=5 // pred_region
        %s353 = ssub.s32 %s33, 1
        // Predicated region
        $region13: #{tpu_custom_call.1} parent=11 // pred_check
          %p354 = pneg %p150
        $region14: #{tpu_custom_call.1} parent=11 // pred_check_branch
          %356 = sbr.rel (%p354) target = $region16
        $region15: #{tpu_custom_call.1} parent=11 // pred_region
          %s358 = ssub.s32 4096, 4096
          %359 = vsyncadd [#allocation9], %s358
          %s360 = sshll.u32 [#allocation8], 4
          %s361 = int_to_ptr.vmem [resolvable:$true] %s360
          %366 = dma.hbm_to_vmem [thread:$0]  %s3, 4096, %s361, [#allocation9], 128, 128, 8
        $region16: #{tpu_custom_call.1} parent=11 // pred_fallthru
          _
        // Predicated region
        $region17: #{tpu_custom_call.1} parent=11 // pred_check
          %p367 = pneg %p171
        $region18: #{tpu_custom_call.1} parent=11 // pred_check_branch
          %369 = sbr.rel (%p367) target = $region20
        $region19: #{tpu_custom_call.1} parent=11 // pred_region
          %s371 = ssub.s32 32, 32
          %372 = vsyncadd [#allocation9], %s371
          %s374 = sshll.u32 [#allocation10], 4
          %s375 = int_to_ptr.vmem [resolvable:$true] %s374
          %377 = dma.hbm_to_vmem [thread:$0]  %s4, 32, %s375, [#allocation9]
        $region20: #{tpu_custom_call.1} parent=11 // pred_fallthru
          _
        // Predicated region
        $region21: #{tpu_custom_call.1} parent=11 // pred_check
          %p378 = pneg %p192
        $region22: #{tpu_custom_call.1} parent=11 // pred_check_branch
          %380 = sbr.rel (%p378) target = $region24
        $region23: #{tpu_custom_call.1} parent=11 // pred_region
          %s382 = ssub.s32 4096, 4096
          %383 = vsyncadd [#allocation12], %s382
          %s384 = sshll.u32 [#allocation11], 4
          %s385 = int_to_ptr.vmem [resolvable:$true] %s384
          %390 = dma.hbm_to_vmem [thread:$0]  %s5, 4096, %s385, [#allocation12], 128, 128, 8
        $region24: #{tpu_custom_call.1} parent=11 // pred_fallthru
          _
        // Predicated region
        $region25: #{tpu_custom_call.1} parent=11 // pred_check
          %p391 = pneg %p213
        $region26: #{tpu_custom_call.1} parent=11 // pred_check_branch
          %393 = sbr.rel (%p391) target = $region28
        $region27: #{tpu_custom_call.1} parent=11 // pred_region
          %s395 = ssub.s32 32, 32
          %396 = vsyncadd [#allocation12], %s395
          %s398 = sshll.u32 [#allocation13], 4
          %s399 = int_to_ptr.vmem [resolvable:$true] %s398
          %401 = dma.hbm_to_vmem [thread:$0]  %s6, 32, %s399, [#allocation12]
        $region28: #{tpu_custom_call.1} parent=11 // pred_fallthru
          _
        // Predicated region
        $region29: #{tpu_custom_call.1} parent=11 // pred_check
          %p402 = pneg %p234
        $region30: #{tpu_custom_call.1} parent=11 // pred_check_branch
          %404 = sbr.rel (%p402) target = $region32
        $region31: #{tpu_custom_call.1} parent=11 // pred_region
          %s406 = ssub.s32 4096, 4096
          %407 = vsyncadd [#allocation15], %s406
          %s408 = sshll.u32 [#allocation14], 4
          %s409 = int_to_ptr.vmem [resolvable:$true] %s408
          %414 = dma.hbm_to_vmem [thread:$0]  %s7, 4096, %s409, [#allocation15], 128, 128, 8
        $region32: #{tpu_custom_call.1} parent=11 // pred_fallthru
          _
        // Predicated region
        $region33: #{tpu_custom_call.1} parent=11 // pred_check
          %p415 = pneg %p255
        $region34: #{tpu_custom_call.1} parent=11 // pred_check_branch
          %417 = sbr.rel (%p415) target = $region36
        $region35: #{tpu_custom_call.1} parent=11 // pred_region
          %s419 = ssub.s32 32, 32
          %420 = vsyncadd [#allocation15], %s419
          %s422 = sshll.u32 [#allocation16], 4
          %s423 = int_to_ptr.vmem [resolvable:$true] %s422
          %425 = dma.hbm_to_vmem [thread:$0]  %s8, 32, %s423, [#allocation15]
        $region36: #{tpu_custom_call.1} parent=11 // pred_fallthru
          _
      $region12: #{tpu_custom_call.1} parent=5 // pred_fallthru
        _
      %p426 = scmp.lt.s32.totalorder %s33, 2
      // Predicated region
      $region37: #{tpu_custom_call.1} parent=5 // pred_check
        %p427 = pneg %p426
      $region38: #{tpu_custom_call.1} parent=5 // pred_check_branch
        %429 = sbr.rel (%p427) target = $region40
      $region39: #{tpu_custom_call.1} parent=5 // pred_region
        // Predicated region
        $region41: #{tpu_custom_call.1} parent=39 // pred_check
          %p430 = pneg %p67
        $region42: #{tpu_custom_call.1} parent=39 // pred_check_branch
          %432 = sbr.rel (%p430) target = $region44
        $region43: #{tpu_custom_call.1} parent=39 // pred_region
          %s433 = sand.u32 %s57, 1
          %s434 = scalar_lea.sflag [#allocation3], %s433
          %s435 = sand.u32 %s57, 1
          %s436 = smul.addr %s435, 512
          %s437 = scalar_lea.vmem [#allocation2], %s436
          %s438 = smul.u32 64, %s41
          %s440 = ssub.s32 8192, 8192
          %441 = vsyncadd %s434, %s440
          %s442 = smul.addr %s438, 2
          %s443 = smul.addr %s40, 128
          %s444 = sadd.s32 %s442, %s443
          %s445 = smul.addr %s444, 64
          %s446 = scalar_lea.hbm %s0, %s445
          %s447 = sshll.u32 %s437, 4
          %s448 = int_to_ptr.vmem [resolvable:$true] %s447
          %453 = dma.hbm_to_vmem [thread:$0]  %s446, 8192, %s448, %s434, 128, 128, 8
        $region44: #{tpu_custom_call.1} parent=39 // pred_fallthru
          _
        // Predicated region
        $region45: #{tpu_custom_call.1} parent=39 // pred_check
          %p454 = pneg %p95
        $region46: #{tpu_custom_call.1} parent=39 // pred_check_branch
          %456 = sbr.rel (%p454) target = $region48
        $region47: #{tpu_custom_call.1} parent=39 // pred_region
          %s457 = sand.u32 %s33, 1
          %s458 = scalar_lea.sflag [#allocation6], %s457
          %s459 = sand.u32 %s85, 1
          %s460 = smul.addr %s459, 512
          %s461 = scalar_lea.vmem [#allocation5], %s460
          %s462 = smul.u32 64, %s41
          %s464 = ssub.s32 8192, 8192
          %465 = vsyncadd %s458, %s464
          %s466 = smul.addr %s462, 2
          %s467 = smul.addr %s40, 128
          %s468 = sadd.s32 %s466, %s467
          %s469 = smul.addr %s468, 64
          %s470 = scalar_lea.hbm %s1, %s469
          %s471 = sshll.u32 %s461, 4
          %s472 = int_to_ptr.vmem [resolvable:$true] %s471
          %477 = dma.hbm_to_vmem [thread:$0]  %s470, 8192, %s472, %s458, 128, 128, 8
        $region48: #{tpu_custom_call.1} parent=39 // pred_fallthru
          _
        // Predicated region
        $region49: #{tpu_custom_call.1} parent=39 // pred_check
          %p478 = pneg %p123
        $region50: #{tpu_custom_call.1} parent=39 // pred_check_branch
          %480 = sbr.rel (%p478) target = $region52
        $region51: #{tpu_custom_call.1} parent=39 // pred_region
          %s481 = sand.u32 %s33, 1
          %s482 = scalar_lea.sflag [#allocation6], %s481
          %s483 = sand.u32 %s113, 1
          %s484 = smul.addr %s483, 512
          %s485 = scalar_lea.vmem [#allocation7], %s484
          %s486 = smul.u32 64, %s41
          %s488 = ssub.s32 8192, 8192
          %489 = vsyncadd %s482, %s488
          %s490 = smul.addr %s486, 2
          %s491 = smul.addr %s40, 128
          %s492 = sadd.s32 %s490, %s491
          %s493 = smul.addr %s492, 64
          %s494 = scalar_lea.hbm %s2, %s493
          %s495 = sshll.u32 %s485, 4
          %s496 = int_to_ptr.vmem [resolvable:$true] %s495
          %501 = dma.hbm_to_vmem [thread:$0]  %s494, 8192, %s496, %s482, 128, 128, 8
        $region52: #{tpu_custom_call.1} parent=39 // pred_fallthru
          _
      $region40: #{tpu_custom_call.1} parent=5 // pred_fallthru
        _
      %p502 = scmp.le.s32.totalorder 1, %s33
      %p503 = scmp.lt.s32.totalorder %s33, 3
      %p504 = pnand %p502, %p503
      %p505 = pneg %p504
      // Predicated region
      $region53: #{tpu_custom_call.1} parent=5 // pred_check
        _
      $region54: #{tpu_custom_call.1} parent=5 // pred_check_branch
        %507 = sbr.rel (%p504) target = $region56
      $region55: #{tpu_custom_call.1} parent=5 // pred_region
        %s508 = ssub.s32 %s33, 1
        %s509 = sand.u32 %s60, 1
        %s510 = scalar_lea.sflag [#allocation3], %s509
        %s511 = sand.u32 %s60, 1
        %s512 = smul.addr %s511, 512
        %s513 = scalar_lea.vmem [#allocation2], %s512
        // Predicated region
        $region57: #{tpu_custom_call.1} parent=55 // pred_check
          %p514 = pneg %p73
        $region58: #{tpu_custom_call.1} parent=55 // pred_check_branch
          %516 = sbr.rel (%p514) target = $region60
        $region59: #{tpu_custom_call.1} parent=55 // pred_region
          %517 = dma.done %s510, 8192
        $region60: #{tpu_custom_call.1} parent=55 // pred_fallthru
          _
        %s518 = sand.u32 %s38, 1
        %s519 = scalar_lea.sflag [#allocation6], %s518
        %s520 = sand.u32 %s88, 1
        %s521 = smul.addr %s520, 512
        %s522 = scalar_lea.vmem [#allocation5], %s521
        // Predicated region
        $region61: #{tpu_custom_call.1} parent=55 // pred_check
          %p523 = pneg %p101
        $region62: #{tpu_custom_call.1} parent=55 // pred_check_branch
          %525 = sbr.rel (%p523) target = $region64
        $region63: #{tpu_custom_call.1} parent=55 // pred_region
          %526 = dma.done %s519, 8192
        $region64: #{tpu_custom_call.1} parent=55 // pred_fallthru
          _
        %s527 = sand.u32 %s38, 1
        %s528 = scalar_lea.sflag [#allocation6], %s527
        %s529 = sand.u32 %s116, 1
        %s530 = smul.addr %s529, 512
        %s531 = scalar_lea.vmem [#allocation7], %s530
        // Predicated region
        $region65: #{tpu_custom_call.1} parent=55 // pred_check
          %p532 = pneg %p129
        $region66: #{tpu_custom_call.1} parent=55 // pred_check_branch
          %534 = sbr.rel (%p532) target = $region68
        $region67: #{tpu_custom_call.1} parent=55 // pred_region
          %535 = dma.done %s528, 8192
        $region68: #{tpu_custom_call.1} parent=55 // pred_fallthru
          _
        // Predicated region
        $region69: #{tpu_custom_call.1} parent=55 // pred_check
          %p536 = pneg %p150
        $region70: #{tpu_custom_call.1} parent=55 // pred_check_branch
          %538 = sbr.rel (%p536) target = $region72
        $region71: #{tpu_custom_call.1} parent=55 // pred_region
          %539 = dma.done [#allocation9], 4096
        $region72: #{tpu_custom_call.1} parent=55 // pred_fallthru
          _
        // Predicated region
        $region73: #{tpu_custom_call.1} parent=55 // pred_check
          %p540 = pneg %p171
        $region74: #{tpu_custom_call.1} parent=55 // pred_check_branch
          %542 = sbr.rel (%p540) target = $region76
        $region75: #{tpu_custom_call.1} parent=55 // pred_region
          %543 = dma.done [#allocation9], 32
        $region76: #{tpu_custom_call.1} parent=55 // pred_fallthru
          _
        // Predicated region
        $region77: #{tpu_custom_call.1} parent=55 // pred_check
          %p544 = pneg %p192
        $region78: #{tpu_custom_call.1} parent=55 // pred_check_branch
          %546 = sbr.rel (%p544) target = $region80
        $region79: #{tpu_custom_call.1} parent=55 // pred_region
          %547 = dma.done [#allocation12], 4096
        $region80: #{tpu_custom_call.1} parent=55 // pred_fallthru
          _
        // Predicated region
        $region81: #{tpu_custom_call.1} parent=55 // pred_check
          %p548 = pneg %p213
        $region82: #{tpu_custom_call.1} parent=55 // pred_check_branch
          %550 = sbr.rel (%p548) target = $region84
        $region83: #{tpu_custom_call.1} parent=55 // pred_region
          %551 = dma.done [#allocation12], 32
        $region84: #{tpu_custom_call.1} parent=55 // pred_fallthru
          _
        // Predicated region
        $region85: #{tpu_custom_call.1} parent=55 // pred_check
          %p552 = pneg %p234
        $region86: #{tpu_custom_call.1} parent=55 // pred_check_branch
          %554 = sbr.rel (%p552) target = $region88
        $region87: #{tpu_custom_call.1} parent=55 // pred_region
          %555 = dma.done [#allocation15], 4096
        $region88: #{tpu_custom_call.1} parent=55 // pred_fallthru
          _
        // Predicated region
        $region89: #{tpu_custom_call.1} parent=55 // pred_check
          %p556 = pneg %p255
        $region90: #{tpu_custom_call.1} parent=55 // pred_check_branch
          %558 = sbr.rel (%p556) target = $region92
        $region91: #{tpu_custom_call.1} parent=55 // pred_region
          %559 = dma.done [#allocation15], 32
        $region92: #{tpu_custom_call.1} parent=55 // pred_fallthru
          _
        %s560 = sand.u32 %s60, 1
        %s561 = scalar_lea.sflag [#allocation3], %s560
        %s562 = sand.u32 %s60, 1
        %s563 = smul.addr %s562, 512
        %s564 = scalar_lea.vmem [#allocation2], %s563
        %p565 = pneg %p73
        %p566 = pneg %p70
        %s567 = sand.u32 %s38, 1
        %s568 = scalar_lea.sflag [#allocation6], %s567
        %s569 = sand.u32 %s88, 1
        %s570 = smul.addr %s569, 512
        %s571 = scalar_lea.vmem [#allocation5], %s570
        %p572 = pneg %p101
        %p573 = pneg %p98
        %s574 = sand.u32 %s38, 1
        %s575 = scalar_lea.sflag [#allocation6], %s574
        %s576 = sand.u32 %s116, 1
        %s577 = smul.addr %s576, 512
        %s578 = scalar_lea.vmem [#allocation7], %s577
        %p579 = pneg %p129
        %p580 = pneg %p126
        %p581 = pneg %p150
        %p582 = pneg %p147
        %p583 = pneg %p171
        %p584 = pneg %p168
        %p585 = pneg %p192
        %p586 = pneg %p189
        %p587 = pneg %p213
        %p588 = pneg %p210
        %p589 = pneg %p234
        %p590 = pneg %p231
        %p591 = pneg %p255
        %p592 = pneg %p252
        %p593 = pneg %p283
        %p594 = pneg %p280
        %s595 = sand.u32 %s270, 1
        %s596 = scalar_lea.sflag [#allocation4], %s595
        %s597 = sand.u32 %s270, 1
        %s598 = smul.addr %s597, 512
        %s599 = scalar_lea.vmem [#allocation17], %s598
        %p600 = pneg %p311
        %p601 = pneg %p308
        %s602 = sand.u32 %s38, 1
        %s603 = scalar_lea.sflag [#allocation19], %s602
        %s604 = sand.u32 %s298, 1
        %s605 = smul.addr %s604, 512
        %s606 = scalar_lea.vmem [#allocation18], %s605
        %p607 = pneg %p339
        %p608 = pneg %p336
        %s609 = sand.u32 %s38, 1
        %s610 = scalar_lea.sflag [#allocation19], %s609
        %s611 = sand.u32 %s326, 1
        %s612 = smul.addr %s611, 512
        %s613 = scalar_lea.vmem [#allocation20], %s612
        %s614 = smul.u32 64, %s43
        %s615 = smul.u32 64, %s43
        %s616 = smul.u32 64, %s43
        %s617 = smul.u32 64, %s43
        %s618 = smul.u32 64, %s43
        %s619 = smul.u32 64, %s43
        %v620 = vld [vmem:[%s513] sm:$0xff]
        %v621 = vld [vmem:[%s513 + $0x8] sm:$0xff]
        %v622 = vld [vmem:[%s513 + $0x10] sm:$0xff]
        %v623 = vld [vmem:[%s513 + $0x18] sm:$0xff]
        %v624 = vld [vmem:[%s513 + $0x20] sm:$0xff]
        %v625 = vld [vmem:[%s513 + $0x28] sm:$0xff]
        %v626 = vld [vmem:[%s513 + $0x30] sm:$0xff]
        %v627 = vld [vmem:[%s513 + $0x38] sm:$0xff]
        %v628 = vld [vmem:[%s513 + $0x40] sm:$0xff]
        %v629 = vld [vmem:[%s513 + $0x48] sm:$0xff]
        %v630 = vld [vmem:[%s513 + $0x50] sm:$0xff]
        %v631 = vld [vmem:[%s513 + $0x58] sm:$0xff]
        %v632 = vld [vmem:[%s513 + $0x60] sm:$0xff]
        %v633 = vld [vmem:[%s513 + $0x68] sm:$0xff]
        %v634 = vld [vmem:[%s513 + $0x70] sm:$0xff]
        %v635 = vld [vmem:[%s513 + $0x78] sm:$0xff]
        %v636 = vld [vmem:[%s513 + $0x80] sm:$0xff]
        %v637 = vld [vmem:[%s513 + $0x88] sm:$0xff]
        %v638 = vld [vmem:[%s513 + $0x90] sm:$0xff]
        %v639 = vld [vmem:[%s513 + $0x98] sm:$0xff]
        %v640 = vld [vmem:[%s513 + $0xa0] sm:$0xff]
        %v641 = vld [vmem:[%s513 + $0xa8] sm:$0xff]
        %v642 = vld [vmem:[%s513 + $0xb0] sm:$0xff]
        %v643 = vld [vmem:[%s513 + $0xb8] sm:$0xff]
        %v644 = vld [vmem:[%s513 + $0xc0] sm:$0xff]
        %v645 = vld [vmem:[%s513 + $0xc8] sm:$0xff]
        %v646 = vld [vmem:[%s513 + $0xd0] sm:$0xff]
        %v647 = vld [vmem:[%s513 + $0xd8] sm:$0xff]
        %v648 = vld [vmem:[%s513 + $0xe0] sm:$0xff]
        %v649 = vld [vmem:[%s513 + $0xe8] sm:$0xff]
        %v650 = vld [vmem:[%s513 + $0xf0] sm:$0xff]
        %v651 = vld [vmem:[%s513 + $0xf8] sm:$0xff]
        %v652 = vld [vmem:[%s513 + $0x100] sm:$0xff]
        %v653 = vld [vmem:[%s513 + $0x108] sm:$0xff]
        %v654 = vld [vmem:[%s513 + $0x110] sm:$0xff]
        %v655 = vld [vmem:[%s513 + $0x118] sm:$0xff]
        %v656 = vld [vmem:[%s513 + $0x120] sm:$0xff]
        %v657 = vld [vmem:[%s513 + $0x128] sm:$0xff]
        %v658 = vld [vmem:[%s513 + $0x130] sm:$0xff]
        %v659 = vld [vmem:[%s513 + $0x138] sm:$0xff]
        %v660 = vld [vmem:[%s513 + $0x140] sm:$0xff]
        %v661 = vld [vmem:[%s513 + $0x148] sm:$0xff]
        %v662 = vld [vmem:[%s513 + $0x150] sm:$0xff]
        %v663 = vld [vmem:[%s513 + $0x158] sm:$0xff]
        %v664 = vld [vmem:[%s513 + $0x160] sm:$0xff]
        %v665 = vld [vmem:[%s513 + $0x168] sm:$0xff]
        %v666 = vld [vmem:[%s513 + $0x170] sm:$0xff]
        %v667 = vld [vmem:[%s513 + $0x178] sm:$0xff]
        %v668 = vld [vmem:[%s513 + $0x180] sm:$0xff]
        %v669 = vld [vmem:[%s513 + $0x188] sm:$0xff]
        %v670 = vld [vmem:[%s513 + $0x190] sm:$0xff]
        %v671 = vld [vmem:[%s513 + $0x198] sm:$0xff]
        %v672 = vld [vmem:[%s513 + $0x1a0] sm:$0xff]
        %v673 = vld [vmem:[%s513 + $0x1a8] sm:$0xff]
        %v674 = vld [vmem:[%s513 + $0x1b0] sm:$0xff]
        %v675 = vld [vmem:[%s513 + $0x1b8] sm:$0xff]
        %v676 = vld [vmem:[%s513 + $0x1c0] sm:$0xff]
        %v677 = vld [vmem:[%s513 + $0x1c8] sm:$0xff]
        %v678 = vld [vmem:[%s513 + $0x1d0] sm:$0xff]
        %v679 = vld [vmem:[%s513 + $0x1d8] sm:$0xff]
        %v680 = vld [vmem:[%s513 + $0x1e0] sm:$0xff]
        %v681 = vld [vmem:[%s513 + $0x1e8] sm:$0xff]
        %v682 = vld [vmem:[%s513 + $0x1f0] sm:$0xff]
        %v683 = vld [vmem:[%s513 + $0x1f8] sm:$0xff]
        %v684 = vld [vmem:[#allocation8] sm:$0xff]
        %v685 = vld [vmem:[#allocation8 + $0x8] sm:$0xff]
        %v686 = vld [vmem:[#allocation8 + $0x10] sm:$0xff]
        %v687 = vld [vmem:[#allocation8 + $0x18] sm:$0xff]
        %v688 = vld [vmem:[#allocation8 + $0x20] sm:$0xff]
        %v689 = vld [vmem:[#allocation8 + $0x28] sm:$0xff]
        %v690 = vld [vmem:[#allocation8 + $0x30] sm:$0xff]
        %v691 = vld [vmem:[#allocation8 + $0x38] sm:$0xff]
        %v692 = vld [vmem:[#allocation8 + $0x40] sm:$0xff]
        %v693 = vld [vmem:[#allocation8 + $0x48] sm:$0xff]
        %v694 = vld [vmem:[#allocation8 + $0x50] sm:$0xff]
        %v695 = vld [vmem:[#allocation8 + $0x58] sm:$0xff]
        %v696 = vld [vmem:[#allocation8 + $0x60] sm:$0xff]
        %v697 = vld [vmem:[#allocation8 + $0x68] sm:$0xff]
        %v698 = vld [vmem:[#allocation8 + $0x70] sm:$0xff]
        %v699 = vld [vmem:[#allocation8 + $0x78] sm:$0xff]
        %v700 = vld [vmem:[#allocation8 + $0x80] sm:$0xff]
        %v701 = vld [vmem:[#allocation8 + $0x88] sm:$0xff]
        %v702 = vld [vmem:[#allocation8 + $0x90] sm:$0xff]
        %v703 = vld [vmem:[#allocation8 + $0x98] sm:$0xff]
        %v704 = vld [vmem:[#allocation8 + $0xa0] sm:$0xff]
        %v705 = vld [vmem:[#allocation8 + $0xa8] sm:$0xff]
        %v706 = vld [vmem:[#allocation8 + $0xb0] sm:$0xff]
        %v707 = vld [vmem:[#allocation8 + $0xb8] sm:$0xff]
        %v708 = vld [vmem:[#allocation8 + $0xc0] sm:$0xff]
        %v709 = vld [vmem:[#allocation8 + $0xc8] sm:$0xff]
        %v710 = vld [vmem:[#allocation8 + $0xd0] sm:$0xff]
        %v711 = vld [vmem:[#allocation8 + $0xd8] sm:$0xff]
        %v712 = vld [vmem:[#allocation8 + $0xe0] sm:$0xff]
        %v713 = vld [vmem:[#allocation8 + $0xe8] sm:$0xff]
        %v714 = vld [vmem:[#allocation8 + $0xf0] sm:$0xff]
        %v715 = vld [vmem:[#allocation8 + $0xf8] sm:$0xff]
        %v716 = vld [vmem:[#allocation10] sm:$0x3]
        %v718 = vlaneseq
        %v719 = vshrl.u32 %v718, 7
        %v720 = vsub.s32 0, %v719
        %v721 = vrot.slane %v716, %v720
        %v722 = vlaneseq
        %v723 = vshrl.u32 %v722, 7
        %v724 = vsub.s32 1, %v723
        %v725 = vrot.slane %v716, %v724
        %v792 = vunpack.c.l.b16 %v620
        %v793 = vunpack.c.h.b16 %v620
        %v794 = vunpack.c.l.b16 %v621
        %v795 = vunpack.c.h.b16 %v621
        %v796 = vunpack.c.l.b16 %v622
        %v797 = vunpack.c.h.b16 %v622
        %v798 = vunpack.c.l.b16 %v623
        %v799 = vunpack.c.h.b16 %v623
        %v800 = vunpack.c.l.b16 %v624
        %v801 = vunpack.c.h.b16 %v624
        %v802 = vunpack.c.l.b16 %v625
        %v803 = vunpack.c.h.b16 %v625
        %v804 = vunpack.c.l.b16 %v626
        %v805 = vunpack.c.h.b16 %v626
        %v806 = vunpack.c.l.b16 %v627
        %v807 = vunpack.c.h.b16 %v627
        %v808 = vunpack.c.l.b16 %v628
        %v809 = vunpack.c.h.b16 %v628
        %v810 = vunpack.c.l.b16 %v629
        %v811 = vunpack.c.h.b16 %v629
        %v812 = vunpack.c.l.b16 %v630
        %v813 = vunpack.c.h.b16 %v630
        %v814 = vunpack.c.l.b16 %v631
        %v815 = vunpack.c.h.b16 %v631
        %v816 = vunpack.c.l.b16 %v632
        %v817 = vunpack.c.h.b16 %v632
        %v818 = vunpack.c.l.b16 %v633
        %v819 = vunpack.c.h.b16 %v633
        %v820 = vunpack.c.l.b16 %v634
        %v821 = vunpack.c.h.b16 %v634
        %v822 = vunpack.c.l.b16 %v635
        %v823 = vunpack.c.h.b16 %v635
        %v824 = vunpack.c.l.b16 %v636
        %v825 = vunpack.c.h.b16 %v636
        %v826 = vunpack.c.l.b16 %v637
        %v827 = vunpack.c.h.b16 %v637
        %v828 = vunpack.c.l.b16 %v638
        %v829 = vunpack.c.h.b16 %v638
        %v830 = vunpack.c.l.b16 %v639
        %v831 = vunpack.c.h.b16 %v639
        %v832 = vunpack.c.l.b16 %v640
        %v833 = vunpack.c.h.b16 %v640
        %v834 = vunpack.c.l.b16 %v641
        %v835 = vunpack.c.h.b16 %v641
        %v836 = vunpack.c.l.b16 %v642
        %v837 = vunpack.c.h.b16 %v642
        %v838 = vunpack.c.l.b16 %v643
        %v839 = vunpack.c.h.b16 %v643
        %v840 = vunpack.c.l.b16 %v644
        %v841 = vunpack.c.h.b16 %v644
        %v842 = vunpack.c.l.b16 %v645
        %v843 = vunpack.c.h.b16 %v645
        %v844 = vunpack.c.l.b16 %v646
        %v845 = vunpack.c.h.b16 %v646
        %v846 = vunpack.c.l.b16 %v647
        %v847 = vunpack.c.h.b16 %v647
        %v848 = vunpack.c.l.b16 %v648
        %v849 = vunpack.c.h.b16 %v648
        %v850 = vunpack.c.l.b16 %v649
        %v851 = vunpack.c.h.b16 %v649
        %v852 = vunpack.c.l.b16 %v650
        %v853 = vunpack.c.h.b16 %v650
        %v854 = vunpack.c.l.b16 %v651
        %v855 = vunpack.c.h.b16 %v651
        %v856 = vunpack.c.l.b16 %v652
        %v857 = vunpack.c.h.b16 %v652
        %v858 = vunpack.c.l.b16 %v653
        %v859 = vunpack.c.h.b16 %v653
        %v860 = vunpack.c.l.b16 %v654
        %v861 = vunpack.c.h.b16 %v654
        %v862 = vunpack.c.l.b16 %v655
        %v863 = vunpack.c.h.b16 %v655
        %v864 = vunpack.c.l.b16 %v656
        %v865 = vunpack.c.h.b16 %v656
        %v866 = vunpack.c.l.b16 %v657
        %v867 = vunpack.c.h.b16 %v657
        %v868 = vunpack.c.l.b16 %v658
        %v869 = vunpack.c.h.b16 %v658
        %v870 = vunpack.c.l.b16 %v659
        %v871 = vunpack.c.h.b16 %v659
        %v872 = vunpack.c.l.b16 %v660
        %v873 = vunpack.c.h.b16 %v660
        %v874 = vunpack.c.l.b16 %v661
        %v875 = vunpack.c.h.b16 %v661
        %v876 = vunpack.c.l.b16 %v662
        %v877 = vunpack.c.h.b16 %v662
        %v878 = vunpack.c.l.b16 %v663
        %v879 = vunpack.c.h.b16 %v663
        %v880 = vunpack.c.l.b16 %v664
        %v881 = vunpack.c.h.b16 %v664
        %v882 = vunpack.c.l.b16 %v665
        %v883 = vunpack.c.h.b16 %v665
        %v884 = vunpack.c.l.b16 %v666
        %v885 = vunpack.c.h.b16 %v666
        %v886 = vunpack.c.l.b16 %v667
        %v887 = vunpack.c.h.b16 %v667
        %v888 = vunpack.c.l.b16 %v668
        %v889 = vunpack.c.h.b16 %v668
        %v890 = vunpack.c.l.b16 %v669
        %v891 = vunpack.c.h.b16 %v669
        %v892 = vunpack.c.l.b16 %v670
        %v893 = vunpack.c.h.b16 %v670
        %v894 = vunpack.c.l.b16 %v671
        %v895 = vunpack.c.h.b16 %v671
        %v896 = vunpack.c.l.b16 %v672
        %v897 = vunpack.c.h.b16 %v672
        %v898 = vunpack.c.l.b16 %v673
        %v899 = vunpack.c.h.b16 %v673
        %v900 = vunpack.c.l.b16 %v674
        %v901 = vunpack.c.h.b16 %v674
        %v902 = vunpack.c.l.b16 %v675
        %v903 = vunpack.c.h.b16 %v675
        %v904 = vunpack.c.l.b16 %v676
        %v905 = vunpack.c.h.b16 %v676
        %v906 = vunpack.c.l.b16 %v677
        %v907 = vunpack.c.h.b16 %v677
        %v908 = vunpack.c.l.b16 %v678
        %v909 = vunpack.c.h.b16 %v678
        %v910 = vunpack.c.l.b16 %v679
        %v911 = vunpack.c.h.b16 %v679
        %v912 = vunpack.c.l.b16 %v680
        %v913 = vunpack.c.h.b16 %v680
        %v914 = vunpack.c.l.b16 %v681
        %v915 = vunpack.c.h.b16 %v681
        %v916 = vunpack.c.l.b16 %v682
        %v917 = vunpack.c.h.b16 %v682
        %v918 = vunpack.c.l.b16 %v683
        %v919 = vunpack.c.h.b16 %v683
        %v920 = vpack.c.b16 %v794, %v792
        %v921 = vpack.c.b16 %v795, %v793
        %v922 = vpack.c.b16 %v798, %v796
        %v923 = vpack.c.b16 %v799, %v797
        %v924 = vpack.c.b16 %v802, %v800
        %v925 = vpack.c.b16 %v803, %v801
        %v926 = vpack.c.b16 %v806, %v804
        %v927 = vpack.c.b16 %v807, %v805
        %v928 = vpack.c.b16 %v810, %v808
        %v929 = vpack.c.b16 %v811, %v809
        %v930 = vpack.c.b16 %v814, %v812
        %v931 = vpack.c.b16 %v815, %v813
        %v932 = vpack.c.b16 %v818, %v816
        %v933 = vpack.c.b16 %v819, %v817
        %v934 = vpack.c.b16 %v822, %v820
        %v935 = vpack.c.b16 %v823, %v821
        %v936 = vpack.c.b16 %v826, %v824
        %v937 = vpack.c.b16 %v827, %v825
        %v938 = vpack.c.b16 %v830, %v828
        %v939 = vpack.c.b16 %v831, %v829
        %v940 = vpack.c.b16 %v834, %v832
        %v941 = vpack.c.b16 %v835, %v833
        %v942 = vpack.c.b16 %v838, %v836
        %v943 = vpack.c.b16 %v839, %v837
        %v944 = vpack.c.b16 %v842, %v840
        %v945 = vpack.c.b16 %v843, %v841
        %v946 = vpack.c.b16 %v846, %v844
        %v947 = vpack.c.b16 %v847, %v845
        %v948 = vpack.c.b16 %v850, %v848
        %v949 = vpack.c.b16 %v851, %v849
        %v950 = vpack.c.b16 %v854, %v852
        %v951 = vpack.c.b16 %v855, %v853
        %v952 = vpack.c.b16 %v858, %v856
        %v953 = vpack.c.b16 %v859, %v857
        %v954 = vpack.c.b16 %v862, %v860
        %v955 = vpack.c.b16 %v863, %v861
        %v956 = vpack.c.b16 %v866, %v864
        %v957 = vpack.c.b16 %v867, %v865
        %v958 = vpack.c.b16 %v870, %v868
        %v959 = vpack.c.b16 %v871, %v869
        %v960 = vpack.c.b16 %v874, %v872
        %v961 = vpack.c.b16 %v875, %v873
        %v962 = vpack.c.b16 %v878, %v876
        %v963 = vpack.c.b16 %v879, %v877
        %v964 = vpack.c.b16 %v882, %v880
        %v965 = vpack.c.b16 %v883, %v881
        %v966 = vpack.c.b16 %v886, %v884
        %v967 = vpack.c.b16 %v887, %v885
        %v968 = vpack.c.b16 %v890, %v888
        %v969 = vpack.c.b16 %v891, %v889
        %v970 = vpack.c.b16 %v894, %v892
        %v971 = vpack.c.b16 %v895, %v893
        %v972 = vpack.c.b16 %v898, %v896
        %v973 = vpack.c.b16 %v899, %v897
        %v974 = vpack.c.b16 %v902, %v900
        %v975 = vpack.c.b16 %v903, %v901
        %v976 = vpack.c.b16 %v906, %v904
        %v977 = vpack.c.b16 %v907, %v905
        %v978 = vpack.c.b16 %v910, %v908
        %v979 = vpack.c.b16 %v911, %v909
        %v980 = vpack.c.b16 %v914, %v912
        %v981 = vpack.c.b16 %v915, %v913
        %v982 = vpack.c.b16 %v918, %v916
        %v983 = vpack.c.b16 %v919, %v917
        %v1080 = vunpack.c.l.b16 %v684
        %v1081 = vunpack.c.h.b16 %v684
        %v1082 = vunpack.c.l.b16 %v685
        %v1083 = vunpack.c.h.b16 %v685
        %v1084 = vunpack.c.l.b16 %v686
        %v1085 = vunpack.c.h.b16 %v686
        %v1086 = vunpack.c.l.b16 %v687
        %v1087 = vunpack.c.h.b16 %v687
        %v1088 = vunpack.c.l.b16 %v688
        %v1089 = vunpack.c.h.b16 %v688
        %v1090 = vunpack.c.l.b16 %v689
        %v1091 = vunpack.c.h.b16 %v689
        %v1092 = vunpack.c.l.b16 %v690
        %v1093 = vunpack.c.h.b16 %v690
        %v1094 = vunpack.c.l.b16 %v691
        %v1095 = vunpack.c.h.b16 %v691
        %v1096 = vunpack.c.l.b16 %v692
        %v1097 = vunpack.c.h.b16 %v692
        %v1098 = vunpack.c.l.b16 %v693
        %v1099 = vunpack.c.h.b16 %v693
        %v1100 = vunpack.c.l.b16 %v694
        %v1101 = vunpack.c.h.b16 %v694
        %v1102 = vunpack.c.l.b16 %v695
        %v1103 = vunpack.c.h.b16 %v695
        %v1104 = vunpack.c.l.b16 %v696
        %v1105 = vunpack.c.h.b16 %v696
        %v1106 = vunpack.c.l.b16 %v697
        %v1107 = vunpack.c.h.b16 %v697
        %v1108 = vunpack.c.l.b16 %v698
        %v1109 = vunpack.c.h.b16 %v698
        %v1110 = vunpack.c.l.b16 %v699
        %v1111 = vunpack.c.h.b16 %v699
        %v1112 = vunpack.c.l.b16 %v700
        %v1113 = vunpack.c.h.b16 %v700
        %v1114 = vunpack.c.l.b16 %v701
        %v1115 = vunpack.c.h.b16 %v701
        %v1116 = vunpack.c.l.b16 %v702
        %v1117 = vunpack.c.h.b16 %v702
        %v1118 = vunpack.c.l.b16 %v703
        %v1119 = vunpack.c.h.b16 %v703
        %v1120 = vunpack.c.l.b16 %v704
        %v1121 = vunpack.c.h.b16 %v704
        %v1122 = vunpack.c.l.b16 %v705
        %v1123 = vunpack.c.h.b16 %v705
        %v1124 = vunpack.c.l.b16 %v706
        %v1125 = vunpack.c.h.b16 %v706
        %v1126 = vunpack.c.l.b16 %v707
        %v1127 = vunpack.c.h.b16 %v707
        %v1128 = vunpack.c.l.b16 %v708
        %v1129 = vunpack.c.h.b16 %v708
        %v1130 = vunpack.c.l.b16 %v709
        %v1131 = vunpack.c.h.b16 %v709
        %v1132 = vunpack.c.l.b16 %v710
        %v1133 = vunpack.c.h.b16 %v710
        %v1134 = vunpack.c.l.b16 %v711
        %v1135 = vunpack.c.h.b16 %v711
        %v1136 = vunpack.c.l.b16 %v712
        %v1137 = vunpack.c.h.b16 %v712
        %v1138 = vunpack.c.l.b16 %v713
        %v1139 = vunpack.c.h.b16 %v713
        %v1140 = vunpack.c.l.b16 %v714
        %v1141 = vunpack.c.h.b16 %v714
        %v1142 = vunpack.c.l.b16 %v715
        %v1143 = vunpack.c.h.b16 %v715
        %v1144 = vpack.c.b16 %v1082, %v1080
        %v1145 = vpack.c.b16 %v1083, %v1081
        %v1146 = vpack.c.b16 %v1086, %v1084
        %v1147 = vpack.c.b16 %v1087, %v1085
        %v1148 = vpack.c.b16 %v1090, %v1088
        %v1149 = vpack.c.b16 %v1091, %v1089
        %v1150 = vpack.c.b16 %v1094, %v1092
        %v1151 = vpack.c.b16 %v1095, %v1093
        %v1152 = vpack.c.b16 %v1098, %v1096
        %v1153 = vpack.c.b16 %v1099, %v1097
        %v1154 = vpack.c.b16 %v1102, %v1100
        %v1155 = vpack.c.b16 %v1103, %v1101
        %v1156 = vpack.c.b16 %v1106, %v1104
        %v1157 = vpack.c.b16 %v1107, %v1105
        %v1158 = vpack.c.b16 %v1110, %v1108
        %v1159 = vpack.c.b16 %v1111, %v1109
        %v1160 = vpack.c.b16 %v1114, %v1112
        %v1161 = vpack.c.b16 %v1115, %v1113
        %v1162 = vpack.c.b16 %v1118, %v1116
        %v1163 = vpack.c.b16 %v1119, %v1117
        %v1164 = vpack.c.b16 %v1122, %v1120
        %v1165 = vpack.c.b16 %v1123, %v1121
        %v1166 = vpack.c.b16 %v1126, %v1124
        %v1167 = vpack.c.b16 %v1127, %v1125
        %v1168 = vpack.c.b16 %v1130, %v1128
        %v1169 = vpack.c.b16 %v1131, %v1129
        %v1170 = vpack.c.b16 %v1134, %v1132
        %v1171 = vpack.c.b16 %v1135, %v1133
        %v1172 = vpack.c.b16 %v1138, %v1136
        %v1173 = vpack.c.b16 %v1139, %v1137
        %v1174 = vpack.c.b16 %v1142, %v1140
        %v1175 = vpack.c.b16 %v1143, %v1141
        %1208 = vmatprep.subr.bf16.mxu0 %v1145
        %1209 = vmatpush1.bf16.msra.mxu0 %v1144
        %1210 = vmatprep.subr.bf16.mxu0 %v1147
        %1211 = vmatpush1.bf16.msra.mxu0 %v1146
        %1212 = vmatprep.subr.bf16.mxu0 %v1149
        %1213 = vmatpush1.bf16.msra.mxu0 %v1148
        %1214 = vmatprep.subr.bf16.mxu0 %v1151
        %1215 = vmatpush1.bf16.msra.mxu0 %v1150
        %1216 = vmatprep.subr.bf16.mxu0 %v1153
        %1217 = vmatpush1.bf16.msra.mxu0 %v1152
        %1218 = vmatprep.subr.bf16.mxu0 %v1155
        %1219 = vmatpush1.bf16.msra.mxu0 %v1154
        %1220 = vmatprep.subr.bf16.mxu0 %v1157
        %1221 = vmatpush1.bf16.msra.mxu0 %v1156
        %1222 = vmatprep.subr.bf16.mxu0 %v1159
        %1223 = vmatpush1.bf16.msra.mxu0 %v1158
        %1224 = vmatprep.subr.bf16.mxu0 %v1161
        %1225 = vmatpush1.bf16.msra.mxu0 %v1160
        %1226 = vmatprep.subr.bf16.mxu0 %v1163
        %1227 = vmatpush1.bf16.msra.mxu0 %v1162
        %1228 = vmatprep.subr.bf16.mxu0 %v1165
        %1229 = vmatpush1.bf16.msra.mxu0 %v1164
        %1230 = vmatprep.subr.bf16.mxu0 %v1167
        %1231 = vmatpush1.bf16.msra.mxu0 %v1166
        %1232 = vmatprep.subr.bf16.mxu0 %v1169
        %1233 = vmatpush1.bf16.msra.mxu0 %v1168
        %1234 = vmatprep.subr.bf16.mxu0 %v1171
        %1235 = vmatpush1.bf16.msra.mxu0 %v1170
        %1236 = vmatprep.subr.bf16.mxu0 %v1173
        %1237 = vmatpush1.bf16.msra.mxu0 %v1172
        %1238 = vmatprep.subr.bf16.mxu0 %v1175
        %1239 = vmatpush1.bf16.msra.mxu0 %v1174
        %1240 = vmatprep.mubr.bf16.mxu0 %v921
        %1241 = vmatmul.mubr.bf16.gmra.mrb[0].mxu0 %v920
        %v1242 = vpop.f32.mrb[0].mxu0
        %v1243 = vadd.f32 %v721, %v1242
        %v1244 = vpop.f32.mrb[0].mxu0
        %v1245 = vadd.f32 %v725, %v1244
        %v1246 = vpop.f32.mrb[0].mxu0
        %v1247 = vadd.f32 %v721, %v1246
        %v1248 = vpop.f32.mrb[0].mxu0
        %v1249 = vadd.f32 %v725, %v1248
        %1250 = vmatprep.mubr.bf16.mxu0 %v923
        %1251 = vmatmul.mubr.bf16.gmra.mrb[0].mxu0 %v922
        %v1252 = vpop.f32.mrb[0].mxu0
        %v1253 = vadd.f32 %v721, %v1252
        %v1254 = vpop.f32.mrb[0].mxu0
        %v1255 = vadd.f32 %v725, %v1254
        %v1256 = vpop.f32.mrb[0].mxu0
        %v1257 = vadd.f32 %v721, %v1256
        %v1258 = vpop.f32.mrb[0].mxu0
        %v1259 = vadd.f32 %v725, %v1258
        %1260 = vmatprep.mubr.bf16.mxu0 %v925
        %1261 = vmatmul.mubr.bf16.gmra.mrb[0].mxu0 %v924
        %v1262 = vpop.f32.mrb[0].mxu0
        %v1263 = vadd.f32 %v721, %v1262
        %v1264 = vpop.f32.mrb[0].mxu0
        %v1265 = vadd.f32 %v725, %v1264
        %v1266 = vpop.f32.mrb[0].mxu0
        %v1267 = vadd.f32 %v721, %v1266
        %v1268 = vpop.f32.mrb[0].mxu0
        %v1269 = vadd.f32 %v725, %v1268
        %1270 = vmatprep.mubr.bf16.mxu0 %v927
        %1271 = vmatmul.mubr.bf16.gmra.mrb[0].mxu0 %v926
        %v1272 = vpop.f32.mrb[0].mxu0
        %v1273 = vadd.f32 %v721, %v1272
        %v1274 = vpop.f32.mrb[0].mxu0
        %v1275 = vadd.f32 %v725, %v1274
        %v1276 = vpop.f32.mrb[0].mxu0
        %v1277 = vadd.f32 %v721, %v1276
        %v1278 = vpop.f32.mrb[0].mxu0
        %v1279 = vadd.f32 %v725, %v1278
        %1280 = vmatprep.mubr.bf16.mxu0 %v929
        %1281 = vmatmul.mubr.bf16.gmra.mrb[0].mxu0 %v928
        %v1282 = vpop.f32.mrb[0].mxu0
        %v1283 = vadd.f32 %v721, %v1282
        %v1284 = vpop.f32.mrb[0].mxu0
        %v1285 = vadd.f32 %v725, %v1284
        %v1286 = vpop.f32.mrb[0].mxu0
        %v1287 = vadd.f32 %v721, %v1286
        %v1288 = vpop.f32.mrb[0].mxu0
        %v1289 = vadd.f32 %v725, %v1288
        %1290 = vmatprep.mubr.bf16.mxu0 %v931
        %1291 = vmatmul.mubr.bf16.gmra.mrb[0].mxu0 %v930
        %v1292 = vpop.f32.mrb[0].mxu0
        %v1293 = vadd.f32 %v721, %v1292
        %v1294 = vpop.f32.mrb[0].mxu0
        %v1295 = vadd.f32 %v725, %v1294
        %v1296 = vpop.f32.mrb[0].mxu0
        %v1297 = vadd.f32 %v721, %v1296
        %v1298 = vpop.f32.mrb[0].mxu0
        %v1299 = vadd.f32 %v725, %v1298
        %1300 = vmatprep.mubr.bf16.mxu0 %v933
        %1301 = vmatmul.mubr.bf16.gmra.mrb[0].mxu0 %v932
        %v1302 = vpop.f32.mrb[0].mxu0
        %v1303 = vadd.f32 %v721, %v1302
        %v1304 = vpop.f32.mrb[0].mxu0
        %v1305 = vadd.f32 %v725, %v1304
        %v1306 = vpop.f32.mrb[0].mxu0
        %v1307 = vadd.f32 %v721, %v1306
        %v1308 = vpop.f32.mrb[0].mxu0
        %v1309 = vadd.f32 %v725, %v1308
        %1310 = vmatprep.mubr.bf16.mxu0 %v935
        %1311 = vmatmul.mubr.bf16.gmra.mrb[0].mxu0 %v934
        %v1312 = vpop.f32.mrb[0].mxu0
        %v1313 = vadd.f32 %v721, %v1312
        %v1314 = vpop.f32.mrb[0].mxu0
        %v1315 = vadd.f32 %v725, %v1314
        %v1316 = vpop.f32.mrb[0].mxu0
        %v1317 = vadd.f32 %v721, %v1316
        %v1318 = vpop.f32.mrb[0].mxu0
        %v1319 = vadd.f32 %v725, %v1318
        %1320 = vmatprep.mubr.bf16.mxu0 %v937
        %1321 = vmatmul.mubr.bf16.gmra.mrb[0].mxu0 %v936
        %v1322 = vpop.f32.mrb[0].mxu0
        %v1323 = vadd.f32 %v721, %v1322
        %v1324 = vpop.f32.mrb[0].mxu0
        %v1325 = vadd.f32 %v725, %v1324
        %v1326 = vpop.f32.mrb[0].mxu0
        %v1327 = vadd.f32 %v721, %v1326
        %v1328 = vpop.f32.mrb[0].mxu0
        %v1329 = vadd.f32 %v725, %v1328
        %1330 = vmatprep.mubr.bf16.mxu0 %v939
        %1331 = vmatmul.mubr.bf16.gmra.mrb[0].mxu0 %v938
        %v1332 = vpop.f32.mrb[0].mxu0
        %v1333 = vadd.f32 %v721, %v1332
        %v1334 = vpop.f32.mrb[0].mxu0
        %v1335 = vadd.f32 %v725, %v1334
        %v1336 = vpop.f32.mrb[0].mxu0
        %v1337 = vadd.f32 %v721, %v1336
        %v1338 = vpop.f32.mrb[0].mxu0
        %v1339 = vadd.f32 %v725, %v1338
        %1340 = vmatprep.mubr.bf16.mxu0 %v941
        %1341 = vmatmul.mubr.bf16.gmra.mrb[0].mxu0 %v940
        %v1342 = vpop.f32.mrb[0].mxu0
        %v1343 = vadd.f32 %v721, %v1342
        %v1344 = vpop.f32.mrb[0].mxu0
        %v1345 = vadd.f32 %v725, %v1344
        %v1346 = vpop.f32.mrb[0].mxu0
        %v1347 = vadd.f32 %v721, %v1346
        %v1348 = vpop.f32.mrb[0].mxu0
        %v1349 = vadd.f32 %v725, %v1348
        %1350 = vmatprep.mubr.bf16.mxu0 %v943
        %1351 = vmatmul.mubr.bf16.gmra.mrb[0].mxu0 %v942
        %v1352 = vpop.f32.mrb[0].mxu0
        %v1353 = vadd.f32 %v721, %v1352
        %v1354 = vpop.f32.mrb[0].mxu0
        %v1355 = vadd.f32 %v725, %v1354
        %v1356 = vpop.f32.mrb[0].mxu0
        %v1357 = vadd.f32 %v721, %v1356
        %v1358 = vpop.f32.mrb[0].mxu0
        %v1359 = vadd.f32 %v725, %v1358
        %1360 = vmatprep.mubr.bf16.mxu0 %v945
        %1361 = vmatmul.mubr.bf16.gmra.mrb[0].mxu0 %v944
        %v1362 = vpop.f32.mrb[0].mxu0
        %v1363 = vadd.f32 %v721, %v1362
        %v1364 = vpop.f32.mrb[0].mxu0
        %v1365 = vadd.f32 %v725, %v1364
        %v1366 = vpop.f32.mrb[0].mxu0
        %v1367 = vadd.f32 %v721, %v1366
        %v1368 = vpop.f32.mrb[0].mxu0
        %v1369 = vadd.f32 %v725, %v1368
        %1370 = vmatprep.mubr.bf16.mxu0 %v947
        %1371 = vmatmul.mubr.bf16.gmra.mrb[0].mxu0 %v946
        %v1372 = vpop.f32.mrb[0].mxu0
        %v1373 = vadd.f32 %v721, %v1372
        %v1374 = vpop.f32.mrb[0].mxu0
        %v1375 = vadd.f32 %v725, %v1374
        %v1376 = vpop.f32.mrb[0].mxu0
        %v1377 = vadd.f32 %v721, %v1376
        %v1378 = vpop.f32.mrb[0].mxu0
        %v1379 = vadd.f32 %v725, %v1378
        %1380 = vmatprep.mubr.bf16.mxu0 %v949
        %1381 = vmatmul.mubr.bf16.gmra.mrb[0].mxu0 %v948
        %v1382 = vpop.f32.mrb[0].mxu0
        %v1383 = vadd.f32 %v721, %v1382
        %v1384 = vpop.f32.mrb[0].mxu0
        %v1385 = vadd.f32 %v725, %v1384
        %v1386 = vpop.f32.mrb[0].mxu0
        %v1387 = vadd.f32 %v721, %v1386
        %v1388 = vpop.f32.mrb[0].mxu0
        %v1389 = vadd.f32 %v725, %v1388
        %1390 = vmatprep.mubr.bf16.mxu0 %v951
        %1391 = vmatmul.mubr.bf16.gmra.mrb[0].mxu0 %v950
        %v1392 = vpop.f32.mrb[0].mxu0
        %v1393 = vadd.f32 %v721, %v1392
        %v1394 = vpop.f32.mrb[0].mxu0
        %v1395 = vadd.f32 %v725, %v1394
        %v1396 = vpop.f32.mrb[0].mxu0
        %v1397 = vadd.f32 %v721, %v1396
        %v1398 = vpop.f32.mrb[0].mxu0
        %v1399 = vadd.f32 %v725, %v1398
        %1400 = vmatprep.mubr.bf16.mxu0 %v953
        %1401 = vmatmul.mubr.bf16.gmra.mrb[0].mxu0 %v952
        %v1402 = vpop.f32.mrb[0].mxu0
        %v1403 = vadd.f32 %v721, %v1402
        %v1404 = vpop.f32.mrb[0].mxu0
        %v1405 = vadd.f32 %v725, %v1404
        %v1406 = vpop.f32.mrb[0].mxu0
        %v1407 = vadd.f32 %v721, %v1406
        %v1408 = vpop.f32.mrb[0].mxu0
        %v1409 = vadd.f32 %v725, %v1408
        %1410 = vmatprep.mubr.bf16.mxu0 %v955
        %1411 = vmatmul.mubr.bf16.gmra.mrb[0].mxu0 %v954
        %v1412 = vpop.f32.mrb[0].mxu0
        %v1413 = vadd.f32 %v721, %v1412
        %v1414 = vpop.f32.mrb[0].mxu0
        %v1415 = vadd.f32 %v725, %v1414
        %v1416 = vpop.f32.mrb[0].mxu0
        %v1417 = vadd.f32 %v721, %v1416
        %v1418 = vpop.f32.mrb[0].mxu0
        %v1419 = vadd.f32 %v725, %v1418
        %1420 = vmatprep.mubr.bf16.mxu0 %v957
        %1421 = vmatmul.mubr.bf16.gmra.mrb[0].mxu0 %v956
        %v1422 = vpop.f32.mrb[0].mxu0
        %v1423 = vadd.f32 %v721, %v1422
        %v1424 = vpop.f32.mrb[0].mxu0
        %v1425 = vadd.f32 %v725, %v1424
        %v1426 = vpop.f32.mrb[0].mxu0
        %v1427 = vadd.f32 %v721, %v1426
        %v1428 = vpop.f32.mrb[0].mxu0
        %v1429 = vadd.f32 %v725, %v1428
        %1430 = vmatprep.mubr.bf16.mxu0 %v959
        %1431 = vmatmul.mubr.bf16.gmra.mrb[0].mxu0 %v958
        %v1432 = vpop.f32.mrb[0].mxu0
        %v1433 = vadd.f32 %v721, %v1432
        %v1434 = vpop.f32.mrb[0].mxu0
        %v1435 = vadd.f32 %v725, %v1434
        %v1436 = vpop.f32.mrb[0].mxu0
        %v1437 = vadd.f32 %v721, %v1436
        %v1438 = vpop.f32.mrb[0].mxu0
        %v1439 = vadd.f32 %v725, %v1438
        %1440 = vmatprep.mubr.bf16.mxu0 %v961
        %1441 = vmatmul.mubr.bf16.gmra.mrb[0].mxu0 %v960
        %v1442 = vpop.f32.mrb[0].mxu0
        %v1443 = vadd.f32 %v721, %v1442
        %v1444 = vpop.f32.mrb[0].mxu0
        %v1445 = vadd.f32 %v725, %v1444
        %v1446 = vpop.f32.mrb[0].mxu0
        %v1447 = vadd.f32 %v721, %v1446
        %v1448 = vpop.f32.mrb[0].mxu0
        %v1449 = vadd.f32 %v725, %v1448
        %1450 = vmatprep.mubr.bf16.mxu0 %v963
        %1451 = vmatmul.mubr.bf16.gmra.mrb[0].mxu0 %v962
        %v1452 = vpop.f32.mrb[0].mxu0
        %v1453 = vadd.f32 %v721, %v1452
        %v1454 = vpop.f32.mrb[0].mxu0
        %v1455 = vadd.f32 %v725, %v1454
        %v1456 = vpop.f32.mrb[0].mxu0
        %v1457 = vadd.f32 %v721, %v1456
        %v1458 = vpop.f32.mrb[0].mxu0
        %v1459 = vadd.f32 %v725, %v1458
        %1460 = vmatprep.mubr.bf16.mxu0 %v965
        %1461 = vmatmul.mubr.bf16.gmra.mrb[0].mxu0 %v964
        %v1462 = vpop.f32.mrb[0].mxu0
        %v1463 = vadd.f32 %v721, %v1462
        %v1464 = vpop.f32.mrb[0].mxu0
        %v1465 = vadd.f32 %v725, %v1464
        %v1466 = vpop.f32.mrb[0].mxu0
        %v1467 = vadd.f32 %v721, %v1466
        %v1468 = vpop.f32.mrb[0].mxu0
        %v1469 = vadd.f32 %v725, %v1468
        %1470 = vmatprep.mubr.bf16.mxu0 %v967
        %1471 = vmatmul.mubr.bf16.gmra.mrb[0].mxu0 %v966
        %v1472 = vpop.f32.mrb[0].mxu0
        %v1473 = vadd.f32 %v721, %v1472
        %v1474 = vpop.f32.mrb[0].mxu0
        %v1475 = vadd.f32 %v725, %v1474
        %v1476 = vpop.f32.mrb[0].mxu0
        %v1477 = vadd.f32 %v721, %v1476
        %v1478 = vpop.f32.mrb[0].mxu0
        %v1479 = vadd.f32 %v725, %v1478
        %1480 = vmatprep.mubr.bf16.mxu0 %v969
        %1481 = vmatmul.mubr.bf16.gmra.mrb[0].mxu0 %v968
        %v1482 = vpop.f32.mrb[0].mxu0
        %v1483 = vadd.f32 %v721, %v1482
        %v1484 = vpop.f32.mrb[0].mxu0
        %v1485 = vadd.f32 %v725, %v1484
        %v1486 = vpop.f32.mrb[0].mxu0
        %v1487 = vadd.f32 %v721, %v1486
        %v1488 = vpop.f32.mrb[0].mxu0
        %v1489 = vadd.f32 %v725, %v1488
        %1490 = vmatprep.mubr.bf16.mxu0 %v971
        %1491 = vmatmul.mubr.bf16.gmra.mrb[0].mxu0 %v970
        %v1492 = vpop.f32.mrb[0].mxu0
        %v1493 = vadd.f32 %v721, %v1492
        %v1494 = vpop.f32.mrb[0].mxu0
        %v1495 = vadd.f32 %v725, %v1494
        %v1496 = vpop.f32.mrb[0].mxu0
        %v1497 = vadd.f32 %v721, %v1496
        %v1498 = vpop.f32.mrb[0].mxu0
        %v1499 = vadd.f32 %v725, %v1498
        %1500 = vmatprep.mubr.bf16.mxu0 %v973
        %1501 = vmatmul.mubr.bf16.gmra.mrb[0].mxu0 %v972
        %v1502 = vpop.f32.mrb[0].mxu0
        %v1503 = vadd.f32 %v721, %v1502
        %v1504 = vpop.f32.mrb[0].mxu0
        %v1505 = vadd.f32 %v725, %v1504
        %v1506 = vpop.f32.mrb[0].mxu0
        %v1507 = vadd.f32 %v721, %v1506
        %v1508 = vpop.f32.mrb[0].mxu0
        %v1509 = vadd.f32 %v725, %v1508
        %1510 = vmatprep.mubr.bf16.mxu0 %v975
        %1511 = vmatmul.mubr.bf16.gmra.mrb[0].mxu0 %v974
        %v1512 = vpop.f32.mrb[0].mxu0
        %v1513 = vadd.f32 %v721, %v1512
        %v1514 = vpop.f32.mrb[0].mxu0
        %v1515 = vadd.f32 %v725, %v1514
        %v1516 = vpop.f32.mrb[0].mxu0
        %v1517 = vadd.f32 %v721, %v1516
        %v1518 = vpop.f32.mrb[0].mxu0
        %v1519 = vadd.f32 %v725, %v1518
        %1520 = vmatprep.mubr.bf16.mxu0 %v977
        %1521 = vmatmul.mubr.bf16.gmra.mrb[0].mxu0 %v976
        %v1522 = vpop.f32.mrb[0].mxu0
        %v1523 = vadd.f32 %v721, %v1522
        %v1524 = vpop.f32.mrb[0].mxu0
        %v1525 = vadd.f32 %v725, %v1524
        %v1526 = vpop.f32.mrb[0].mxu0
        %v1527 = vadd.f32 %v721, %v1526
        %v1528 = vpop.f32.mrb[0].mxu0
        %v1529 = vadd.f32 %v725, %v1528
        %1530 = vmatprep.mubr.bf16.mxu0 %v979
        %1531 = vmatmul.mubr.bf16.gmra.mrb[0].mxu0 %v978
        %v1532 = vpop.f32.mrb[0].mxu0
        %v1533 = vadd.f32 %v721, %v1532
        %v1534 = vpop.f32.mrb[0].mxu0
        %v1535 = vadd.f32 %v725, %v1534
        %v1536 = vpop.f32.mrb[0].mxu0
        %v1537 = vadd.f32 %v721, %v1536
        %v1538 = vpop.f32.mrb[0].mxu0
        %v1539 = vadd.f32 %v725, %v1538
        %1540 = vmatprep.mubr.bf16.mxu0 %v981
        %1541 = vmatmul.mubr.bf16.gmra.mrb[0].mxu0 %v980
        %v1542 = vpop.f32.mrb[0].mxu0
        %v1543 = vadd.f32 %v721, %v1542
        %v1544 = vpop.f32.mrb[0].mxu0
        %v1545 = vadd.f32 %v725, %v1544
        %v1546 = vpop.f32.mrb[0].mxu0
        %v1547 = vadd.f32 %v721, %v1546
        %v1548 = vpop.f32.mrb[0].mxu0
        %v1549 = vadd.f32 %v725, %v1548
        %1550 = vmatprep.mubr.bf16.mxu0 %v983
        %1551 = vmatmul.mubr.bf16.gmra.mrb[0].mxu0 %v982
        %v1552 = vpop.f32.mrb[0].mxu0
        %v1553 = vadd.f32 %v721, %v1552
        %v1554 = vpop.f32.mrb[0].mxu0
        %v1555 = vadd.f32 %v725, %v1554
        %v1556 = vpop.f32.mrb[0].mxu0
        %v1557 = vadd.f32 %v721, %v1556
        %v1558 = vpop.f32.mrb[0].mxu0
        %v1559 = vadd.f32 %v725, %v1558
        %1560 = vdwg.mxu0
        %v1561 = vmul.f32 %v1243, 0.088388346
        %v1562 = vmul.f32 %v1245, 0.088388346
        %v1563 = vmul.f32 %v1247, 0.088388346
        %v1564 = vmul.f32 %v1249, 0.088388346
        %v1565 = vmul.f32 %v1253, 0.088388346
        %v1566 = vmul.f32 %v1255, 0.088388346
        %v1567 = vmul.f32 %v1257, 0.088388346
        %v1568 = vmul.f32 %v1259, 0.088388346
        %v1569 = vmul.f32 %v1263, 0.088388346
        %v1570 = vmul.f32 %v1265, 0.088388346
        %v1571 = vmul.f32 %v1267, 0.088388346
        %v1572 = vmul.f32 %v1269, 0.088388346
        %v1573 = vmul.f32 %v1273, 0.088388346
        %v1574 = vmul.f32 %v1275, 0.088388346
        %v1575 = vmul.f32 %v1277, 0.088388346
        %v1576 = vmul.f32 %v1279, 0.088388346
        %v1577 = vmul.f32 %v1283, 0.088388346
        %v1578 = vmul.f32 %v1285, 0.088388346
        %v1579 = vmul.f32 %v1287, 0.088388346
        %v1580 = vmul.f32 %v1289, 0.088388346
        %v1581 = vmul.f32 %v1293, 0.088388346
        %v1582 = vmul.f32 %v1295, 0.088388346
        %v1583 = vmul.f32 %v1297, 0.088388346
        %v1584 = vmul.f32 %v1299, 0.088388346
        %v1585 = vmul.f32 %v1303, 0.088388346
        %v1586 = vmul.f32 %v1305, 0.088388346
        %v1587 = vmul.f32 %v1307, 0.088388346
        %v1588 = vmul.f32 %v1309, 0.088388346
        %v1589 = vmul.f32 %v1313, 0.088388346
        %v1590 = vmul.f32 %v1315, 0.088388346
        %v1591 = vmul.f32 %v1317, 0.088388346
        %v1592 = vmul.f32 %v1319, 0.088388346
        %v1593 = vmul.f32 %v1323, 0.088388346
        %v1594 = vmul.f32 %v1325, 0.088388346
        %v1595 = vmul.f32 %v1327, 0.088388346
        %v1596 = vmul.f32 %v1329, 0.088388346
        %v1597 = vmul.f32 %v1333, 0.088388346
        %v1598 = vmul.f32 %v1335, 0.088388346
        %v1599 = vmul.f32 %v1337, 0.088388346
        %v1600 = vmul.f32 %v1339, 0.088388346
        %v1601 = vmul.f32 %v1343, 0.088388346
        %v1602 = vmul.f32 %v1345, 0.088388346
        %v1603 = vmul.f32 %v1347, 0.088388346
        %v1604 = vmul.f32 %v1349, 0.088388346
        %v1605 = vmul.f32 %v1353, 0.088388346
        %v1606 = vmul.f32 %v1355, 0.088388346
        %v1607 = vmul.f32 %v1357, 0.088388346
        %v1608 = vmul.f32 %v1359, 0.088388346
        %v1609 = vmul.f32 %v1363, 0.088388346
        %v1610 = vmul.f32 %v1365, 0.088388346
        %v1611 = vmul.f32 %v1367, 0.088388346
        %v1612 = vmul.f32 %v1369, 0.088388346
        %v1613 = vmul.f32 %v1373, 0.088388346
        %v1614 = vmul.f32 %v1375, 0.088388346
        %v1615 = vmul.f32 %v1377, 0.088388346
        %v1616 = vmul.f32 %v1379, 0.088388346
        %v1617 = vmul.f32 %v1383, 0.088388346
        %v1618 = vmul.f32 %v1385, 0.088388346
        %v1619 = vmul.f32 %v1387, 0.088388346
        %v1620 = vmul.f32 %v1389, 0.088388346
        %v1621 = vmul.f32 %v1393, 0.088388346
        %v1622 = vmul.f32 %v1395, 0.088388346
        %v1623 = vmul.f32 %v1397, 0.088388346
        %v1624 = vmul.f32 %v1399, 0.088388346
        %v1625 = vmul.f32 %v1403, 0.088388346
        %v1626 = vmul.f32 %v1405, 0.088388346
        %v1627 = vmul.f32 %v1407, 0.088388346
        %v1628 = vmul.f32 %v1409, 0.088388346
        %v1629 = vmul.f32 %v1413, 0.088388346
        %v1630 = vmul.f32 %v1415, 0.088388346
        %v1631 = vmul.f32 %v1417, 0.088388346
        %v1632 = vmul.f32 %v1419, 0.088388346
        %v1633 = vmul.f32 %v1423, 0.088388346
        %v1634 = vmul.f32 %v1425, 0.088388346
        %v1635 = vmul.f32 %v1427, 0.088388346
        %v1636 = vmul.f32 %v1429, 0.088388346
        %v1637 = vmul.f32 %v1433, 0.088388346
        %v1638 = vmul.f32 %v1435, 0.088388346
        %v1639 = vmul.f32 %v1437, 0.088388346
        %v1640 = vmul.f32 %v1439, 0.088388346
        %v1641 = vmul.f32 %v1443, 0.088388346
        %v1642 = vmul.f32 %v1445, 0.088388346
        %v1643 = vmul.f32 %v1447, 0.088388346
        %v1644 = vmul.f32 %v1449, 0.088388346
        %v1645 = vmul.f32 %v1453, 0.088388346
        %v1646 = vmul.f32 %v1455, 0.088388346
        %v1647 = vmul.f32 %v1457, 0.088388346
        %v1648 = vmul.f32 %v1459, 0.088388346
        %v1649 = vmul.f32 %v1463, 0.088388346
        %v1650 = vmul.f32 %v1465, 0.088388346
        %v1651 = vmul.f32 %v1467, 0.088388346
        %v1652 = vmul.f32 %v1469, 0.088388346
        %v1653 = vmul.f32 %v1473, 0.088388346
        %v1654 = vmul.f32 %v1475, 0.088388346
        %v1655 = vmul.f32 %v1477, 0.088388346
        %v1656 = vmul.f32 %v1479, 0.088388346
        %v1657 = vmul.f32 %v1483, 0.088388346
        %v1658 = vmul.f32 %v1485, 0.088388346
        %v1659 = vmul.f32 %v1487, 0.088388346
        %v1660 = vmul.f32 %v1489, 0.088388346
        %v1661 = vmul.f32 %v1493, 0.088388346
        %v1662 = vmul.f32 %v1495, 0.088388346
        %v1663 = vmul.f32 %v1497, 0.088388346
        %v1664 = vmul.f32 %v1499, 0.088388346
        %v1665 = vmul.f32 %v1503, 0.088388346
        %v1666 = vmul.f32 %v1505, 0.088388346
        %v1667 = vmul.f32 %v1507, 0.088388346
        %v1668 = vmul.f32 %v1509, 0.088388346
        %v1669 = vmul.f32 %v1513, 0.088388346
        %v1670 = vmul.f32 %v1515, 0.088388346
        %v1671 = vmul.f32 %v1517, 0.088388346
        %v1672 = vmul.f32 %v1519, 0.088388346
        %v1673 = vmul.f32 %v1523, 0.088388346
        %v1674 = vmul.f32 %v1525, 0.088388346
        %v1675 = vmul.f32 %v1527, 0.088388346
        %v1676 = vmul.f32 %v1529, 0.088388346
        %v1677 = vmul.f32 %v1533, 0.088388346
        %v1678 = vmul.f32 %v1535, 0.088388346
        %v1679 = vmul.f32 %v1537, 0.088388346
        %v1680 = vmul.f32 %v1539, 0.088388346
        %v1681 = vmul.f32 %v1543, 0.088388346
        %v1682 = vmul.f32 %v1545, 0.088388346
        %v1683 = vmul.f32 %v1547, 0.088388346
        %v1684 = vmul.f32 %v1549, 0.088388346
        %v1685 = vmul.f32 %v1553, 0.088388346
        %v1686 = vmul.f32 %v1555, 0.088388346
        %v1687 = vmul.f32 %v1557, 0.088388346
        %v1688 = vmul.f32 %v1559, 0.088388346
        %v1689 = vpack.c.bf16 %v1563, %v1561
        %v1690 = vpack.c.bf16 %v1564, %v1562
        %v1691 = vpack.c.bf16 %v1567, %v1565
        %v1692 = vpack.c.bf16 %v1568, %v1566
        %v1693 = vpack.c.bf16 %v1571, %v1569
        %v1694 = vpack.c.bf16 %v1572, %v1570
        %v1695 = vpack.c.bf16 %v1575, %v1573
        %v1696 = vpack.c.bf16 %v1576, %v1574
        %v1697 = vpack.c.bf16 %v1579, %v1577
        %v1698 = vpack.c.bf16 %v1580, %v1578
        %v1699 = vpack.c.bf16 %v1583, %v1581
        %v1700 = vpack.c.bf16 %v1584, %v1582
        %v1701 = vpack.c.bf16 %v1587, %v1585
        %v1702 = vpack.c.bf16 %v1588, %v1586
        %v1703 = vpack.c.bf16 %v1591, %v1589
        %v1704 = vpack.c.bf16 %v1592, %v1590
        %v1705 = vpack.c.bf16 %v1595, %v1593
        %v1706 = vpack.c.bf16 %v1596, %v1594
        %v1707 = vpack.c.bf16 %v1599, %v1597
        %v1708 = vpack.c.bf16 %v1600, %v1598
        %v1709 = vpack.c.bf16 %v1603, %v1601
        %v1710 = vpack.c.bf16 %v1604, %v1602
        %v1711 = vpack.c.bf16 %v1607, %v1605
        %v1712 = vpack.c.bf16 %v1608, %v1606
        %v1713 = vpack.c.bf16 %v1611, %v1609
        %v1714 = vpack.c.bf16 %v1612, %v1610
        %v1715 = vpack.c.bf16 %v1615, %v1613
        %v1716 = vpack.c.bf16 %v1616, %v1614
        %v1717 = vpack.c.bf16 %v1619, %v1617
        %v1718 = vpack.c.bf16 %v1620, %v1618
        %v1719 = vpack.c.bf16 %v1623, %v1621
        %v1720 = vpack.c.bf16 %v1624, %v1622
        %v1721 = vpack.c.bf16 %v1627, %v1625
        %v1722 = vpack.c.bf16 %v1628, %v1626
        %v1723 = vpack.c.bf16 %v1631, %v1629
        %v1724 = vpack.c.bf16 %v1632, %v1630
        %v1725 = vpack.c.bf16 %v1635, %v1633
        %v1726 = vpack.c.bf16 %v1636, %v1634
        %v1727 = vpack.c.bf16 %v1639, %v1637
        %v1728 = vpack.c.bf16 %v1640, %v1638
        %v1729 = vpack.c.bf16 %v1643, %v1641
        %v1730 = vpack.c.bf16 %v1644, %v1642
        %v1731 = vpack.c.bf16 %v1647, %v1645
        %v1732 = vpack.c.bf16 %v1648, %v1646
        %v1733 = vpack.c.bf16 %v1651, %v1649
        %v1734 = vpack.c.bf16 %v1652, %v1650
        %v1735 = vpack.c.bf16 %v1655, %v1653
        %v1736 = vpack.c.bf16 %v1656, %v1654
        %v1737 = vpack.c.bf16 %v1659, %v1657
        %v1738 = vpack.c.bf16 %v1660, %v1658
        %v1739 = vpack.c.bf16 %v1663, %v1661
        %v1740 = vpack.c.bf16 %v1664, %v1662
        %v1741 = vpack.c.bf16 %v1667, %v1665
        %v1742 = vpack.c.bf16 %v1668, %v1666
        %v1743 = vpack.c.bf16 %v1671, %v1669
        %v1744 = vpack.c.bf16 %v1672, %v1670
        %v1745 = vpack.c.bf16 %v1675, %v1673
        %v1746 = vpack.c.bf16 %v1676, %v1674
        %v1747 = vpack.c.bf16 %v1679, %v1677
        %v1748 = vpack.c.bf16 %v1680, %v1678
        %v1749 = vpack.c.bf16 %v1683, %v1681
        %v1750 = vpack.c.bf16 %v1684, %v1682
        %v1751 = vpack.c.bf16 %v1687, %v1685
        %v1752 = vpack.c.bf16 %v1688, %v1686
        %v1817 = vunpack.c.l.b16 %v1689
        %v1818 = vunpack.c.l.b16 %v1690
        %v1819 = vunpack.c.h.b16 %v1689
        %v1820 = vunpack.c.h.b16 %v1690
        %v1821 = vunpack.c.l.b16 %v1691
        %v1822 = vunpack.c.l.b16 %v1692
        %v1823 = vunpack.c.h.b16 %v1691
        %v1824 = vunpack.c.h.b16 %v1692
        %v1825 = vunpack.c.l.b16 %v1693
        %v1826 = vunpack.c.l.b16 %v1694
        %v1827 = vunpack.c.h.b16 %v1693
        %v1828 = vunpack.c.h.b16 %v1694
        %v1829 = vunpack.c.l.b16 %v1695
        %v1830 = vunpack.c.l.b16 %v1696
        %v1831 = vunpack.c.h.b16 %v1695
        %v1832 = vunpack.c.h.b16 %v1696
        %v1833 = vunpack.c.l.b16 %v1697
        %v1834 = vunpack.c.l.b16 %v1698
        %v1835 = vunpack.c.h.b16 %v1697
        %v1836 = vunpack.c.h.b16 %v1698
        %v1837 = vunpack.c.l.b16 %v1699
        %v1838 = vunpack.c.l.b16 %v1700
        %v1839 = vunpack.c.h.b16 %v1699
        %v1840 = vunpack.c.h.b16 %v1700
        %v1841 = vunpack.c.l.b16 %v1701
        %v1842 = vunpack.c.l.b16 %v1702
        %v1843 = vunpack.c.h.b16 %v1701
        %v1844 = vunpack.c.h.b16 %v1702
        %v1845 = vunpack.c.l.b16 %v1703
        %v1846 = vunpack.c.l.b16 %v1704
        %v1847 = vunpack.c.h.b16 %v1703
        %v1848 = vunpack.c.h.b16 %v1704
        %v1849 = vunpack.c.l.b16 %v1705
        %v1850 = vunpack.c.l.b16 %v1706
        %v1851 = vunpack.c.h.b16 %v1705
        %v1852 = vunpack.c.h.b16 %v1706
        %v1853 = vunpack.c.l.b16 %v1707
        %v1854 = vunpack.c.l.b16 %v1708
        %v1855 = vunpack.c.h.b16 %v1707
        %v1856 = vunpack.c.h.b16 %v1708
        %v1857 = vunpack.c.l.b16 %v1709
        %v1858 = vunpack.c.l.b16 %v1710
        %v1859 = vunpack.c.h.b16 %v1709
        %v1860 = vunpack.c.h.b16 %v1710
        %v1861 = vunpack.c.l.b16 %v1711
        %v1862 = vunpack.c.l.b16 %v1712
        %v1863 = vunpack.c.h.b16 %v1711
        %v1864 = vunpack.c.h.b16 %v1712
        %v1865 = vunpack.c.l.b16 %v1713
        %v1866 = vunpack.c.l.b16 %v1714
        %v1867 = vunpack.c.h.b16 %v1713
        %v1868 = vunpack.c.h.b16 %v1714
        %v1869 = vunpack.c.l.b16 %v1715
        %v1870 = vunpack.c.l.b16 %v1716
        %v1871 = vunpack.c.h.b16 %v1715
        %v1872 = vunpack.c.h.b16 %v1716
        %v1873 = vunpack.c.l.b16 %v1717
        %v1874 = vunpack.c.l.b16 %v1718
        %v1875 = vunpack.c.h.b16 %v1717
        %v1876 = vunpack.c.h.b16 %v1718
        %v1877 = vunpack.c.l.b16 %v1719
        %v1878 = vunpack.c.l.b16 %v1720
        %v1879 = vunpack.c.h.b16 %v1719
        %v1880 = vunpack.c.h.b16 %v1720
        %v1881 = vunpack.c.l.b16 %v1721
        %v1882 = vunpack.c.l.b16 %v1722
        %v1883 = vunpack.c.h.b16 %v1721
        %v1884 = vunpack.c.h.b16 %v1722
        %v1885 = vunpack.c.l.b16 %v1723
        %v1886 = vunpack.c.l.b16 %v1724
        %v1887 = vunpack.c.h.b16 %v1723
        %v1888 = vunpack.c.h.b16 %v1724
        %v1889 = vunpack.c.l.b16 %v1725
        %v1890 = vunpack.c.l.b16 %v1726
        %v1891 = vunpack.c.h.b16 %v1725
        %v1892 = vunpack.c.h.b16 %v1726
        %v1893 = vunpack.c.l.b16 %v1727
        %v1894 = vunpack.c.l.b16 %v1728
        %v1895 = vunpack.c.h.b16 %v1727
        %v1896 = vunpack.c.h.b16 %v1728
        %v1897 = vunpack.c.l.b16 %v1729
        %v1898 = vunpack.c.l.b16 %v1730
        %v1899 = vunpack.c.h.b16 %v1729
        %v1900 = vunpack.c.h.b16 %v1730
        %v1901 = vunpack.c.l.b16 %v1731
        %v1902 = vunpack.c.l.b16 %v1732
        %v1903 = vunpack.c.h.b16 %v1731
        %v1904 = vunpack.c.h.b16 %v1732
        %v1905 = vunpack.c.l.b16 %v1733
        %v1906 = vunpack.c.l.b16 %v1734
        %v1907 = vunpack.c.h.b16 %v1733
        %v1908 = vunpack.c.h.b16 %v1734
        %v1909 = vunpack.c.l.b16 %v1735
        %v1910 = vunpack.c.l.b16 %v1736
        %v1911 = vunpack.c.h.b16 %v1735
        %v1912 = vunpack.c.h.b16 %v1736
        %v1913 = vunpack.c.l.b16 %v1737
        %v1914 = vunpack.c.l.b16 %v1738
        %v1915 = vunpack.c.h.b16 %v1737
        %v1916 = vunpack.c.h.b16 %v1738
        %v1917 = vunpack.c.l.b16 %v1739
        %v1918 = vunpack.c.l.b16 %v1740
        %v1919 = vunpack.c.h.b16 %v1739
        %v1920 = vunpack.c.h.b16 %v1740
        %v1921 = vunpack.c.l.b16 %v1741
        %v1922 = vunpack.c.l.b16 %v1742
        %v1923 = vunpack.c.h.b16 %v1741
        %v1924 = vunpack.c.h.b16 %v1742
        %v1925 = vunpack.c.l.b16 %v1743
        %v1926 = vunpack.c.l.b16 %v1744
        %v1927 = vunpack.c.h.b16 %v1743
        %v1928 = vunpack.c.h.b16 %v1744
        %v1929 = vunpack.c.l.b16 %v1745
        %v1930 = vunpack.c.l.b16 %v1746
        %v1931 = vunpack.c.h.b16 %v1745
        %v1932 = vunpack.c.h.b16 %v1746
        %v1933 = vunpack.c.l.b16 %v1747
        %v1934 = vunpack.c.l.b16 %v1748
        %v1935 = vunpack.c.h.b16 %v1747
        %v1936 = vunpack.c.h.b16 %v1748
        %v1937 = vunpack.c.l.b16 %v1749
        %v1938 = vunpack.c.l.b16 %v1750
        %v1939 = vunpack.c.h.b16 %v1749
        %v1940 = vunpack.c.h.b16 %v1750
        %v1941 = vunpack.c.l.b16 %v1751
        %v1942 = vunpack.c.l.b16 %v1752
        %v1943 = vunpack.c.h.b16 %v1751
        %v1944 = vunpack.c.h.b16 %v1752
        %v1945 = vpack.c.b16 %v1818, %v1817
        %v1946 = vpack.c.b16 %v1820, %v1819
        %v1947 = vpack.c.b16 %v1822, %v1821
        %v1948 = vpack.c.b16 %v1824, %v1823
        %v1949 = vpack.c.b16 %v1826, %v1825
        %v1950 = vpack.c.b16 %v1828, %v1827
        %v1951 = vpack.c.b16 %v1830, %v1829
        %v1952 = vpack.c.b16 %v1832, %v1831
        %v1953 = vpack.c.b16 %v1834, %v1833
        %v1954 = vpack.c.b16 %v1836, %v1835
        %v1955 = vpack.c.b16 %v1838, %v1837
        %v1956 = vpack.c.b16 %v1840, %v1839
        %v1957 = vpack.c.b16 %v1842, %v1841
        %v1958 = vpack.c.b16 %v1844, %v1843
        %v1959 = vpack.c.b16 %v1846, %v1845
        %v1960 = vpack.c.b16 %v1848, %v1847
        %v1961 = vpack.c.b16 %v1850, %v1849
        %v1962 = vpack.c.b16 %v1852, %v1851
        %v1963 = vpack.c.b16 %v1854, %v1853
        %v1964 = vpack.c.b16 %v1856, %v1855
        %v1965 = vpack.c.b16 %v1858, %v1857
        %v1966 = vpack.c.b16 %v1860, %v1859
        %v1967 = vpack.c.b16 %v1862, %v1861
        %v1968 = vpack.c.b16 %v1864, %v1863
        %v1969 = vpack.c.b16 %v1866, %v1865
        %v1970 = vpack.c.b16 %v1868, %v1867
        %v1971 = vpack.c.b16 %v1870, %v1869
        %v1972 = vpack.c.b16 %v1872, %v1871
        %v1973 = vpack.c.b16 %v1874, %v1873
        %v1974 = vpack.c.b16 %v1876, %v1875
        %v1975 = vpack.c.b16 %v1878, %v1877
        %v1976 = vpack.c.b16 %v1880, %v1879
        %v1977 = vpack.c.b16 %v1882, %v1881
        %v1978 = vpack.c.b16 %v1884, %v1883
        %v1979 = vpack.c.b16 %v1886, %v1885
        %v1980 = vpack.c.b16 %v1888, %v1887
        %v1981 = vpack.c.b16 %v1890, %v1889
        %v1982 = vpack.c.b16 %v1892, %v1891
        %v1983 = vpack.c.b16 %v1894, %v1893
        %v1984 = vpack.c.b16 %v1896, %v1895
        %v1985 = vpack.c.b16 %v1898, %v1897
        %v1986 = vpack.c.b16 %v1900, %v1899
        %v1987 = vpack.c.b16 %v1902, %v1901
        %v1988 = vpack.c.b16 %v1904, %v1903
        %v1989 = vpack.c.b16 %v1906, %v1905
        %v1990 = vpack.c.b16 %v1908, %v1907
        %v1991 = vpack.c.b16 %v1910, %v1909
        %v1992 = vpack.c.b16 %v1912, %v1911
        %v1993 = vpack.c.b16 %v1914, %v1913
        %v1994 = vpack.c.b16 %v1916, %v1915
        %v1995 = vpack.c.b16 %v1918, %v1917
        %v1996 = vpack.c.b16 %v1920, %v1919
        %v1997 = vpack.c.b16 %v1922, %v1921
        %v1998 = vpack.c.b16 %v1924, %v1923
        %v1999 = vpack.c.b16 %v1926, %v1925
        %v2000 = vpack.c.b16 %v1928, %v1927
        %v2001 = vpack.c.b16 %v1930, %v1929
        %v2002 = vpack.c.b16 %v1932, %v1931
        %v2003 = vpack.c.b16 %v1934, %v1933
        %v2004 = vpack.c.b16 %v1936, %v1935
        %v2005 = vpack.c.b16 %v1938, %v1937
        %v2006 = vpack.c.b16 %v1940, %v1939
        %v2007 = vpack.c.b16 %v1942, %v1941
        %v2008 = vpack.c.b16 %v1944, %v1943
        %2073 = vst [vmem:[%s599] sm:$0xff] %v1945
        %2074 = vst [vmem:[%s599 + $0x8] sm:$0xff] %v1946
        %2075 = vst [vmem:[%s599 + $0x10] sm:$0xff] %v1947
        %2076 = vst [vmem:[%s599 + $0x18] sm:$0xff] %v1948
        %2077 = vst [vmem:[%s599 + $0x20] sm:$0xff] %v1949
        %2078 = vst [vmem:[%s599 + $0x28] sm:$0xff] %v1950
        %2079 = vst [vmem:[%s599 + $0x30] sm:$0xff] %v1951
        %2080 = vst [vmem:[%s599 + $0x38] sm:$0xff] %v1952
        %2081 = vst [vmem:[%s599 + $0x40] sm:$0xff] %v1953
        %2082 = vst [vmem:[%s599 + $0x48] sm:$0xff] %v1954
        %2083 = vst [vmem:[%s599 + $0x50] sm:$0xff] %v1955
        %2084 = vst [vmem:[%s599 + $0x58] sm:$0xff] %v1956
        %2085 = vst [vmem:[%s599 + $0x60] sm:$0xff] %v1957
        %2086 = vst [vmem:[%s599 + $0x68] sm:$0xff] %v1958
        %2087 = vst [vmem:[%s599 + $0x70] sm:$0xff] %v1959
        %2088 = vst [vmem:[%s599 + $0x78] sm:$0xff] %v1960
        %2089 = vst [vmem:[%s599 + $0x80] sm:$0xff] %v1961
        %2090 = vst [vmem:[%s599 + $0x88] sm:$0xff] %v1962
        %2091 = vst [vmem:[%s599 + $0x90] sm:$0xff] %v1963
        %2092 = vst [vmem:[%s599 + $0x98] sm:$0xff] %v1964
        %2093 = vst [vmem:[%s599 + $0xa0] sm:$0xff] %v1965
        %2094 = vst [vmem:[%s599 + $0xa8] sm:$0xff] %v1966
        %2095 = vst [vmem:[%s599 + $0xb0] sm:$0xff] %v1967
        %2096 = vst [vmem:[%s599 + $0xb8] sm:$0xff] %v1968
        %2097 = vst [vmem:[%s599 + $0xc0] sm:$0xff] %v1969
        %2098 = vst [vmem:[%s599 + $0xc8] sm:$0xff] %v1970
        %2099 = vst [vmem:[%s599 + $0xd0] sm:$0xff] %v1971
        %2100 = vst [vmem:[%s599 + $0xd8] sm:$0xff] %v1972
        %2101 = vst [vmem:[%s599 + $0xe0] sm:$0xff] %v1973
        %2102 = vst [vmem:[%s599 + $0xe8] sm:$0xff] %v1974
        %2103 = vst [vmem:[%s599 + $0xf0] sm:$0xff] %v1975
        %2104 = vst [vmem:[%s599 + $0xf8] sm:$0xff] %v1976
        %2105 = vst [vmem:[%s599 + $0x100] sm:$0xff] %v1977
        %2106 = vst [vmem:[%s599 + $0x108] sm:$0xff] %v1978
        %2107 = vst [vmem:[%s599 + $0x110] sm:$0xff] %v1979
        %2108 = vst [vmem:[%s599 + $0x118] sm:$0xff] %v1980
        %2109 = vst [vmem:[%s599 + $0x120] sm:$0xff] %v1981
        %2110 = vst [vmem:[%s599 + $0x128] sm:$0xff] %v1982
        %2111 = vst [vmem:[%s599 + $0x130] sm:$0xff] %v1983
        %2112 = vst [vmem:[%s599 + $0x138] sm:$0xff] %v1984
        %2113 = vst [vmem:[%s599 + $0x140] sm:$0xff] %v1985
        %2114 = vst [vmem:[%s599 + $0x148] sm:$0xff] %v1986
        %2115 = vst [vmem:[%s599 + $0x150] sm:$0xff] %v1987
        %2116 = vst [vmem:[%s599 + $0x158] sm:$0xff] %v1988
        %2117 = vst [vmem:[%s599 + $0x160] sm:$0xff] %v1989
        %2118 = vst [vmem:[%s599 + $0x168] sm:$0xff] %v1990
        %2119 = vst [vmem:[%s599 + $0x170] sm:$0xff] %v1991
        %2120 = vst [vmem:[%s599 + $0x178] sm:$0xff] %v1992
        %2121 = vst [vmem:[%s599 + $0x180] sm:$0xff] %v1993
        %2122 = vst [vmem:[%s599 + $0x188] sm:$0xff] %v1994
        %2123 = vst [vmem:[%s599 + $0x190] sm:$0xff] %v1995
        %2124 = vst [vmem:[%s599 + $0x198] sm:$0xff] %v1996
        %2125 = vst [vmem:[%s599 + $0x1a0] sm:$0xff] %v1997
        %2126 = vst [vmem:[%s599 + $0x1a8] sm:$0xff] %v1998
        %2127 = vst [vmem:[%s599 + $0x1b0] sm:$0xff] %v1999
        %2128 = vst [vmem:[%s599 + $0x1b8] sm:$0xff] %v2000
        %2129 = vst [vmem:[%s599 + $0x1c0] sm:$0xff] %v2001
        %2130 = vst [vmem:[%s599 + $0x1c8] sm:$0xff] %v2002
        %2131 = vst [vmem:[%s599 + $0x1d0] sm:$0xff] %v2003
        %2132 = vst [vmem:[%s599 + $0x1d8] sm:$0xff] %v2004
        %2133 = vst [vmem:[%s599 + $0x1e0] sm:$0xff] %v2005
        %2134 = vst [vmem:[%s599 + $0x1e8] sm:$0xff] %v2006
        %2135 = vst [vmem:[%s599 + $0x1f0] sm:$0xff] %v2007
        %2136 = vst [vmem:[%s599 + $0x1f8] sm:$0xff] %v2008
        %v2137 = vld [vmem:[%s522] sm:$0xff]
        %v2138 = vld [vmem:[%s522 + $0x8] sm:$0xff]
        %v2139 = vld [vmem:[%s522 + $0x10] sm:$0xff]
        %v2140 = vld [vmem:[%s522 + $0x18] sm:$0xff]
        %v2141 = vld [vmem:[%s522 + $0x20] sm:$0xff]
        %v2142 = vld [vmem:[%s522 + $0x28] sm:$0xff]
        %v2143 = vld [vmem:[%s522 + $0x30] sm:$0xff]
        %v2144 = vld [vmem:[%s522 + $0x38] sm:$0xff]
        %v2145 = vld [vmem:[%s522 + $0x40] sm:$0xff]
        %v2146 = vld [vmem:[%s522 + $0x48] sm:$0xff]
        %v2147 = vld [vmem:[%s522 + $0x50] sm:$0xff]
        %v2148 = vld [vmem:[%s522 + $0x58] sm:$0xff]
        %v2149 = vld [vmem:[%s522 + $0x60] sm:$0xff]
        %v2150 = vld [vmem:[%s522 + $0x68] sm:$0xff]
        %v2151 = vld [vmem:[%s522 + $0x70] sm:$0xff]
        %v2152 = vld [vmem:[%s522 + $0x78] sm:$0xff]
        %v2153 = vld [vmem:[%s522 + $0x80] sm:$0xff]
        %v2154 = vld [vmem:[%s522 + $0x88] sm:$0xff]
        %v2155 = vld [vmem:[%s522 + $0x90] sm:$0xff]
        %v2156 = vld [vmem:[%s522 + $0x98] sm:$0xff]
        %v2157 = vld [vmem:[%s522 + $0xa0] sm:$0xff]
        %v2158 = vld [vmem:[%s522 + $0xa8] sm:$0xff]
        %v2159 = vld [vmem:[%s522 + $0xb0] sm:$0xff]
        %v2160 = vld [vmem:[%s522 + $0xb8] sm:$0xff]
        %v2161 = vld [vmem:[%s522 + $0xc0] sm:$0xff]
        %v2162 = vld [vmem:[%s522 + $0xc8] sm:$0xff]
        %v2163 = vld [vmem:[%s522 + $0xd0] sm:$0xff]
        %v2164 = vld [vmem:[%s522 + $0xd8] sm:$0xff]
        %v2165 = vld [vmem:[%s522 + $0xe0] sm:$0xff]
        %v2166 = vld [vmem:[%s522 + $0xe8] sm:$0xff]
        %v2167 = vld [vmem:[%s522 + $0xf0] sm:$0xff]
        %v2168 = vld [vmem:[%s522 + $0xf8] sm:$0xff]
        %v2169 = vld [vmem:[%s522 + $0x100] sm:$0xff]
        %v2170 = vld [vmem:[%s522 + $0x108] sm:$0xff]
        %v2171 = vld [vmem:[%s522 + $0x110] sm:$0xff]
        %v2172 = vld [vmem:[%s522 + $0x118] sm:$0xff]
        %v2173 = vld [vmem:[%s522 + $0x120] sm:$0xff]
        %v2174 = vld [vmem:[%s522 + $0x128] sm:$0xff]
        %v2175 = vld [vmem:[%s522 + $0x130] sm:$0xff]
        %v2176 = vld [vmem:[%s522 + $0x138] sm:$0xff]
        %v2177 = vld [vmem:[%s522 + $0x140] sm:$0xff]
        %v2178 = vld [vmem:[%s522 + $0x148] sm:$0xff]
        %v2179 = vld [vmem:[%s522 + $0x150] sm:$0xff]
        %v2180 = vld [vmem:[%s522 + $0x158] sm:$0xff]
        %v2181 = vld [vmem:[%s522 + $0x160] sm:$0xff]
        %v2182 = vld [vmem:[%s522 + $0x168] sm:$0xff]
        %v2183 = vld [vmem:[%s522 + $0x170] sm:$0xff]
        %v2184 = vld [vmem:[%s522 + $0x178] sm:$0xff]
        %v2185 = vld [vmem:[%s522 + $0x180] sm:$0xff]
        %v2186 = vld [vmem:[%s522 + $0x188] sm:$0xff]
        %v2187 = vld [vmem:[%s522 + $0x190] sm:$0xff]
        %v2188 = vld [vmem:[%s522 + $0x198] sm:$0xff]
        %v2189 = vld [vmem:[%s522 + $0x1a0] sm:$0xff]
        %v2190 = vld [vmem:[%s522 + $0x1a8] sm:$0xff]
        %v2191 = vld [vmem:[%s522 + $0x1b0] sm:$0xff]
        %v2192 = vld [vmem:[%s522 + $0x1b8] sm:$0xff]
        %v2193 = vld [vmem:[%s522 + $0x1c0] sm:$0xff]
        %v2194 = vld [vmem:[%s522 + $0x1c8] sm:$0xff]
        %v2195 = vld [vmem:[%s522 + $0x1d0] sm:$0xff]
        %v2196 = vld [vmem:[%s522 + $0x1d8] sm:$0xff]
        %v2197 = vld [vmem:[%s522 + $0x1e0] sm:$0xff]
        %v2198 = vld [vmem:[%s522 + $0x1e8] sm:$0xff]
        %v2199 = vld [vmem:[%s522 + $0x1f0] sm:$0xff]
        %v2200 = vld [vmem:[%s522 + $0x1f8] sm:$0xff]
        %v2201 = vld [vmem:[#allocation11] sm:$0xff]
        %v2202 = vld [vmem:[#allocation11 + $0x8] sm:$0xff]
        %v2203 = vld [vmem:[#allocation11 + $0x10] sm:$0xff]
        %v2204 = vld [vmem:[#allocation11 + $0x18] sm:$0xff]
        %v2205 = vld [vmem:[#allocation11 + $0x20] sm:$0xff]
        %v2206 = vld [vmem:[#allocation11 + $0x28] sm:$0xff]
        %v2207 = vld [vmem:[#allocation11 + $0x30] sm:$0xff]
        %v2208 = vld [vmem:[#allocation11 + $0x38] sm:$0xff]
        %v2209 = vld [vmem:[#allocation11 + $0x40] sm:$0xff]
        %v2210 = vld [vmem:[#allocation11 + $0x48] sm:$0xff]
        %v2211 = vld [vmem:[#allocation11 + $0x50] sm:$0xff]
        %v2212 = vld [vmem:[#allocation11 + $0x58] sm:$0xff]
        %v2213 = vld [vmem:[#allocation11 + $0x60] sm:$0xff]
        %v2214 = vld [vmem:[#allocation11 + $0x68] sm:$0xff]
        %v2215 = vld [vmem:[#allocation11 + $0x70] sm:$0xff]
        %v2216 = vld [vmem:[#allocation11 + $0x78] sm:$0xff]
        %v2217 = vld [vmem:[#allocation11 + $0x80] sm:$0xff]
        %v2218 = vld [vmem:[#allocation11 + $0x88] sm:$0xff]
        %v2219 = vld [vmem:[#allocation11 + $0x90] sm:$0xff]
        %v2220 = vld [vmem:[#allocation11 + $0x98] sm:$0xff]
        %v2221 = vld [vmem:[#allocation11 + $0xa0] sm:$0xff]
        %v2222 = vld [vmem:[#allocation11 + $0xa8] sm:$0xff]
        %v2223 = vld [vmem:[#allocation11 + $0xb0] sm:$0xff]
        %v2224 = vld [vmem:[#allocation11 + $0xb8] sm:$0xff]
        %v2225 = vld [vmem:[#allocation11 + $0xc0] sm:$0xff]
        %v2226 = vld [vmem:[#allocation11 + $0xc8] sm:$0xff]
        %v2227 = vld [vmem:[#allocation11 + $0xd0] sm:$0xff]
        %v2228 = vld [vmem:[#allocation11 + $0xd8] sm:$0xff]
        %v2229 = vld [vmem:[#allocation11 + $0xe0] sm:$0xff]
        %v2230 = vld [vmem:[#allocation11 + $0xe8] sm:$0xff]
        %v2231 = vld [vmem:[#allocation11 + $0xf0] sm:$0xff]
        %v2232 = vld [vmem:[#allocation11 + $0xf8] sm:$0xff]
        %v2233 = vld [vmem:[#allocation13] sm:$0x3]
        %v2235 = vlaneseq
        %v2236 = vshrl.u32 %v2235, 7
        %v2237 = vsub.s32 0, %v2236
        %v2238 = vrot.slane %v2233, %v2237
        %v2239 = vlaneseq
        %v2240 = vshrl.u32 %v2239, 7
        %v2241 = vsub.s32 1, %v2240
        %v2242 = vrot.slane %v2233, %v2241
        %v2309 = vunpack.c.l.b16 %v2137
        %v2310 = vunpack.c.h.b16 %v2137
        %v2311 = vunpack.c.l.b16 %v2138
        %v2312 = vunpack.c.h.b16 %v2138
        %v2313 = vunpack.c.l.b16 %v2139
        %v2314 = vunpack.c.h.b16 %v2139
        %v2315 = vunpack.c.l.b16 %v2140
        %v2316 = vunpack.c.h.b16 %v2140
        %v2317 = vunpack.c.l.b16 %v2141
        %v2318 = vunpack.c.h.b16 %v2141
        %v2319 = vunpack.c.l.b16 %v2142
        %v2320 = vunpack.c.h.b16 %v2142
        %v2321 = vunpack.c.l.b16 %v2143
        %v2322 = vunpack.c.h.b16 %v2143
        %v2323 = vunpack.c.l.b16 %v2144
        %v2324 = vunpack.c.h.b16 %v2144
        %v2325 = vunpack.c.l.b16 %v2145
        %v2326 = vunpack.c.h.b16 %v2145
        %v2327 = vunpack.c.l.b16 %v2146
        %v2328 = vunpack.c.h.b16 %v2146
        %v2329 = vunpack.c.l.b16 %v2147
        %v2330 = vunpack.c.h.b16 %v2147
        %v2331 = vunpack.c.l.b16 %v2148
        %v2332 = vunpack.c.h.b16 %v2148
        %v2333 = vunpack.c.l.b16 %v2149
        %v2334 = vunpack.c.h.b16 %v2149
        %v2335 = vunpack.c.l.b16 %v2150
        %v2336 = vunpack.c.h.b16 %v2150
        %v2337 = vunpack.c.l.b16 %v2151
        %v2338 = vunpack.c.h.b16 %v2151
        %v2339 = vunpack.c.l.b16 %v2152
        %v2340 = vunpack.c.h.b16 %v2152
        %v2341 = vunpack.c.l.b16 %v2153
        %v2342 = vunpack.c.h.b16 %v2153
        %v2343 = vunpack.c.l.b16 %v2154
        %v2344 = vunpack.c.h.b16 %v2154
        %v2345 = vunpack.c.l.b16 %v2155
        %v2346 = vunpack.c.h.b16 %v2155
        %v2347 = vunpack.c.l.b16 %v2156
        %v2348 = vunpack.c.h.b16 %v2156
        %v2349 = vunpack.c.l.b16 %v2157
        %v2350 = vunpack.c.h.b16 %v2157
        %v2351 = vunpack.c.l.b16 %v2158
        %v2352 = vunpack.c.h.b16 %v2158
        %v2353 = vunpack.c.l.b16 %v2159
        %v2354 = vunpack.c.h.b16 %v2159
        %v2355 = vunpack.c.l.b16 %v2160
        %v2356 = vunpack.c.h.b16 %v2160
        %v2357 = vunpack.c.l.b16 %v2161
        %v2358 = vunpack.c.h.b16 %v2161
        %v2359 = vunpack.c.l.b16 %v2162
        %v2360 = vunpack.c.h.b16 %v2162
        %v2361 = vunpack.c.l.b16 %v2163
        %v2362 = vunpack.c.h.b16 %v2163
        %v2363 = vunpack.c.l.b16 %v2164
        %v2364 = vunpack.c.h.b16 %v2164
        %v2365 = vunpack.c.l.b16 %v2165
        %v2366 = vunpack.c.h.b16 %v2165
        %v2367 = vunpack.c.l.b16 %v2166
        %v2368 = vunpack.c.h.b16 %v2166
        %v2369 = vunpack.c.l.b16 %v2167
        %v2370 = vunpack.c.h.b16 %v2167
        %v2371 = vunpack.c.l.b16 %v2168
        %v2372 = vunpack.c.h.b16 %v2168
        %v2373 = vunpack.c.l.b16 %v2169
        %v2374 = vunpack.c.h.b16 %v2169
        %v2375 = vunpack.c.l.b16 %v2170
        %v2376 = vunpack.c.h.b16 %v2170
        %v2377 = vunpack.c.l.b16 %v2171
        %v2378 = vunpack.c.h.b16 %v2171
        %v2379 = vunpack.c.l.b16 %v2172
        %v2380 = vunpack.c.h.b16 %v2172
        %v2381 = vunpack.c.l.b16 %v2173
        %v2382 = vunpack.c.h.b16 %v2173
        %v2383 = vunpack.c.l.b16 %v2174
        %v2384 = vunpack.c.h.b16 %v2174
        %v2385 = vunpack.c.l.b16 %v2175
        %v2386 = vunpack.c.h.b16 %v2175
        %v2387 = vunpack.c.l.b16 %v2176
        %v2388 = vunpack.c.h.b16 %v2176
        %v2389 = vunpack.c.l.b16 %v2177
        %v2390 = vunpack.c.h.b16 %v2177
        %v2391 = vunpack.c.l.b16 %v2178
        %v2392 = vunpack.c.h.b16 %v2178
        %v2393 = vunpack.c.l.b16 %v2179
        %v2394 = vunpack.c.h.b16 %v2179
        %v2395 = vunpack.c.l.b16 %v2180
        %v2396 = vunpack.c.h.b16 %v2180
        %v2397 = vunpack.c.l.b16 %v2181
        %v2398 = vunpack.c.h.b16 %v2181
        %v2399 = vunpack.c.l.b16 %v2182
        %v2400 = vunpack.c.h.b16 %v2182
        %v2401 = vunpack.c.l.b16 %v2183
        %v2402 = vunpack.c.h.b16 %v2183
        %v2403 = vunpack.c.l.b16 %v2184
        %v2404 = vunpack.c.h.b16 %v2184
        %v2405 = vunpack.c.l.b16 %v2185
        %v2406 = vunpack.c.h.b16 %v2185
        %v2407 = vunpack.c.l.b16 %v2186
        %v2408 = vunpack.c.h.b16 %v2186
        %v2409 = vunpack.c.l.b16 %v2187
        %v2410 = vunpack.c.h.b16 %v2187
        %v2411 = vunpack.c.l.b16 %v2188
        %v2412 = vunpack.c.h.b16 %v2188
        %v2413 = vunpack.c.l.b16 %v2189
        %v2414 = vunpack.c.h.b16 %v2189
        %v2415 = vunpack.c.l.b16 %v2190
        %v2416 = vunpack.c.h.b16 %v2190
        %v2417 = vunpack.c.l.b16 %v2191
        %v2418 = vunpack.c.h.b16 %v2191
        %v2419 = vunpack.c.l.b16 %v2192
        %v2420 = vunpack.c.h.b16 %v2192
        %v2421 = vunpack.c.l.b16 %v2193
        %v2422 = vunpack.c.h.b16 %v2193
        %v2423 = vunpack.c.l.b16 %v2194
        %v2424 = vunpack.c.h.b16 %v2194
        %v2425 = vunpack.c.l.b16 %v2195
        %v2426 = vunpack.c.h.b16 %v2195
        %v2427 = vunpack.c.l.b16 %v2196
        %v2428 = vunpack.c.h.b16 %v2196
        %v2429 = vunpack.c.l.b16 %v2197
        %v2430 = vunpack.c.h.b16 %v2197
        %v2431 = vunpack.c.l.b16 %v2198
        %v2432 = vunpack.c.h.b16 %v2198
        %v2433 = vunpack.c.l.b16 %v2199
        %v2434 = vunpack.c.h.b16 %v2199
        %v2435 = vunpack.c.l.b16 %v2200
        %v2436 = vunpack.c.h.b16 %v2200
        %v2437 = vpack.c.b16 %v2311, %v2309
        %v2438 = vpack.c.b16 %v2312, %v2310
        %v2439 = vpack.c.b16 %v2315, %v2313
        %v2440 = vpack.c.b16 %v2316, %v2314
        %v2441 = vpack.c.b16 %v2319, %v2317
        %v2442 = vpack.c.b16 %v2320, %v2318
        %v2443 = vpack.c.b16 %v2323, %v2321
        %v2444 = vpack.c.b16 %v2324, %v2322
        %v2445 = vpack.c.b16 %v2327, %v2325
        %v2446 = vpack.c.b16 %v2328, %v2326
        %v2447 = vpack.c.b16 %v2331, %v2329
        %v2448 = vpack.c.b16 %v2332, %v2330
        %v2449 = vpack.c.b16 %v2335, %v2333
        %v2450 = vpack.c.b16 %v2336, %v2334
        %v2451 = vpack.c.b16 %v2339, %v2337
        %v2452 = vpack.c.b16 %v2340, %v2338
        %v2453 = vpack.c.b16 %v2343, %v2341
        %v2454 = vpack.c.b16 %v2344, %v2342
        %v2455 = vpack.c.b16 %v2347, %v2345
        %v2456 = vpack.c.b16 %v2348, %v2346
        %v2457 = vpack.c.b16 %v2351, %v2349
        %v2458 = vpack.c.b16 %v2352, %v2350
        %v2459 = vpack.c.b16 %v2355, %v2353
        %v2460 = vpack.c.b16 %v2356, %v2354
        %v2461 = vpack.c.b16 %v2359, %v2357
        %v2462 = vpack.c.b16 %v2360, %v2358
        %v2463 = vpack.c.b16 %v2363, %v2361
        %v2464 = vpack.c.b16 %v2364, %v2362
        %v2465 = vpack.c.b16 %v2367, %v2365
        %v2466 = vpack.c.b16 %v2368, %v2366
        %v2467 = vpack.c.b16 %v2371, %v2369
        %v2468 = vpack.c.b16 %v2372, %v2370
        %v2469 = vpack.c.b16 %v2375, %v2373
        %v2470 = vpack.c.b16 %v2376, %v2374
        %v2471 = vpack.c.b16 %v2379, %v2377
        %v2472 = vpack.c.b16 %v2380, %v2378
        %v2473 = vpack.c.b16 %v2383, %v2381
        %v2474 = vpack.c.b16 %v2384, %v2382
        %v2475 = vpack.c.b16 %v2387, %v2385
        %v2476 = vpack.c.b16 %v2388, %v2386
        %v2477 = vpack.c.b16 %v2391, %v2389
        %v2478 = vpack.c.b16 %v2392, %v2390
        %v2479 = vpack.c.b16 %v2395, %v2393
        %v2480 = vpack.c.b16 %v2396, %v2394
        %v2481 = vpack.c.b16 %v2399, %v2397
        %v2482 = vpack.c.b16 %v2400, %v2398
        %v2483 = vpack.c.b16 %v2403, %v2401
        %v2484 = vpack.c.b16 %v2404, %v2402
        %v2485 = vpack.c.b16 %v2407, %v2405
        %v2486 = vpack.c.b16 %v2408, %v2406
        %v2487 = vpack.c.b16 %v2411, %v2409
        %v2488 = vpack.c.b16 %v2412, %v2410
        %v2489 = vpack.c.b16 %v2415, %v2413
        %v2490 = vpack.c.b16 %v2416, %v2414
        %v2491 = vpack.c.b16 %v2419, %v2417
        %v2492 = vpack.c.b16 %v2420, %v2418
        %v2493 = vpack.c.b16 %v2423, %v2421
        %v2494 = vpack.c.b16 %v2424, %v2422
        %v2495 = vpack.c.b16 %v2427, %v2425
        %v2496 = vpack.c.b16 %v2428, %v2426
        %v2497 = vpack.c.b16 %v2431, %v2429
        %v2498 = vpack.c.b16 %v2432, %v2430
        %v2499 = vpack.c.b16 %v2435, %v2433
        %v2500 = vpack.c.b16 %v2436, %v2434
        %v2597 = vunpack.c.l.b16 %v2201
        %v2598 = vunpack.c.h.b16 %v2201
        %v2599 = vunpack.c.l.b16 %v2202
        %v2600 = vunpack.c.h.b16 %v2202
        %v2601 = vunpack.c.l.b16 %v2203
        %v2602 = vunpack.c.h.b16 %v2203
        %v2603 = vunpack.c.l.b16 %v2204
        %v2604 = vunpack.c.h.b16 %v2204
        %v2605 = vunpack.c.l.b16 %v2205
        %v2606 = vunpack.c.h.b16 %v2205
        %v2607 = vunpack.c.l.b16 %v2206
        %v2608 = vunpack.c.h.b16 %v2206
        %v2609 = vunpack.c.l.b16 %v2207
        %v2610 = vunpack.c.h.b16 %v2207
        %v2611 = vunpack.c.l.b16 %v2208
        %v2612 = vunpack.c.h.b16 %v2208
        %v2613 = vunpack.c.l.b16 %v2209
        %v2614 = vunpack.c.h.b16 %v2209
        %v2615 = vunpack.c.l.b16 %v2210
        %v2616 = vunpack.c.h.b16 %v2210
        %v2617 = vunpack.c.l.b16 %v2211
        %v2618 = vunpack.c.h.b16 %v2211
        %v2619 = vunpack.c.l.b16 %v2212
        %v2620 = vunpack.c.h.b16 %v2212
        %v2621 = vunpack.c.l.b16 %v2213
        %v2622 = vunpack.c.h.b16 %v2213
        %v2623 = vunpack.c.l.b16 %v2214
        %v2624 = vunpack.c.h.b16 %v2214
        %v2625 = vunpack.c.l.b16 %v2215
        %v2626 = vunpack.c.h.b16 %v2215
        %v2627 = vunpack.c.l.b16 %v2216
        %v2628 = vunpack.c.h.b16 %v2216
        %v2629 = vunpack.c.l.b16 %v2217
        %v2630 = vunpack.c.h.b16 %v2217
        %v2631 = vunpack.c.l.b16 %v2218
        %v2632 = vunpack.c.h.b16 %v2218
        %v2633 = vunpack.c.l.b16 %v2219
        %v2634 = vunpack.c.h.b16 %v2219
        %v2635 = vunpack.c.l.b16 %v2220
        %v2636 = vunpack.c.h.b16 %v2220
        %v2637 = vunpack.c.l.b16 %v2221
        %v2638 = vunpack.c.h.b16 %v2221
        %v2639 = vunpack.c.l.b16 %v2222
        %v2640 = vunpack.c.h.b16 %v2222
        %v2641 = vunpack.c.l.b16 %v2223
        %v2642 = vunpack.c.h.b16 %v2223
        %v2643 = vunpack.c.l.b16 %v2224
        %v2644 = vunpack.c.h.b16 %v2224
        %v2645 = vunpack.c.l.b16 %v2225
        %v2646 = vunpack.c.h.b16 %v2225
        %v2647 = vunpack.c.l.b16 %v2226
        %v2648 = vunpack.c.h.b16 %v2226
        %v2649 = vunpack.c.l.b16 %v2227
        %v2650 = vunpack.c.h.b16 %v2227
        %v2651 = vunpack.c.l.b16 %v2228
        %v2652 = vunpack.c.h.b16 %v2228
        %v2653 = vunpack.c.l.b16 %v2229
        %v2654 = vunpack.c.h.b16 %v2229
        %v2655 = vunpack.c.l.b16 %v2230
        %v2656 = vunpack.c.h.b16 %v2230
        %v2657 = vunpack.c.l.b16 %v2231
        %v2658 = vunpack.c.h.b16 %v2231
        %v2659 = vunpack.c.l.b16 %v2232
        %v2660 = vunpack.c.h.b16 %v2232
        %v2661 = vpack.c.b16 %v2599, %v2597
        %v2662 = vpack.c.b16 %v2600, %v2598
        %v2663 = vpack.c.b16 %v2603, %v2601
        %v2664 = vpack.c.b16 %v2604, %v2602
        %v2665 = vpack.c.b16 %v2607, %v2605
        %v2666 = vpack.c.b16 %v2608, %v2606
        %v2667 = vpack.c.b16 %v2611, %v2609
        %v2668 = vpack.c.b16 %v2612, %v2610
        %v2669 = vpack.c.b16 %v2615, %v2613
        %v2670 = vpack.c.b16 %v2616, %v2614
        %v2671 = vpack.c.b16 %v2619, %v2617
        %v2672 = vpack.c.b16 %v2620, %v2618
        %v2673 = vpack.c.b16 %v2623, %v2621
        %v2674 = vpack.c.b16 %v2624, %v2622
        %v2675 = vpack.c.b16 %v2627, %v2625
        %v2676 = vpack.c.b16 %v2628, %v2626
        %v2677 = vpack.c.b16 %v2631, %v2629
        %v2678 = vpack.c.b16 %v2632, %v2630
        %v2679 = vpack.c.b16 %v2635, %v2633
        %v2680 = vpack.c.b16 %v2636, %v2634
        %v2681 = vpack.c.b16 %v2639, %v2637
        %v2682 = vpack.c.b16 %v2640, %v2638
        %v2683 = vpack.c.b16 %v2643, %v2641
        %v2684 = vpack.c.b16 %v2644, %v2642
        %v2685 = vpack.c.b16 %v2647, %v2645
        %v2686 = vpack.c.b16 %v2648, %v2646
        %v2687 = vpack.c.b16 %v2651, %v2649
        %v2688 = vpack.c.b16 %v2652, %v2650
        %v2689 = vpack.c.b16 %v2655, %v2653
        %v2690 = vpack.c.b16 %v2656, %v2654
        %v2691 = vpack.c.b16 %v2659, %v2657
        %v2692 = vpack.c.b16 %v2660, %v2658
        %2725 = vmatprep.subr.bf16.mxu0 %v2662
        %2726 = vmatpush1.bf16.msra.mxu0 %v2661
        %2727 = vmatprep.subr.bf16.mxu0 %v2664
        %2728 = vmatpush1.bf16.msra.mxu0 %v2663
        %2729 = vmatprep.subr.bf16.mxu0 %v2666
        %2730 = vmatpush1.bf16.msra.mxu0 %v2665
        %2731 = vmatprep.subr.bf16.mxu0 %v2668
        %2732 = vmatpush1.bf16.msra.mxu0 %v2667
        %2733 = vmatprep.subr.bf16.mxu0 %v2670
        %2734 = vmatpush1.bf16.msra.mxu0 %v2669
        %2735 = vmatprep.subr.bf16.mxu0 %v2672
        %2736 = vmatpush1.bf16.msra.mxu0 %v2671
        %2737 = vmatprep.subr.bf16.mxu0 %v2674
        %2738 = vmatpush1.bf16.msra.mxu0 %v2673
        %2739 = vmatprep.subr.bf16.mxu0 %v2676
        %2740 = vmatpush1.bf16.msra.mxu0 %v2675
        %2741 = vmatprep.subr.bf16.mxu0 %v2678
        %2742 = vmatpush1.bf16.msra.mxu0 %v2677
        %2743 = vmatprep.subr.bf16.mxu0 %v2680
        %2744 = vmatpush1.bf16.msra.mxu0 %v2679
        %2745 = vmatprep.subr.bf16.mxu0 %v2682
        %2746 = vmatpush1.bf16.msra.mxu0 %v2681
        %2747 = vmatprep.subr.bf16.mxu0 %v2684
        %2748 = vmatpush1.bf16.msra.mxu0 %v2683
        %2749 = vmatprep.subr.bf16.mxu0 %v2686
        %2750 = vmatpush1.bf16.msra.mxu0 %v2685
        %2751 = vmatprep.subr.bf16.mxu0 %v2688
        %2752 = vmatpush1.bf16.msra.mxu0 %v2687
        %2753 = vmatprep.subr.bf16.mxu0 %v2690
        %2754 = vmatpush1.bf16.msra.mxu0 %v2689
        %2755 = vmatprep.subr.bf16.mxu0 %v2692
        %2756 = vmatpush1.bf16.msra.mxu0 %v2691
        %2757 = vmatprep.mubr.bf16.mxu0 %v2438
        %2758 = vmatmul.mubr.bf16.gmra.mrb[0].mxu0 %v2437
        %v2759 = vpop.f32.mrb[0].mxu0
        %v2760 = vadd.f32 %v2238, %v2759
        %v2761 = vpop.f32.mrb[0].mxu0
        %v2762 = vadd.f32 %v2242, %v2761
        %v2763 = vpop.f32.mrb[0].mxu0
        %v2764 = vadd.f32 %v2238, %v2763
        %v2765 = vpop.f32.mrb[0].mxu0
        %v2766 = vadd.f32 %v2242, %v2765
        %2767 = vmatprep.mubr.bf16.mxu0 %v2440
        %2768 = vmatmul.mubr.bf16.gmra.mrb[0].mxu0 %v2439
        %v2769 = vpop.f32.mrb[0].mxu0
        %v2770 = vadd.f32 %v2238, %v2769
        %v2771 = vpop.f32.mrb[0].mxu0
        %v2772 = vadd.f32 %v2242, %v2771
        %v2773 = vpop.f32.mrb[0].mxu0
        %v2774 = vadd.f32 %v2238, %v2773
        %v2775 = vpop.f32.mrb[0].mxu0
        %v2776 = vadd.f32 %v2242, %v2775
        %2777 = vmatprep.mubr.bf16.mxu0 %v2442
        %2778 = vmatmul.mubr.bf16.gmra.mrb[0].mxu0 %v2441
        %v2779 = vpop.f32.mrb[0].mxu0
        %v2780 = vadd.f32 %v2238, %v2779
        %v2781 = vpop.f32.mrb[0].mxu0
        %v2782 = vadd.f32 %v2242, %v2781
        %v2783 = vpop.f32.mrb[0].mxu0
        %v2784 = vadd.f32 %v2238, %v2783
        %v2785 = vpop.f32.mrb[0].mxu0
        %v2786 = vadd.f32 %v2242, %v2785
        %2787 = vmatprep.mubr.bf16.mxu0 %v2444
        %2788 = vmatmul.mubr.bf16.gmra.mrb[0].mxu0 %v2443
        %v2789 = vpop.f32.mrb[0].mxu0
        %v2790 = vadd.f32 %v2238, %v2789
        %v2791 = vpop.f32.mrb[0].mxu0
        %v2792 = vadd.f32 %v2242, %v2791
        %v2793 = vpop.f32.mrb[0].mxu0
        %v2794 = vadd.f32 %v2238, %v2793
        %v2795 = vpop.f32.mrb[0].mxu0
        %v2796 = vadd.f32 %v2242, %v2795
        %2797 = vmatprep.mubr.bf16.mxu0 %v2446
        %2798 = vmatmul.mubr.bf16.gmra.mrb[0].mxu0 %v2445
        %v2799 = vpop.f32.mrb[0].mxu0
        %v2800 = vadd.f32 %v2238, %v2799
        %v2801 = vpop.f32.mrb[0].mxu0
        %v2802 = vadd.f32 %v2242, %v2801
        %v2803 = vpop.f32.mrb[0].mxu0
        %v2804 = vadd.f32 %v2238, %v2803
        %v2805 = vpop.f32.mrb[0].mxu0
        %v2806 = vadd.f32 %v2242, %v2805
        %2807 = vmatprep.mubr.bf16.mxu0 %v2448
        %2808 = vmatmul.mubr.bf16.gmra.mrb[0].mxu0 %v2447
        %v2809 = vpop.f32.mrb[0].mxu0
        %v2810 = vadd.f32 %v2238, %v2809
        %v2811 = vpop.f32.mrb[0].mxu0
        %v2812 = vadd.f32 %v2242, %v2811
        %v2813 = vpop.f32.mrb[0].mxu0
        %v2814 = vadd.f32 %v2238, %v2813
        %v2815 = vpop.f32.mrb[0].mxu0
        %v2816 = vadd.f32 %v2242, %v2815
        %2817 = vmatprep.mubr.bf16.mxu0 %v2450
        %2818 = vmatmul.mubr.bf16.gmra.mrb[0].mxu0 %v2449
        %v2819 = vpop.f32.mrb[0].mxu0
        %v2820 = vadd.f32 %v2238, %v2819
        %v2821 = vpop.f32.mrb[0].mxu0
        %v2822 = vadd.f32 %v2242, %v2821
        %v2823 = vpop.f32.mrb[0].mxu0
        %v2824 = vadd.f32 %v2238, %v2823
        %v2825 = vpop.f32.mrb[0].mxu0
        %v2826 = vadd.f32 %v2242, %v2825
        %2827 = vmatprep.mubr.bf16.mxu0 %v2452
        %2828 = vmatmul.mubr.bf16.gmra.mrb[0].mxu0 %v2451
        %v2829 = vpop.f32.mrb[0].mxu0
        %v2830 = vadd.f32 %v2238, %v2829
        %v2831 = vpop.f32.mrb[0].mxu0
        %v2832 = vadd.f32 %v2242, %v2831
        %v2833 = vpop.f32.mrb[0].mxu0
        %v2834 = vadd.f32 %v2238, %v2833
        %v2835 = vpop.f32.mrb[0].mxu0
        %v2836 = vadd.f32 %v2242, %v2835
        %2837 = vmatprep.mubr.bf16.mxu0 %v2454
        %2838 = vmatmul.mubr.bf16.gmra.mrb[0].mxu0 %v2453
        %v2839 = vpop.f32.mrb[0].mxu0
        %v2840 = vadd.f32 %v2238, %v2839
        %v2841 = vpop.f32.mrb[0].mxu0
        %v2842 = vadd.f32 %v2242, %v2841
        %v2843 = vpop.f32.mrb[0].mxu0
        %v2844 = vadd.f32 %v2238, %v2843
        %v2845 = vpop.f32.mrb[0].mxu0
        %v2846 = vadd.f32 %v2242, %v2845
        %2847 = vmatprep.mubr.bf16.mxu0 %v2456
        %2848 = vmatmul.mubr.bf16.gmra.mrb[0].mxu0 %v2455
        %v2849 = vpop.f32.mrb[0].mxu0
        %v2850 = vadd.f32 %v2238, %v2849
        %v2851 = vpop.f32.mrb[0].mxu0
        %v2852 = vadd.f32 %v2242, %v2851
        %v2853 = vpop.f32.mrb[0].mxu0
        %v2854 = vadd.f32 %v2238, %v2853
        %v2855 = vpop.f32.mrb[0].mxu0
        %v2856 = vadd.f32 %v2242, %v2855
        %2857 = vmatprep.mubr.bf16.mxu0 %v2458
        %2858 = vmatmul.mubr.bf16.gmra.mrb[0].mxu0 %v2457
        %v2859 = vpop.f32.mrb[0].mxu0
        %v2860 = vadd.f32 %v2238, %v2859
        %v2861 = vpop.f32.mrb[0].mxu0
        %v2862 = vadd.f32 %v2242, %v2861
        %v2863 = vpop.f32.mrb[0].mxu0
        %v2864 = vadd.f32 %v2238, %v2863
        %v2865 = vpop.f32.mrb[0].mxu0
        %v2866 = vadd.f32 %v2242, %v2865
        %2867 = vmatprep.mubr.bf16.mxu0 %v2460
        %2868 = vmatmul.mubr.bf16.gmra.mrb[0].mxu0 %v2459
        %v2869 = vpop.f32.mrb[0].mxu0
        %v2870 = vadd.f32 %v2238, %v2869
        %v2871 = vpop.f32.mrb[0].mxu0
        %v2872 = vadd.f32 %v2242, %v2871
        %v2873 = vpop.f32.mrb[0].mxu0
        %v2874 = vadd.f32 %v2238, %v2873
        %v2875 = vpop.f32.mrb[0].mxu0
        %v2876 = vadd.f32 %v2242, %v2875
        %2877 = vmatprep.mubr.bf16.mxu0 %v2462
        %2878 = vmatmul.mubr.bf16.gmra.mrb[0].mxu0 %v2461
        %v2879 = vpop.f32.mrb[0].mxu0
        %v2880 = vadd.f32 %v2238, %v2879
        %v2881 = vpop.f32.mrb[0].mxu0
        %v2882 = vadd.f32 %v2242, %v2881
        %v2883 = vpop.f32.mrb[0].mxu0
        %v2884 = vadd.f32 %v2238, %v2883
        %v2885 = vpop.f32.mrb[0].mxu0
        %v2886 = vadd.f32 %v2242, %v2885
        %2887 = vmatprep.mubr.bf16.mxu0 %v2464
        %2888 = vmatmul.mubr.bf16.gmra.mrb[0].mxu0 %v2463
        %v2889 = vpop.f32.mrb[0].mxu0
        %v2890 = vadd.f32 %v2238, %v2889
        %v2891 = vpop.f32.mrb[0].mxu0
        %v2892 = vadd.f32 %v2242, %v2891
        %v2893 = vpop.f32.mrb[0].mxu0
        %v2894 = vadd.f32 %v2238, %v2893
        %v2895 = vpop.f32.mrb[0].mxu0
        %v2896 = vadd.f32 %v2242, %v2895
        %2897 = vmatprep.mubr.bf16.mxu0 %v2466
        %2898 = vmatmul.mubr.bf16.gmra.mrb[0].mxu0 %v2465
        %v2899 = vpop.f32.mrb[0].mxu0
        %v2900 = vadd.f32 %v2238, %v2899
        %v2901 = vpop.f32.mrb[0].mxu0
        %v2902 = vadd.f32 %v2242, %v2901
        %v2903 = vpop.f32.mrb[0].mxu0
        %v2904 = vadd.f32 %v2238, %v2903
        %v2905 = vpop.f32.mrb[0].mxu0
        %v2906 = vadd.f32 %v2242, %v2905
        %2907 = vmatprep.mubr.bf16.mxu0 %v2468
        %2908 = vmatmul.mubr.bf16.gmra.mrb[0].mxu0 %v2467
        %v2909 = vpop.f32.mrb[0].mxu0
        %v2910 = vadd.f32 %v2238, %v2909
        %v2911 = vpop.f32.mrb[0].mxu0
        %v2912 = vadd.f32 %v2242, %v2911
        %v2913 = vpop.f32.mrb[0].mxu0
        %v2914 = vadd.f32 %v2238, %v2913
        %v2915 = vpop.f32.mrb[0].mxu0
        %v2916 = vadd.f32 %v2242, %v2915
        %2917 = vmatprep.mubr.bf16.mxu0 %v2470
        %2918 = vmatmul.mubr.bf16.gmra.mrb[0].mxu0 %v2469
        %v2919 = vpop.f32.mrb[0].mxu0
        %v2920 = vadd.f32 %v2238, %v2919
        %v2921 = vpop.f32.mrb[0].mxu0
        %v2922 = vadd.f32 %v2242, %v2921
        %v2923 = vpop.f32.mrb[0].mxu0
        %v2924 = vadd.f32 %v2238, %v2923
        %v2925 = vpop.f32.mrb[0].mxu0
        %v2926 = vadd.f32 %v2242, %v2925
        %2927 = vmatprep.mubr.bf16.mxu0 %v2472
        %2928 = vmatmul.mubr.bf16.gmra.mrb[0].mxu0 %v2471
        %v2929 = vpop.f32.mrb[0].mxu0
        %v2930 = vadd.f32 %v2238, %v2929
        %v2931 = vpop.f32.mrb[0].mxu0
        %v2932 = vadd.f32 %v2242, %v2931
        %v2933 = vpop.f32.mrb[0].mxu0
        %v2934 = vadd.f32 %v2238, %v2933
        %v2935 = vpop.f32.mrb[0].mxu0
        %v2936 = vadd.f32 %v2242, %v2935
        %2937 = vmatprep.mubr.bf16.mxu0 %v2474
        %2938 = vmatmul.mubr.bf16.gmra.mrb[0].mxu0 %v2473
        %v2939 = vpop.f32.mrb[0].mxu0
        %v2940 = vadd.f32 %v2238, %v2939
        %v2941 = vpop.f32.mrb[0].mxu0
        %v2942 = vadd.f32 %v2242, %v2941
        %v2943 = vpop.f32.mrb[0].mxu0
        %v2944 = vadd.f32 %v2238, %v2943
        %v2945 = vpop.f32.mrb[0].mxu0
        %v2946 = vadd.f32 %v2242, %v2945
        %2947 = vmatprep.mubr.bf16.mxu0 %v2476
        %2948 = vmatmul.mubr.bf16.gmra.mrb[0].mxu0 %v2475
        %v2949 = vpop.f32.mrb[0].mxu0
        %v2950 = vadd.f32 %v2238, %v2949
        %v2951 = vpop.f32.mrb[0].mxu0
        %v2952 = vadd.f32 %v2242, %v2951
        %v2953 = vpop.f32.mrb[0].mxu0
        %v2954 = vadd.f32 %v2238, %v2953
        %v2955 = vpop.f32.mrb[0].mxu0
        %v2956 = vadd.f32 %v2242, %v2955
        %2957 = vmatprep.mubr.bf16.mxu0 %v2478
        %2958 = vmatmul.mubr.bf16.gmra.mrb[0].mxu0 %v2477
        %v2959 = vpop.f32.mrb[0].mxu0
        %v2960 = vadd.f32 %v2238, %v2959
        %v2961 = vpop.f32.mrb[0].mxu0
        %v2962 = vadd.f32 %v2242, %v2961
        %v2963 = vpop.f32.mrb[0].mxu0
        %v2964 = vadd.f32 %v2238, %v2963
        %v2965 = vpop.f32.mrb[0].mxu0
        %v2966 = vadd.f32 %v2242, %v2965
        %2967 = vmatprep.mubr.bf16.mxu0 %v2480
        %2968 = vmatmul.mubr.bf16.gmra.mrb[0].mxu0 %v2479
        %v2969 = vpop.f32.mrb[0].mxu0
        %v2970 = vadd.f32 %v2238, %v2969
        %v2971 = vpop.f32.mrb[0].mxu0
        %v2972 = vadd.f32 %v2242, %v2971
        %v2973 = vpop.f32.mrb[0].mxu0
        %v2974 = vadd.f32 %v2238, %v2973
        %v2975 = vpop.f32.mrb[0].mxu0
        %v2976 = vadd.f32 %v2242, %v2975
        %2977 = vmatprep.mubr.bf16.mxu0 %v2482
        %2978 = vmatmul.mubr.bf16.gmra.mrb[0].mxu0 %v2481
        %v2979 = vpop.f32.mrb[0].mxu0
        %v2980 = vadd.f32 %v2238, %v2979
        %v2981 = vpop.f32.mrb[0].mxu0
        %v2982 = vadd.f32 %v2242, %v2981
        %v2983 = vpop.f32.mrb[0].mxu0
        %v2984 = vadd.f32 %v2238, %v2983
        %v2985 = vpop.f32.mrb[0].mxu0
        %v2986 = vadd.f32 %v2242, %v2985
        %2987 = vmatprep.mubr.bf16.mxu0 %v2484
        %2988 = vmatmul.mubr.bf16.gmra.mrb[0].mxu0 %v2483
        %v2989 = vpop.f32.mrb[0].mxu0
        %v2990 = vadd.f32 %v2238, %v2989
        %v2991 = vpop.f32.mrb[0].mxu0
        %v2992 = vadd.f32 %v2242, %v2991
        %v2993 = vpop.f32.mrb[0].mxu0
        %v2994 = vadd.f32 %v2238, %v2993
        %v2995 = vpop.f32.mrb[0].mxu0
        %v2996 = vadd.f32 %v2242, %v2995
        %2997 = vmatprep.mubr.bf16.mxu0 %v2486
        %2998 = vmatmul.mubr.bf16.gmra.mrb[0].mxu0 %v2485
        %v2999 = vpop.f32.mrb[0].mxu0
        %v3000 = vadd.f32 %v2238, %v2999
        %v3001 = vpop.f32.mrb[0].mxu0
        %v3002 = vadd.f32 %v2242, %v3001
        %v3003 = vpop.f32.mrb[0].mxu0
        %v3004 = vadd.f32 %v2238, %v3003
        %v3005 = vpop.f32.mrb[0].mxu0
        %v3006 = vadd.f32 %v2242, %v3005
        %3007 = vmatprep.mubr.bf16.mxu0 %v2488
        %3008 = vmatmul.mubr.bf16.gmra.mrb[0].mxu0 %v2487
        %v3009 = vpop.f32.mrb[0].mxu0
        %v3010 = vadd.f32 %v2238, %v3009
        %v3011 = vpop.f32.mrb[0].mxu0
        %v3012 = vadd.f32 %v2242, %v3011
        %v3013 = vpop.f32.mrb[0].mxu0
        %v3014 = vadd.f32 %v2238, %v3013
        %v3015 = vpop.f32.mrb[0].mxu0
        %v3016 = vadd.f32 %v2242, %v3015
        %3017 = vmatprep.mubr.bf16.mxu0 %v2490
        %3018 = vmatmul.mubr.bf16.gmra.mrb[0].mxu0 %v2489
        %v3019 = vpop.f32.mrb[0].mxu0
        %v3020 = vadd.f32 %v2238, %v3019
        %v3021 = vpop.f32.mrb[0].mxu0
        %v3022 = vadd.f32 %v2242, %v3021
        %v3023 = vpop.f32.mrb[0].mxu0
        %v3024 = vadd.f32 %v2238, %v3023
        %v3025 = vpop.f32.mrb[0].mxu0
        %v3026 = vadd.f32 %v2242, %v3025
        %3027 = vmatprep.mubr.bf16.mxu0 %v2492
        %3028 = vmatmul.mubr.bf16.gmra.mrb[0].mxu0 %v2491
        %v3029 = vpop.f32.mrb[0].mxu0
        %v3030 = vadd.f32 %v2238, %v3029
        %v3031 = vpop.f32.mrb[0].mxu0
        %v3032 = vadd.f32 %v2242, %v3031
        %v3033 = vpop.f32.mrb[0].mxu0
        %v3034 = vadd.f32 %v2238, %v3033
        %v3035 = vpop.f32.mrb[0].mxu0
        %v3036 = vadd.f32 %v2242, %v3035
        %3037 = vmatprep.mubr.bf16.mxu0 %v2494
        %3038 = vmatmul.mubr.bf16.gmra.mrb[0].mxu0 %v2493
        %v3039 = vpop.f32.mrb[0].mxu0
        %v3040 = vadd.f32 %v2238, %v3039
        %v3041 = vpop.f32.mrb[0].mxu0
        %v3042 = vadd.f32 %v2242, %v3041
        %v3043 = vpop.f32.mrb[0].mxu0
        %v3044 = vadd.f32 %v2238, %v3043
        %v3045 = vpop.f32.mrb[0].mxu0
        %v3046 = vadd.f32 %v2242, %v3045
        %3047 = vmatprep.mubr.bf16.mxu0 %v2496
        %3048 = vmatmul.mubr.bf16.gmra.mrb[0].mxu0 %v2495
        %v3049 = vpop.f32.mrb[0].mxu0
        %v3050 = vadd.f32 %v2238, %v3049
        %v3051 = vpop.f32.mrb[0].mxu0
        %v3052 = vadd.f32 %v2242, %v3051
        %v3053 = vpop.f32.mrb[0].mxu0
        %v3054 = vadd.f32 %v2238, %v3053
        %v3055 = vpop.f32.mrb[0].mxu0
        %v3056 = vadd.f32 %v2242, %v3055
        %3057 = vmatprep.mubr.bf16.mxu0 %v2498
        %3058 = vmatmul.mubr.bf16.gmra.mrb[0].mxu0 %v2497
        %v3059 = vpop.f32.mrb[0].mxu0
        %v3060 = vadd.f32 %v2238, %v3059
        %v3061 = vpop.f32.mrb[0].mxu0
        %v3062 = vadd.f32 %v2242, %v3061
        %v3063 = vpop.f32.mrb[0].mxu0
        %v3064 = vadd.f32 %v2238, %v3063
        %v3065 = vpop.f32.mrb[0].mxu0
        %v3066 = vadd.f32 %v2242, %v3065
        %3067 = vmatprep.mubr.bf16.mxu0 %v2500
        %3068 = vmatmul.mubr.bf16.gmra.mrb[0].mxu0 %v2499
        %v3069 = vpop.f32.mrb[0].mxu0
        %v3070 = vadd.f32 %v2238, %v3069
        %v3071 = vpop.f32.mrb[0].mxu0
        %v3072 = vadd.f32 %v2242, %v3071
        %v3073 = vpop.f32.mrb[0].mxu0
        %v3074 = vadd.f32 %v2238, %v3073
        %v3075 = vpop.f32.mrb[0].mxu0
        %v3076 = vadd.f32 %v2242, %v3075
        %3077 = vdwg.mxu0
        %v3078 = vpack.c.bf16 %v2764, %v2760
        %v3079 = vpack.c.bf16 %v2766, %v2762
        %v3080 = vpack.c.bf16 %v2774, %v2770
        %v3081 = vpack.c.bf16 %v2776, %v2772
        %v3082 = vpack.c.bf16 %v2784, %v2780
        %v3083 = vpack.c.bf16 %v2786, %v2782
        %v3084 = vpack.c.bf16 %v2794, %v2790
        %v3085 = vpack.c.bf16 %v2796, %v2792
        %v3086 = vpack.c.bf16 %v2804, %v2800
        %v3087 = vpack.c.bf16 %v2806, %v2802
        %v3088 = vpack.c.bf16 %v2814, %v2810
        %v3089 = vpack.c.bf16 %v2816, %v2812
        %v3090 = vpack.c.bf16 %v2824, %v2820
        %v3091 = vpack.c.bf16 %v2826, %v2822
        %v3092 = vpack.c.bf16 %v2834, %v2830
        %v3093 = vpack.c.bf16 %v2836, %v2832
        %v3094 = vpack.c.bf16 %v2844, %v2840
        %v3095 = vpack.c.bf16 %v2846, %v2842
        %v3096 = vpack.c.bf16 %v2854, %v2850
        %v3097 = vpack.c.bf16 %v2856, %v2852
        %v3098 = vpack.c.bf16 %v2864, %v2860
        %v3099 = vpack.c.bf16 %v2866, %v2862
        %v3100 = vpack.c.bf16 %v2874, %v2870
        %v3101 = vpack.c.bf16 %v2876, %v2872
        %v3102 = vpack.c.bf16 %v2884, %v2880
        %v3103 = vpack.c.bf16 %v2886, %v2882
        %v3104 = vpack.c.bf16 %v2894, %v2890
        %v3105 = vpack.c.bf16 %v2896, %v2892
        %v3106 = vpack.c.bf16 %v2904, %v2900
        %v3107 = vpack.c.bf16 %v2906, %v2902
        %v3108 = vpack.c.bf16 %v2914, %v2910
        %v3109 = vpack.c.bf16 %v2916, %v2912
        %v3110 = vpack.c.bf16 %v2924, %v2920
        %v3111 = vpack.c.bf16 %v2926, %v2922
        %v3112 = vpack.c.bf16 %v2934, %v2930
        %v3113 = vpack.c.bf16 %v2936, %v2932
        %v3114 = vpack.c.bf16 %v2944, %v2940
        %v3115 = vpack.c.bf16 %v2946, %v2942
        %v3116 = vpack.c.bf16 %v2954, %v2950
        %v3117 = vpack.c.bf16 %v2956, %v2952
        %v3118 = vpack.c.bf16 %v2964, %v2960
        %v3119 = vpack.c.bf16 %v2966, %v2962
        %v3120 = vpack.c.bf16 %v2974, %v2970
        %v3121 = vpack.c.bf16 %v2976, %v2972
        %v3122 = vpack.c.bf16 %v2984, %v2980
        %v3123 = vpack.c.bf16 %v2986, %v2982
        %v3124 = vpack.c.bf16 %v2994, %v2990
        %v3125 = vpack.c.bf16 %v2996, %v2992
        %v3126 = vpack.c.bf16 %v3004, %v3000
        %v3127 = vpack.c.bf16 %v3006, %v3002
        %v3128 = vpack.c.bf16 %v3014, %v3010
        %v3129 = vpack.c.bf16 %v3016, %v3012
        %v3130 = vpack.c.bf16 %v3024, %v3020
        %v3131 = vpack.c.bf16 %v3026, %v3022
        %v3132 = vpack.c.bf16 %v3034, %v3030
        %v3133 = vpack.c.bf16 %v3036, %v3032
        %v3134 = vpack.c.bf16 %v3044, %v3040
        %v3135 = vpack.c.bf16 %v3046, %v3042
        %v3136 = vpack.c.bf16 %v3054, %v3050
        %v3137 = vpack.c.bf16 %v3056, %v3052
        %v3138 = vpack.c.bf16 %v3064, %v3060
        %v3139 = vpack.c.bf16 %v3066, %v3062
        %v3140 = vpack.c.bf16 %v3074, %v3070
        %v3141 = vpack.c.bf16 %v3076, %v3072
        %v3206 = vunpack.c.l.b16 %v3078
        %v3207 = vunpack.c.l.b16 %v3079
        %v3208 = vunpack.c.h.b16 %v3078
        %v3209 = vunpack.c.h.b16 %v3079
        %v3210 = vunpack.c.l.b16 %v3080
        %v3211 = vunpack.c.l.b16 %v3081
        %v3212 = vunpack.c.h.b16 %v3080
        %v3213 = vunpack.c.h.b16 %v3081
        %v3214 = vunpack.c.l.b16 %v3082
        %v3215 = vunpack.c.l.b16 %v3083
        %v3216 = vunpack.c.h.b16 %v3082
        %v3217 = vunpack.c.h.b16 %v3083
        %v3218 = vunpack.c.l.b16 %v3084
        %v3219 = vunpack.c.l.b16 %v3085
        %v3220 = vunpack.c.h.b16 %v3084
        %v3221 = vunpack.c.h.b16 %v3085
        %v3222 = vunpack.c.l.b16 %v3086
        %v3223 = vunpack.c.l.b16 %v3087
        %v3224 = vunpack.c.h.b16 %v3086
        %v3225 = vunpack.c.h.b16 %v3087
        %v3226 = vunpack.c.l.b16 %v3088
        %v3227 = vunpack.c.l.b16 %v3089
        %v3228 = vunpack.c.h.b16 %v3088
        %v3229 = vunpack.c.h.b16 %v3089
        %v3230 = vunpack.c.l.b16 %v3090
        %v3231 = vunpack.c.l.b16 %v3091
        %v3232 = vunpack.c.h.b16 %v3090
        %v3233 = vunpack.c.h.b16 %v3091
        %v3234 = vunpack.c.l.b16 %v3092
        %v3235 = vunpack.c.l.b16 %v3093
        %v3236 = vunpack.c.h.b16 %v3092
        %v3237 = vunpack.c.h.b16 %v3093
        %v3238 = vunpack.c.l.b16 %v3094
        %v3239 = vunpack.c.l.b16 %v3095
        %v3240 = vunpack.c.h.b16 %v3094
        %v3241 = vunpack.c.h.b16 %v3095
        %v3242 = vunpack.c.l.b16 %v3096
        %v3243 = vunpack.c.l.b16 %v3097
        %v3244 = vunpack.c.h.b16 %v3096
        %v3245 = vunpack.c.h.b16 %v3097
        %v3246 = vunpack.c.l.b16 %v3098
        %v3247 = vunpack.c.l.b16 %v3099
        %v3248 = vunpack.c.h.b16 %v3098
        %v3249 = vunpack.c.h.b16 %v3099
        %v3250 = vunpack.c.l.b16 %v3100
        %v3251 = vunpack.c.l.b16 %v3101
        %v3252 = vunpack.c.h.b16 %v3100
        %v3253 = vunpack.c.h.b16 %v3101
        %v3254 = vunpack.c.l.b16 %v3102
        %v3255 = vunpack.c.l.b16 %v3103
        %v3256 = vunpack.c.h.b16 %v3102
        %v3257 = vunpack.c.h.b16 %v3103
        %v3258 = vunpack.c.l.b16 %v3104
        %v3259 = vunpack.c.l.b16 %v3105
        %v3260 = vunpack.c.h.b16 %v3104
        %v3261 = vunpack.c.h.b16 %v3105
        %v3262 = vunpack.c.l.b16 %v3106
        %v3263 = vunpack.c.l.b16 %v3107
        %v3264 = vunpack.c.h.b16 %v3106
        %v3265 = vunpack.c.h.b16 %v3107
        %v3266 = vunpack.c.l.b16 %v3108
        %v3267 = vunpack.c.l.b16 %v3109
        %v3268 = vunpack.c.h.b16 %v3108
        %v3269 = vunpack.c.h.b16 %v3109
        %v3270 = vunpack.c.l.b16 %v3110
        %v3271 = vunpack.c.l.b16 %v3111
        %v3272 = vunpack.c.h.b16 %v3110
        %v3273 = vunpack.c.h.b16 %v3111
        %v3274 = vunpack.c.l.b16 %v3112
        %v3275 = vunpack.c.l.b16 %v3113
        %v3276 = vunpack.c.h.b16 %v3112
        %v3277 = vunpack.c.h.b16 %v3113
        %v3278 = vunpack.c.l.b16 %v3114
        %v3279 = vunpack.c.l.b16 %v3115
        %v3280 = vunpack.c.h.b16 %v3114
        %v3281 = vunpack.c.h.b16 %v3115
        %v3282 = vunpack.c.l.b16 %v3116
        %v3283 = vunpack.c.l.b16 %v3117
        %v3284 = vunpack.c.h.b16 %v3116
        %v3285 = vunpack.c.h.b16 %v3117
        %v3286 = vunpack.c.l.b16 %v3118
        %v3287 = vunpack.c.l.b16 %v3119
        %v3288 = vunpack.c.h.b16 %v3118
        %v3289 = vunpack.c.h.b16 %v3119
        %v3290 = vunpack.c.l.b16 %v3120
        %v3291 = vunpack.c.l.b16 %v3121
        %v3292 = vunpack.c.h.b16 %v3120
        %v3293 = vunpack.c.h.b16 %v3121
        %v3294 = vunpack.c.l.b16 %v3122
        %v3295 = vunpack.c.l.b16 %v3123
        %v3296 = vunpack.c.h.b16 %v3122
        %v3297 = vunpack.c.h.b16 %v3123
        %v3298 = vunpack.c.l.b16 %v3124
        %v3299 = vunpack.c.l.b16 %v3125
        %v3300 = vunpack.c.h.b16 %v3124
        %v3301 = vunpack.c.h.b16 %v3125
        %v3302 = vunpack.c.l.b16 %v3126
        %v3303 = vunpack.c.l.b16 %v3127
        %v3304 = vunpack.c.h.b16 %v3126
        %v3305 = vunpack.c.h.b16 %v3127
        %v3306 = vunpack.c.l.b16 %v3128
        %v3307 = vunpack.c.l.b16 %v3129
        %v3308 = vunpack.c.h.b16 %v3128
        %v3309 = vunpack.c.h.b16 %v3129
        %v3310 = vunpack.c.l.b16 %v3130
        %v3311 = vunpack.c.l.b16 %v3131
        %v3312 = vunpack.c.h.b16 %v3130
        %v3313 = vunpack.c.h.b16 %v3131
        %v3314 = vunpack.c.l.b16 %v3132
        %v3315 = vunpack.c.l.b16 %v3133
        %v3316 = vunpack.c.h.b16 %v3132
        %v3317 = vunpack.c.h.b16 %v3133
        %v3318 = vunpack.c.l.b16 %v3134
        %v3319 = vunpack.c.l.b16 %v3135
        %v3320 = vunpack.c.h.b16 %v3134
        %v3321 = vunpack.c.h.b16 %v3135
        %v3322 = vunpack.c.l.b16 %v3136
        %v3323 = vunpack.c.l.b16 %v3137
        %v3324 = vunpack.c.h.b16 %v3136
        %v3325 = vunpack.c.h.b16 %v3137
        %v3326 = vunpack.c.l.b16 %v3138
        %v3327 = vunpack.c.l.b16 %v3139
        %v3328 = vunpack.c.h.b16 %v3138
        %v3329 = vunpack.c.h.b16 %v3139
        %v3330 = vunpack.c.l.b16 %v3140
        %v3331 = vunpack.c.l.b16 %v3141
        %v3332 = vunpack.c.h.b16 %v3140
        %v3333 = vunpack.c.h.b16 %v3141
        %v3334 = vpack.c.b16 %v3207, %v3206
        %v3335 = vpack.c.b16 %v3209, %v3208
        %v3336 = vpack.c.b16 %v3211, %v3210
        %v3337 = vpack.c.b16 %v3213, %v3212
        %v3338 = vpack.c.b16 %v3215, %v3214
        %v3339 = vpack.c.b16 %v3217, %v3216
        %v3340 = vpack.c.b16 %v3219, %v3218
        %v3341 = vpack.c.b16 %v3221, %v3220
        %v3342 = vpack.c.b16 %v3223, %v3222
        %v3343 = vpack.c.b16 %v3225, %v3224
        %v3344 = vpack.c.b16 %v3227, %v3226
        %v3345 = vpack.c.b16 %v3229, %v3228
        %v3346 = vpack.c.b16 %v3231, %v3230
        %v3347 = vpack.c.b16 %v3233, %v3232
        %v3348 = vpack.c.b16 %v3235, %v3234
        %v3349 = vpack.c.b16 %v3237, %v3236
        %v3350 = vpack.c.b16 %v3239, %v3238
        %v3351 = vpack.c.b16 %v3241, %v3240
        %v3352 = vpack.c.b16 %v3243, %v3242
        %v3353 = vpack.c.b16 %v3245, %v3244
        %v3354 = vpack.c.b16 %v3247, %v3246
        %v3355 = vpack.c.b16 %v3249, %v3248
        %v3356 = vpack.c.b16 %v3251, %v3250
        %v3357 = vpack.c.b16 %v3253, %v3252
        %v3358 = vpack.c.b16 %v3255, %v3254
        %v3359 = vpack.c.b16 %v3257, %v3256
        %v3360 = vpack.c.b16 %v3259, %v3258
        %v3361 = vpack.c.b16 %v3261, %v3260
        %v3362 = vpack.c.b16 %v3263, %v3262
        %v3363 = vpack.c.b16 %v3265, %v3264
        %v3364 = vpack.c.b16 %v3267, %v3266
        %v3365 = vpack.c.b16 %v3269, %v3268
        %v3366 = vpack.c.b16 %v3271, %v3270
        %v3367 = vpack.c.b16 %v3273, %v3272
        %v3368 = vpack.c.b16 %v3275, %v3274
        %v3369 = vpack.c.b16 %v3277, %v3276
        %v3370 = vpack.c.b16 %v3279, %v3278
        %v3371 = vpack.c.b16 %v3281, %v3280
        %v3372 = vpack.c.b16 %v3283, %v3282
        %v3373 = vpack.c.b16 %v3285, %v3284
        %v3374 = vpack.c.b16 %v3287, %v3286
        %v3375 = vpack.c.b16 %v3289, %v3288
        %v3376 = vpack.c.b16 %v3291, %v3290
        %v3377 = vpack.c.b16 %v3293, %v3292
        %v3378 = vpack.c.b16 %v3295, %v3294
        %v3379 = vpack.c.b16 %v3297, %v3296
        %v3380 = vpack.c.b16 %v3299, %v3298
        %v3381 = vpack.c.b16 %v3301, %v3300
        %v3382 = vpack.c.b16 %v3303, %v3302
        %v3383 = vpack.c.b16 %v3305, %v3304
        %v3384 = vpack.c.b16 %v3307, %v3306
        %v3385 = vpack.c.b16 %v3309, %v3308
        %v3386 = vpack.c.b16 %v3311, %v3310
        %v3387 = vpack.c.b16 %v3313, %v3312
        %v3388 = vpack.c.b16 %v3315, %v3314
        %v3389 = vpack.c.b16 %v3317, %v3316
        %v3390 = vpack.c.b16 %v3319, %v3318
        %v3391 = vpack.c.b16 %v3321, %v3320
        %v3392 = vpack.c.b16 %v3323, %v3322
        %v3393 = vpack.c.b16 %v3325, %v3324
        %v3394 = vpack.c.b16 %v3327, %v3326
        %v3395 = vpack.c.b16 %v3329, %v3328
        %v3396 = vpack.c.b16 %v3331, %v3330
        %v3397 = vpack.c.b16 %v3333, %v3332
        %3462 = vst [vmem:[%s606] sm:$0xff] %v3334
        %3463 = vst [vmem:[%s606 + $0x8] sm:$0xff] %v3335
        %3464 = vst [vmem:[%s606 + $0x10] sm:$0xff] %v3336
        %3465 = vst [vmem:[%s606 + $0x18] sm:$0xff] %v3337
        %3466 = vst [vmem:[%s606 + $0x20] sm:$0xff] %v3338
        %3467 = vst [vmem:[%s606 + $0x28] sm:$0xff] %v3339
        %3468 = vst [vmem:[%s606 + $0x30] sm:$0xff] %v3340
        %3469 = vst [vmem:[%s606 + $0x38] sm:$0xff] %v3341
        %3470 = vst [vmem:[%s606 + $0x40] sm:$0xff] %v3342
        %3471 = vst [vmem:[%s606 + $0x48] sm:$0xff] %v3343
        %3472 = vst [vmem:[%s606 + $0x50] sm:$0xff] %v3344
        %3473 = vst [vmem:[%s606 + $0x58] sm:$0xff] %v3345
        %3474 = vst [vmem:[%s606 + $0x60] sm:$0xff] %v3346
        %3475 = vst [vmem:[%s606 + $0x68] sm:$0xff] %v3347
        %3476 = vst [vmem:[%s606 + $0x70] sm:$0xff] %v3348
        %3477 = vst [vmem:[%s606 + $0x78] sm:$0xff] %v3349
        %3478 = vst [vmem:[%s606 + $0x80] sm:$0xff] %v3350
        %3479 = vst [vmem:[%s606 + $0x88] sm:$0xff] %v3351
        %3480 = vst [vmem:[%s606 + $0x90] sm:$0xff] %v3352
        %3481 = vst [vmem:[%s606 + $0x98] sm:$0xff] %v3353
        %3482 = vst [vmem:[%s606 + $0xa0] sm:$0xff] %v3354
        %3483 = vst [vmem:[%s606 + $0xa8] sm:$0xff] %v3355
        %3484 = vst [vmem:[%s606 + $0xb0] sm:$0xff] %v3356
        %3485 = vst [vmem:[%s606 + $0xb8] sm:$0xff] %v3357
        %3486 = vst [vmem:[%s606 + $0xc0] sm:$0xff] %v3358
        %3487 = vst [vmem:[%s606 + $0xc8] sm:$0xff] %v3359
        %3488 = vst [vmem:[%s606 + $0xd0] sm:$0xff] %v3360
        %3489 = vst [vmem:[%s606 + $0xd8] sm:$0xff] %v3361
        %3490 = vst [vmem:[%s606 + $0xe0] sm:$0xff] %v3362
        %3491 = vst [vmem:[%s606 + $0xe8] sm:$0xff] %v3363
        %3492 = vst [vmem:[%s606 + $0xf0] sm:$0xff] %v3364
        %3493 = vst [vmem:[%s606 + $0xf8] sm:$0xff] %v3365
        %3494 = vst [vmem:[%s606 + $0x100] sm:$0xff] %v3366
        %3495 = vst [vmem:[%s606 + $0x108] sm:$0xff] %v3367
        %3496 = vst [vmem:[%s606 + $0x110] sm:$0xff] %v3368
        %3497 = vst [vmem:[%s606 + $0x118] sm:$0xff] %v3369
        %3498 = vst [vmem:[%s606 + $0x120] sm:$0xff] %v3370
        %3499 = vst [vmem:[%s606 + $0x128] sm:$0xff] %v3371
        %3500 = vst [vmem:[%s606 + $0x130] sm:$0xff] %v3372
        %3501 = vst [vmem:[%s606 + $0x138] sm:$0xff] %v3373
        %3502 = vst [vmem:[%s606 + $0x140] sm:$0xff] %v3374
        %3503 = vst [vmem:[%s606 + $0x148] sm:$0xff] %v3375
        %3504 = vst [vmem:[%s606 + $0x150] sm:$0xff] %v3376
        %3505 = vst [vmem:[%s606 + $0x158] sm:$0xff] %v3377
        %3506 = vst [vmem:[%s606 + $0x160] sm:$0xff] %v3378
        %3507 = vst [vmem:[%s606 + $0x168] sm:$0xff] %v3379
        %3508 = vst [vmem:[%s606 + $0x170] sm:$0xff] %v3380
        %3509 = vst [vmem:[%s606 + $0x178] sm:$0xff] %v3381
        %3510 = vst [vmem:[%s606 + $0x180] sm:$0xff] %v3382
        %3511 = vst [vmem:[%s606 + $0x188] sm:$0xff] %v3383
        %3512 = vst [vmem:[%s606 + $0x190] sm:$0xff] %v3384
        %3513 = vst [vmem:[%s606 + $0x198] sm:$0xff] %v3385
        %3514 = vst [vmem:[%s606 + $0x1a0] sm:$0xff] %v3386
        %3515 = vst [vmem:[%s606 + $0x1a8] sm:$0xff] %v3387
        %3516 = vst [vmem:[%s606 + $0x1b0] sm:$0xff] %v3388
        %3517 = vst [vmem:[%s606 + $0x1b8] sm:$0xff] %v3389
        %3518 = vst [vmem:[%s606 + $0x1c0] sm:$0xff] %v3390
        %3519 = vst [vmem:[%s606 + $0x1c8] sm:$0xff] %v3391
        %3520 = vst [vmem:[%s606 + $0x1d0] sm:$0xff] %v3392
        %3521 = vst [vmem:[%s606 + $0x1d8] sm:$0xff] %v3393
        %3522 = vst [vmem:[%s606 + $0x1e0] sm:$0xff] %v3394
        %3523 = vst [vmem:[%s606 + $0x1e8] sm:$0xff] %v3395
        %3524 = vst [vmem:[%s606 + $0x1f0] sm:$0xff] %v3396
        %3525 = vst [vmem:[%s606 + $0x1f8] sm:$0xff] %v3397
        %v3526 = vld [vmem:[%s531] sm:$0xff]
        %v3527 = vld [vmem:[%s531 + $0x8] sm:$0xff]
        %v3528 = vld [vmem:[%s531 + $0x10] sm:$0xff]
        %v3529 = vld [vmem:[%s531 + $0x18] sm:$0xff]
        %v3530 = vld [vmem:[%s531 + $0x20] sm:$0xff]
        %v3531 = vld [vmem:[%s531 + $0x28] sm:$0xff]
        %v3532 = vld [vmem:[%s531 + $0x30] sm:$0xff]
        %v3533 = vld [vmem:[%s531 + $0x38] sm:$0xff]
        %v3534 = vld [vmem:[%s531 + $0x40] sm:$0xff]
        %v3535 = vld [vmem:[%s531 + $0x48] sm:$0xff]
        %v3536 = vld [vmem:[%s531 + $0x50] sm:$0xff]
        %v3537 = vld [vmem:[%s531 + $0x58] sm:$0xff]
        %v3538 = vld [vmem:[%s531 + $0x60] sm:$0xff]
        %v3539 = vld [vmem:[%s531 + $0x68] sm:$0xff]
        %v3540 = vld [vmem:[%s531 + $0x70] sm:$0xff]
        %v3541 = vld [vmem:[%s531 + $0x78] sm:$0xff]
        %v3542 = vld [vmem:[%s531 + $0x80] sm:$0xff]
        %v3543 = vld [vmem:[%s531 + $0x88] sm:$0xff]
        %v3544 = vld [vmem:[%s531 + $0x90] sm:$0xff]
        %v3545 = vld [vmem:[%s531 + $0x98] sm:$0xff]
        %v3546 = vld [vmem:[%s531 + $0xa0] sm:$0xff]
        %v3547 = vld [vmem:[%s531 + $0xa8] sm:$0xff]
        %v3548 = vld [vmem:[%s531 + $0xb0] sm:$0xff]
        %v3549 = vld [vmem:[%s531 + $0xb8] sm:$0xff]
        %v3550 = vld [vmem:[%s531 + $0xc0] sm:$0xff]
        %v3551 = vld [vmem:[%s531 + $0xc8] sm:$0xff]
        %v3552 = vld [vmem:[%s531 + $0xd0] sm:$0xff]
        %v3553 = vld [vmem:[%s531 + $0xd8] sm:$0xff]
        %v3554 = vld [vmem:[%s531 + $0xe0] sm:$0xff]
        %v3555 = vld [vmem:[%s531 + $0xe8] sm:$0xff]
        %v3556 = vld [vmem:[%s531 + $0xf0] sm:$0xff]
        %v3557 = vld [vmem:[%s531 + $0xf8] sm:$0xff]
        %v3558 = vld [vmem:[%s531 + $0x100] sm:$0xff]
        %v3559 = vld [vmem:[%s531 + $0x108] sm:$0xff]
        %v3560 = vld [vmem:[%s531 + $0x110] sm:$0xff]
        %v3561 = vld [vmem:[%s531 + $0x118] sm:$0xff]
        %v3562 = vld [vmem:[%s531 + $0x120] sm:$0xff]
        %v3563 = vld [vmem:[%s531 + $0x128] sm:$0xff]
        %v3564 = vld [vmem:[%s531 + $0x130] sm:$0xff]
        %v3565 = vld [vmem:[%s531 + $0x138] sm:$0xff]
        %v3566 = vld [vmem:[%s531 + $0x140] sm:$0xff]
        %v3567 = vld [vmem:[%s531 + $0x148] sm:$0xff]
        %v3568 = vld [vmem:[%s531 + $0x150] sm:$0xff]
        %v3569 = vld [vmem:[%s531 + $0x158] sm:$0xff]
        %v3570 = vld [vmem:[%s531 + $0x160] sm:$0xff]
        %v3571 = vld [vmem:[%s531 + $0x168] sm:$0xff]
        %v3572 = vld [vmem:[%s531 + $0x170] sm:$0xff]
        %v3573 = vld [vmem:[%s531 + $0x178] sm:$0xff]
        %v3574 = vld [vmem:[%s531 + $0x180] sm:$0xff]
        %v3575 = vld [vmem:[%s531 + $0x188] sm:$0xff]
        %v3576 = vld [vmem:[%s531 + $0x190] sm:$0xff]
        %v3577 = vld [vmem:[%s531 + $0x198] sm:$0xff]
        %v3578 = vld [vmem:[%s531 + $0x1a0] sm:$0xff]
        %v3579 = vld [vmem:[%s531 + $0x1a8] sm:$0xff]
        %v3580 = vld [vmem:[%s531 + $0x1b0] sm:$0xff]
        %v3581 = vld [vmem:[%s531 + $0x1b8] sm:$0xff]
        %v3582 = vld [vmem:[%s531 + $0x1c0] sm:$0xff]
        %v3583 = vld [vmem:[%s531 + $0x1c8] sm:$0xff]
        %v3584 = vld [vmem:[%s531 + $0x1d0] sm:$0xff]
        %v3585 = vld [vmem:[%s531 + $0x1d8] sm:$0xff]
        %v3586 = vld [vmem:[%s531 + $0x1e0] sm:$0xff]
        %v3587 = vld [vmem:[%s531 + $0x1e8] sm:$0xff]
        %v3588 = vld [vmem:[%s531 + $0x1f0] sm:$0xff]
        %v3589 = vld [vmem:[%s531 + $0x1f8] sm:$0xff]
        %v3590 = vld [vmem:[#allocation14] sm:$0xff]
        %v3591 = vld [vmem:[#allocation14 + $0x8] sm:$0xff]
        %v3592 = vld [vmem:[#allocation14 + $0x10] sm:$0xff]
        %v3593 = vld [vmem:[#allocation14 + $0x18] sm:$0xff]
        %v3594 = vld [vmem:[#allocation14 + $0x20] sm:$0xff]
        %v3595 = vld [vmem:[#allocation14 + $0x28] sm:$0xff]
        %v3596 = vld [vmem:[#allocation14 + $0x30] sm:$0xff]
        %v3597 = vld [vmem:[#allocation14 + $0x38] sm:$0xff]
        %v3598 = vld [vmem:[#allocation14 + $0x40] sm:$0xff]
        %v3599 = vld [vmem:[#allocation14 + $0x48] sm:$0xff]
        %v3600 = vld [vmem:[#allocation14 + $0x50] sm:$0xff]
        %v3601 = vld [vmem:[#allocation14 + $0x58] sm:$0xff]
        %v3602 = vld [vmem:[#allocation14 + $0x60] sm:$0xff]
        %v3603 = vld [vmem:[#allocation14 + $0x68] sm:$0xff]
        %v3604 = vld [vmem:[#allocation14 + $0x70] sm:$0xff]
        %v3605 = vld [vmem:[#allocation14 + $0x78] sm:$0xff]
        %v3606 = vld [vmem:[#allocation14 + $0x80] sm:$0xff]
        %v3607 = vld [vmem:[#allocation14 + $0x88] sm:$0xff]
        %v3608 = vld [vmem:[#allocation14 + $0x90] sm:$0xff]
        %v3609 = vld [vmem:[#allocation14 + $0x98] sm:$0xff]
        %v3610 = vld [vmem:[#allocation14 + $0xa0] sm:$0xff]
        %v3611 = vld [vmem:[#allocation14 + $0xa8] sm:$0xff]
        %v3612 = vld [vmem:[#allocation14 + $0xb0] sm:$0xff]
        %v3613 = vld [vmem:[#allocation14 + $0xb8] sm:$0xff]
        %v3614 = vld [vmem:[#allocation14 + $0xc0] sm:$0xff]
        %v3615 = vld [vmem:[#allocation14 + $0xc8] sm:$0xff]
        %v3616 = vld [vmem:[#allocation14 + $0xd0] sm:$0xff]
        %v3617 = vld [vmem:[#allocation14 + $0xd8] sm:$0xff]
        %v3618 = vld [vmem:[#allocation14 + $0xe0] sm:$0xff]
        %v3619 = vld [vmem:[#allocation14 + $0xe8] sm:$0xff]
        %v3620 = vld [vmem:[#allocation14 + $0xf0] sm:$0xff]
        %v3621 = vld [vmem:[#allocation14 + $0xf8] sm:$0xff]
        %v3622 = vld [vmem:[#allocation16] sm:$0x3]
        %v3624 = vlaneseq
        %v3625 = vshrl.u32 %v3624, 7
        %v3626 = vsub.s32 0, %v3625
        %v3627 = vrot.slane %v3622, %v3626
        %v3628 = vlaneseq
        %v3629 = vshrl.u32 %v3628, 7
        %v3630 = vsub.s32 1, %v3629
        %v3631 = vrot.slane %v3622, %v3630
        %v3698 = vunpack.c.l.b16 %v3526
        %v3699 = vunpack.c.h.b16 %v3526
        %v3700 = vunpack.c.l.b16 %v3527
        %v3701 = vunpack.c.h.b16 %v3527
        %v3702 = vunpack.c.l.b16 %v3528
        %v3703 = vunpack.c.h.b16 %v3528
        %v3704 = vunpack.c.l.b16 %v3529
        %v3705 = vunpack.c.h.b16 %v3529
        %v3706 = vunpack.c.l.b16 %v3530
        %v3707 = vunpack.c.h.b16 %v3530
        %v3708 = vunpack.c.l.b16 %v3531
        %v3709 = vunpack.c.h.b16 %v3531
        %v3710 = vunpack.c.l.b16 %v3532
        %v3711 = vunpack.c.h.b16 %v3532
        %v3712 = vunpack.c.l.b16 %v3533
        %v3713 = vunpack.c.h.b16 %v3533
        %v3714 = vunpack.c.l.b16 %v3534
        %v3715 = vunpack.c.h.b16 %v3534
        %v3716 = vunpack.c.l.b16 %v3535
        %v3717 = vunpack.c.h.b16 %v3535
        %v3718 = vunpack.c.l.b16 %v3536
        %v3719 = vunpack.c.h.b16 %v3536
        %v3720 = vunpack.c.l.b16 %v3537
        %v3721 = vunpack.c.h.b16 %v3537
        %v3722 = vunpack.c.l.b16 %v3538
        %v3723 = vunpack.c.h.b16 %v3538
        %v3724 = vunpack.c.l.b16 %v3539
        %v3725 = vunpack.c.h.b16 %v3539
        %v3726 = vunpack.c.l.b16 %v3540
        %v3727 = vunpack.c.h.b16 %v3540
        %v3728 = vunpack.c.l.b16 %v3541
        %v3729 = vunpack.c.h.b16 %v3541
        %v3730 = vunpack.c.l.b16 %v3542
        %v3731 = vunpack.c.h.b16 %v3542
        %v3732 = vunpack.c.l.b16 %v3543
        %v3733 = vunpack.c.h.b16 %v3543
        %v3734 = vunpack.c.l.b16 %v3544
        %v3735 = vunpack.c.h.b16 %v3544
        %v3736 = vunpack.c.l.b16 %v3545
        %v3737 = vunpack.c.h.b16 %v3545
        %v3738 = vunpack.c.l.b16 %v3546
        %v3739 = vunpack.c.h.b16 %v3546
        %v3740 = vunpack.c.l.b16 %v3547
        %v3741 = vunpack.c.h.b16 %v3547
        %v3742 = vunpack.c.l.b16 %v3548
        %v3743 = vunpack.c.h.b16 %v3548
        %v3744 = vunpack.c.l.b16 %v3549
        %v3745 = vunpack.c.h.b16 %v3549
        %v3746 = vunpack.c.l.b16 %v3550
        %v3747 = vunpack.c.h.b16 %v3550
        %v3748 = vunpack.c.l.b16 %v3551
        %v3749 = vunpack.c.h.b16 %v3551
        %v3750 = vunpack.c.l.b16 %v3552
        %v3751 = vunpack.c.h.b16 %v3552
        %v3752 = vunpack.c.l.b16 %v3553
        %v3753 = vunpack.c.h.b16 %v3553
        %v3754 = vunpack.c.l.b16 %v3554
        %v3755 = vunpack.c.h.b16 %v3554
        %v3756 = vunpack.c.l.b16 %v3555
        %v3757 = vunpack.c.h.b16 %v3555
        %v3758 = vunpack.c.l.b16 %v3556
        %v3759 = vunpack.c.h.b16 %v3556
        %v3760 = vunpack.c.l.b16 %v3557
        %v3761 = vunpack.c.h.b16 %v3557
        %v3762 = vunpack.c.l.b16 %v3558
        %v3763 = vunpack.c.h.b16 %v3558
        %v3764 = vunpack.c.l.b16 %v3559
        %v3765 = vunpack.c.h.b16 %v3559
        %v3766 = vunpack.c.l.b16 %v3560
        %v3767 = vunpack.c.h.b16 %v3560
        %v3768 = vunpack.c.l.b16 %v3561
        %v3769 = vunpack.c.h.b16 %v3561
        %v3770 = vunpack.c.l.b16 %v3562
        %v3771 = vunpack.c.h.b16 %v3562
        %v3772 = vunpack.c.l.b16 %v3563
        %v3773 = vunpack.c.h.b16 %v3563
        %v3774 = vunpack.c.l.b16 %v3564
        %v3775 = vunpack.c.h.b16 %v3564
        %v3776 = vunpack.c.l.b16 %v3565
        %v3777 = vunpack.c.h.b16 %v3565
        %v3778 = vunpack.c.l.b16 %v3566
        %v3779 = vunpack.c.h.b16 %v3566
        %v3780 = vunpack.c.l.b16 %v3567
        %v3781 = vunpack.c.h.b16 %v3567
        %v3782 = vunpack.c.l.b16 %v3568
        %v3783 = vunpack.c.h.b16 %v3568
        %v3784 = vunpack.c.l.b16 %v3569
        %v3785 = vunpack.c.h.b16 %v3569
        %v3786 = vunpack.c.l.b16 %v3570
        %v3787 = vunpack.c.h.b16 %v3570
        %v3788 = vunpack.c.l.b16 %v3571
        %v3789 = vunpack.c.h.b16 %v3571
        %v3790 = vunpack.c.l.b16 %v3572
        %v3791 = vunpack.c.h.b16 %v3572
        %v3792 = vunpack.c.l.b16 %v3573
        %v3793 = vunpack.c.h.b16 %v3573
        %v3794 = vunpack.c.l.b16 %v3574
        %v3795 = vunpack.c.h.b16 %v3574
        %v3796 = vunpack.c.l.b16 %v3575
        %v3797 = vunpack.c.h.b16 %v3575
        %v3798 = vunpack.c.l.b16 %v3576
        %v3799 = vunpack.c.h.b16 %v3576
        %v3800 = vunpack.c.l.b16 %v3577
        %v3801 = vunpack.c.h.b16 %v3577
        %v3802 = vunpack.c.l.b16 %v3578
        %v3803 = vunpack.c.h.b16 %v3578
        %v3804 = vunpack.c.l.b16 %v3579
        %v3805 = vunpack.c.h.b16 %v3579
        %v3806 = vunpack.c.l.b16 %v3580
        %v3807 = vunpack.c.h.b16 %v3580
        %v3808 = vunpack.c.l.b16 %v3581
        %v3809 = vunpack.c.h.b16 %v3581
        %v3810 = vunpack.c.l.b16 %v3582
        %v3811 = vunpack.c.h.b16 %v3582
        %v3812 = vunpack.c.l.b16 %v3583
        %v3813 = vunpack.c.h.b16 %v3583
        %v3814 = vunpack.c.l.b16 %v3584
        %v3815 = vunpack.c.h.b16 %v3584
        %v3816 = vunpack.c.l.b16 %v3585
        %v3817 = vunpack.c.h.b16 %v3585
        %v3818 = vunpack.c.l.b16 %v3586
        %v3819 = vunpack.c.h.b16 %v3586
        %v3820 = vunpack.c.l.b16 %v3587
        %v3821 = vunpack.c.h.b16 %v3587
        %v3822 = vunpack.c.l.b16 %v3588
        %v3823 = vunpack.c.h.b16 %v3588
        %v3824 = vunpack.c.l.b16 %v3589
        %v3825 = vunpack.c.h.b16 %v3589
        %v3826 = vpack.c.b16 %v3700, %v3698
        %v3827 = vpack.c.b16 %v3701, %v3699
        %v3828 = vpack.c.b16 %v3704, %v3702
        %v3829 = vpack.c.b16 %v3705, %v3703
        %v3830 = vpack.c.b16 %v3708, %v3706
        %v3831 = vpack.c.b16 %v3709, %v3707
        %v3832 = vpack.c.b16 %v3712, %v3710
        %v3833 = vpack.c.b16 %v3713, %v3711
        %v3834 = vpack.c.b16 %v3716, %v3714
        %v3835 = vpack.c.b16 %v3717, %v3715
        %v3836 = vpack.c.b16 %v3720, %v3718
        %v3837 = vpack.c.b16 %v3721, %v3719
        %v3838 = vpack.c.b16 %v3724, %v3722
        %v3839 = vpack.c.b16 %v3725, %v3723
        %v3840 = vpack.c.b16 %v3728, %v3726
        %v3841 = vpack.c.b16 %v3729, %v3727
        %v3842 = vpack.c.b16 %v3732, %v3730
        %v3843 = vpack.c.b16 %v3733, %v3731
        %v3844 = vpack.c.b16 %v3736, %v3734
        %v3845 = vpack.c.b16 %v3737, %v3735
        %v3846 = vpack.c.b16 %v3740, %v3738
        %v3847 = vpack.c.b16 %v3741, %v3739
        %v3848 = vpack.c.b16 %v3744, %v3742
        %v3849 = vpack.c.b16 %v3745, %v3743
        %v3850 = vpack.c.b16 %v3748, %v3746
        %v3851 = vpack.c.b16 %v3749, %v3747
        %v3852 = vpack.c.b16 %v3752, %v3750
        %v3853 = vpack.c.b16 %v3753, %v3751
        %v3854 = vpack.c.b16 %v3756, %v3754
        %v3855 = vpack.c.b16 %v3757, %v3755
        %v3856 = vpack.c.b16 %v3760, %v3758
        %v3857 = vpack.c.b16 %v3761, %v3759
        %v3858 = vpack.c.b16 %v3764, %v3762
        %v3859 = vpack.c.b16 %v3765, %v3763
        %v3860 = vpack.c.b16 %v3768, %v3766
        %v3861 = vpack.c.b16 %v3769, %v3767
        %v3862 = vpack.c.b16 %v3772, %v3770
        %v3863 = vpack.c.b16 %v3773, %v3771
        %v3864 = vpack.c.b16 %v3776, %v3774
        %v3865 = vpack.c.b16 %v3777, %v3775
        %v3866 = vpack.c.b16 %v3780, %v3778
        %v3867 = vpack.c.b16 %v3781, %v3779
        %v3868 = vpack.c.b16 %v3784, %v3782
        %v3869 = vpack.c.b16 %v3785, %v3783
        %v3870 = vpack.c.b16 %v3788, %v3786
        %v3871 = vpack.c.b16 %v3789, %v3787
        %v3872 = vpack.c.b16 %v3792, %v3790
        %v3873 = vpack.c.b16 %v3793, %v3791
        %v3874 = vpack.c.b16 %v3796, %v3794
        %v3875 = vpack.c.b16 %v3797, %v3795
        %v3876 = vpack.c.b16 %v3800, %v3798
        %v3877 = vpack.c.b16 %v3801, %v3799
        %v3878 = vpack.c.b16 %v3804, %v3802
        %v3879 = vpack.c.b16 %v3805, %v3803
        %v3880 = vpack.c.b16 %v3808, %v3806
        %v3881 = vpack.c.b16 %v3809, %v3807
        %v3882 = vpack.c.b16 %v3812, %v3810
        %v3883 = vpack.c.b16 %v3813, %v3811
        %v3884 = vpack.c.b16 %v3816, %v3814
        %v3885 = vpack.c.b16 %v3817, %v3815
        %v3886 = vpack.c.b16 %v3820, %v3818
        %v3887 = vpack.c.b16 %v3821, %v3819
        %v3888 = vpack.c.b16 %v3824, %v3822
        %v3889 = vpack.c.b16 %v3825, %v3823
        %v3986 = vunpack.c.l.b16 %v3590
        %v3987 = vunpack.c.h.b16 %v3590
        %v3988 = vunpack.c.l.b16 %v3591
        %v3989 = vunpack.c.h.b16 %v3591
        %v3990 = vunpack.c.l.b16 %v3592
        %v3991 = vunpack.c.h.b16 %v3592
        %v3992 = vunpack.c.l.b16 %v3593
        %v3993 = vunpack.c.h.b16 %v3593
        %v3994 = vunpack.c.l.b16 %v3594
        %v3995 = vunpack.c.h.b16 %v3594
        %v3996 = vunpack.c.l.b16 %v3595
        %v3997 = vunpack.c.h.b16 %v3595
        %v3998 = vunpack.c.l.b16 %v3596
        %v3999 = vunpack.c.h.b16 %v3596
        %v4000 = vunpack.c.l.b16 %v3597
        %v4001 = vunpack.c.h.b16 %v3597
        %v4002 = vunpack.c.l.b16 %v3598
        %v4003 = vunpack.c.h.b16 %v3598
        %v4004 = vunpack.c.l.b16 %v3599
        %v4005 = vunpack.c.h.b16 %v3599
        %v4006 = vunpack.c.l.b16 %v3600
        %v4007 = vunpack.c.h.b16 %v3600
        %v4008 = vunpack.c.l.b16 %v3601
        %v4009 = vunpack.c.h.b16 %v3601
        %v4010 = vunpack.c.l.b16 %v3602
        %v4011 = vunpack.c.h.b16 %v3602
        %v4012 = vunpack.c.l.b16 %v3603
        %v4013 = vunpack.c.h.b16 %v3603
        %v4014 = vunpack.c.l.b16 %v3604
        %v4015 = vunpack.c.h.b16 %v3604
        %v4016 = vunpack.c.l.b16 %v3605
        %v4017 = vunpack.c.h.b16 %v3605
        %v4018 = vunpack.c.l.b16 %v3606
        %v4019 = vunpack.c.h.b16 %v3606
        %v4020 = vunpack.c.l.b16 %v3607
        %v4021 = vunpack.c.h.b16 %v3607
        %v4022 = vunpack.c.l.b16 %v3608
        %v4023 = vunpack.c.h.b16 %v3608
        %v4024 = vunpack.c.l.b16 %v3609
        %v4025 = vunpack.c.h.b16 %v3609
        %v4026 = vunpack.c.l.b16 %v3610
        %v4027 = vunpack.c.h.b16 %v3610
        %v4028 = vunpack.c.l.b16 %v3611
        %v4029 = vunpack.c.h.b16 %v3611
        %v4030 = vunpack.c.l.b16 %v3612
        %v4031 = vunpack.c.h.b16 %v3612
        %v4032 = vunpack.c.l.b16 %v3613
        %v4033 = vunpack.c.h.b16 %v3613
        %v4034 = vunpack.c.l.b16 %v3614
        %v4035 = vunpack.c.h.b16 %v3614
        %v4036 = vunpack.c.l.b16 %v3615
        %v4037 = vunpack.c.h.b16 %v3615
        %v4038 = vunpack.c.l.b16 %v3616
        %v4039 = vunpack.c.h.b16 %v3616
        %v4040 = vunpack.c.l.b16 %v3617
        %v4041 = vunpack.c.h.b16 %v3617
        %v4042 = vunpack.c.l.b16 %v3618
        %v4043 = vunpack.c.h.b16 %v3618
        %v4044 = vunpack.c.l.b16 %v3619
        %v4045 = vunpack.c.h.b16 %v3619
        %v4046 = vunpack.c.l.b16 %v3620
        %v4047 = vunpack.c.h.b16 %v3620
        %v4048 = vunpack.c.l.b16 %v3621
        %v4049 = vunpack.c.h.b16 %v3621
        %v4050 = vpack.c.b16 %v3988, %v3986
        %v4051 = vpack.c.b16 %v3989, %v3987
        %v4052 = vpack.c.b16 %v3992, %v3990
        %v4053 = vpack.c.b16 %v3993, %v3991
        %v4054 = vpack.c.b16 %v3996, %v3994
        %v4055 = vpack.c.b16 %v3997, %v3995
        %v4056 = vpack.c.b16 %v4000, %v3998
        %v4057 = vpack.c.b16 %v4001, %v3999
        %v4058 = vpack.c.b16 %v4004, %v4002
        %v4059 = vpack.c.b16 %v4005, %v4003
        %v4060 = vpack.c.b16 %v4008, %v4006
        %v4061 = vpack.c.b16 %v4009, %v4007
        %v4062 = vpack.c.b16 %v4012, %v4010
        %v4063 = vpack.c.b16 %v4013, %v4011
        %v4064 = vpack.c.b16 %v4016, %v4014
        %v4065 = vpack.c.b16 %v4017, %v4015
        %v4066 = vpack.c.b16 %v4020, %v4018
        %v4067 = vpack.c.b16 %v4021, %v4019
        %v4068 = vpack.c.b16 %v4024, %v4022
        %v4069 = vpack.c.b16 %v4025, %v4023
        %v4070 = vpack.c.b16 %v4028, %v4026
        %v4071 = vpack.c.b16 %v4029, %v4027
        %v4072 = vpack.c.b16 %v4032, %v4030
        %v4073 = vpack.c.b16 %v4033, %v4031
        %v4074 = vpack.c.b16 %v4036, %v4034
        %v4075 = vpack.c.b16 %v4037, %v4035
        %v4076 = vpack.c.b16 %v4040, %v4038
        %v4077 = vpack.c.b16 %v4041, %v4039
        %v4078 = vpack.c.b16 %v4044, %v4042
        %v4079 = vpack.c.b16 %v4045, %v4043
        %v4080 = vpack.c.b16 %v4048, %v4046
        %v4081 = vpack.c.b16 %v4049, %v4047
        %4114 = vmatprep.subr.bf16.mxu0 %v4051
        %4115 = vmatpush1.bf16.msra.mxu0 %v4050
        %4116 = vmatprep.subr.bf16.mxu0 %v4053
        %4117 = vmatpush1.bf16.msra.mxu0 %v4052
        %4118 = vmatprep.subr.bf16.mxu0 %v4055
        %4119 = vmatpush1.bf16.msra.mxu0 %v4054
        %4120 = vmatprep.subr.bf16.mxu0 %v4057
        %4121 = vmatpush1.bf16.msra.mxu0 %v4056
        %4122 = vmatprep.subr.bf16.mxu0 %v4059
        %4123 = vmatpush1.bf16.msra.mxu0 %v4058
        %4124 = vmatprep.subr.bf16.mxu0 %v4061
        %4125 = vmatpush1.bf16.msra.mxu0 %v4060
        %4126 = vmatprep.subr.bf16.mxu0 %v4063
        %4127 = vmatpush1.bf16.msra.mxu0 %v4062
        %4128 = vmatprep.subr.bf16.mxu0 %v4065
        %4129 = vmatpush1.bf16.msra.mxu0 %v4064
        %4130 = vmatprep.subr.bf16.mxu0 %v4067
        %4131 = vmatpush1.bf16.msra.mxu0 %v4066
        %4132 = vmatprep.subr.bf16.mxu0 %v4069
        %4133 = vmatpush1.bf16.msra.mxu0 %v4068
        %4134 = vmatprep.subr.bf16.mxu0 %v4071
        %4135 = vmatpush1.bf16.msra.mxu0 %v4070
        %4136 = vmatprep.subr.bf16.mxu0 %v4073
        %4137 = vmatpush1.bf16.msra.mxu0 %v4072
        %4138 = vmatprep.subr.bf16.mxu0 %v4075
        %4139 = vmatpush1.bf16.msra.mxu0 %v4074
        %4140 = vmatprep.subr.bf16.mxu0 %v4077
        %4141 = vmatpush1.bf16.msra.mxu0 %v4076
        %4142 = vmatprep.subr.bf16.mxu0 %v4079
        %4143 = vmatpush1.bf16.msra.mxu0 %v4078
        %4144 = vmatprep.subr.bf16.mxu0 %v4081
        %4145 = vmatpush1.bf16.msra.mxu0 %v4080
        %4146 = vmatprep.mubr.bf16.mxu0 %v3827
        %4147 = vmatmul.mubr.bf16.gmra.mrb[0].mxu0 %v3826
        %v4148 = vpop.f32.mrb[0].mxu0
        %v4149 = vadd.f32 %v3627, %v4148
        %v4150 = vpop.f32.mrb[0].mxu0
        %v4151 = vadd.f32 %v3631, %v4150
        %v4152 = vpop.f32.mrb[0].mxu0
        %v4153 = vadd.f32 %v3627, %v4152
        %v4154 = vpop.f32.mrb[0].mxu0
        %v4155 = vadd.f32 %v3631, %v4154
        %4156 = vmatprep.mubr.bf16.mxu0 %v3829
        %4157 = vmatmul.mubr.bf16.gmra.mrb[0].mxu0 %v3828
        %v4158 = vpop.f32.mrb[0].mxu0
        %v4159 = vadd.f32 %v3627, %v4158
        %v4160 = vpop.f32.mrb[0].mxu0
        %v4161 = vadd.f32 %v3631, %v4160
        %v4162 = vpop.f32.mrb[0].mxu0
        %v4163 = vadd.f32 %v3627, %v4162
        %v4164 = vpop.f32.mrb[0].mxu0
        %v4165 = vadd.f32 %v3631, %v4164
        %4166 = vmatprep.mubr.bf16.mxu0 %v3831
        %4167 = vmatmul.mubr.bf16.gmra.mrb[0].mxu0 %v3830
        %v4168 = vpop.f32.mrb[0].mxu0
        %v4169 = vadd.f32 %v3627, %v4168
        %v4170 = vpop.f32.mrb[0].mxu0
        %v4171 = vadd.f32 %v3631, %v4170
        %v4172 = vpop.f32.mrb[0].mxu0
        %v4173 = vadd.f32 %v3627, %v4172
        %v4174 = vpop.f32.mrb[0].mxu0
        %v4175 = vadd.f32 %v3631, %v4174
        %4176 = vmatprep.mubr.bf16.mxu0 %v3833
        %4177 = vmatmul.mubr.bf16.gmra.mrb[0].mxu0 %v3832
        %v4178 = vpop.f32.mrb[0].mxu0
        %v4179 = vadd.f32 %v3627, %v4178
        %v4180 = vpop.f32.mrb[0].mxu0
        %v4181 = vadd.f32 %v3631, %v4180
        %v4182 = vpop.f32.mrb[0].mxu0
        %v4183 = vadd.f32 %v3627, %v4182
        %v4184 = vpop.f32.mrb[0].mxu0
        %v4185 = vadd.f32 %v3631, %v4184
        %4186 = vmatprep.mubr.bf16.mxu0 %v3835
        %4187 = vmatmul.mubr.bf16.gmra.mrb[0].mxu0 %v3834
        %v4188 = vpop.f32.mrb[0].mxu0
        %v4189 = vadd.f32 %v3627, %v4188
        %v4190 = vpop.f32.mrb[0].mxu0
        %v4191 = vadd.f32 %v3631, %v4190
        %v4192 = vpop.f32.mrb[0].mxu0
        %v4193 = vadd.f32 %v3627, %v4192
        %v4194 = vpop.f32.mrb[0].mxu0
        %v4195 = vadd.f32 %v3631, %v4194
        %4196 = vmatprep.mubr.bf16.mxu0 %v3837
        %4197 = vmatmul.mubr.bf16.gmra.mrb[0].mxu0 %v3836
        %v4198 = vpop.f32.mrb[0].mxu0
        %v4199 = vadd.f32 %v3627, %v4198
        %v4200 = vpop.f32.mrb[0].mxu0
        %v4201 = vadd.f32 %v3631, %v4200
        %v4202 = vpop.f32.mrb[0].mxu0
        %v4203 = vadd.f32 %v3627, %v4202
        %v4204 = vpop.f32.mrb[0].mxu0
        %v4205 = vadd.f32 %v3631, %v4204
        %4206 = vmatprep.mubr.bf16.mxu0 %v3839
        %4207 = vmatmul.mubr.bf16.gmra.mrb[0].mxu0 %v3838
        %v4208 = vpop.f32.mrb[0].mxu0
        %v4209 = vadd.f32 %v3627, %v4208
        %v4210 = vpop.f32.mrb[0].mxu0
        %v4211 = vadd.f32 %v3631, %v4210
        %v4212 = vpop.f32.mrb[0].mxu0
        %v4213 = vadd.f32 %v3627, %v4212
        %v4214 = vpop.f32.mrb[0].mxu0
        %v4215 = vadd.f32 %v3631, %v4214
        %4216 = vmatprep.mubr.bf16.mxu0 %v3841
        %4217 = vmatmul.mubr.bf16.gmra.mrb[0].mxu0 %v3840
        %v4218 = vpop.f32.mrb[0].mxu0
        %v4219 = vadd.f32 %v3627, %v4218
        %v4220 = vpop.f32.mrb[0].mxu0
        %v4221 = vadd.f32 %v3631, %v4220
        %v4222 = vpop.f32.mrb[0].mxu0
        %v4223 = vadd.f32 %v3627, %v4222
        %v4224 = vpop.f32.mrb[0].mxu0
        %v4225 = vadd.f32 %v3631, %v4224
        %4226 = vmatprep.mubr.bf16.mxu0 %v3843
        %4227 = vmatmul.mubr.bf16.gmra.mrb[0].mxu0 %v3842
        %v4228 = vpop.f32.mrb[0].mxu0
        %v4229 = vadd.f32 %v3627, %v4228
        %v4230 = vpop.f32.mrb[0].mxu0
        %v4231 = vadd.f32 %v3631, %v4230
        %v4232 = vpop.f32.mrb[0].mxu0
        %v4233 = vadd.f32 %v3627, %v4232
        %v4234 = vpop.f32.mrb[0].mxu0
        %v4235 = vadd.f32 %v3631, %v4234
        %4236 = vmatprep.mubr.bf16.mxu0 %v3845
        %4237 = vmatmul.mubr.bf16.gmra.mrb[0].mxu0 %v3844
        %v4238 = vpop.f32.mrb[0].mxu0
        %v4239 = vadd.f32 %v3627, %v4238
        %v4240 = vpop.f32.mrb[0].mxu0
        %v4241 = vadd.f32 %v3631, %v4240
        %v4242 = vpop.f32.mrb[0].mxu0
        %v4243 = vadd.f32 %v3627, %v4242
        %v4244 = vpop.f32.mrb[0].mxu0
        %v4245 = vadd.f32 %v3631, %v4244
        %4246 = vmatprep.mubr.bf16.mxu0 %v3847
        %4247 = vmatmul.mubr.bf16.gmra.mrb[0].mxu0 %v3846
        %v4248 = vpop.f32.mrb[0].mxu0
        %v4249 = vadd.f32 %v3627, %v4248
        %v4250 = vpop.f32.mrb[0].mxu0
        %v4251 = vadd.f32 %v3631, %v4250
        %v4252 = vpop.f32.mrb[0].mxu0
        %v4253 = vadd.f32 %v3627, %v4252
        %v4254 = vpop.f32.mrb[0].mxu0
        %v4255 = vadd.f32 %v3631, %v4254
        %4256 = vmatprep.mubr.bf16.mxu0 %v3849
        %4257 = vmatmul.mubr.bf16.gmra.mrb[0].mxu0 %v3848
        %v4258 = vpop.f32.mrb[0].mxu0
        %v4259 = vadd.f32 %v3627, %v4258
        %v4260 = vpop.f32.mrb[0].mxu0
        %v4261 = vadd.f32 %v3631, %v4260
        %v4262 = vpop.f32.mrb[0].mxu0
        %v4263 = vadd.f32 %v3627, %v4262
        %v4264 = vpop.f32.mrb[0].mxu0
        %v4265 = vadd.f32 %v3631, %v4264
        %4266 = vmatprep.mubr.bf16.mxu0 %v3851
        %4267 = vmatmul.mubr.bf16.gmra.mrb[0].mxu0 %v3850
        %v4268 = vpop.f32.mrb[0].mxu0
        %v4269 = vadd.f32 %v3627, %v4268
        %v4270 = vpop.f32.mrb[0].mxu0
        %v4271 = vadd.f32 %v3631, %v4270
        %v4272 = vpop.f32.mrb[0].mxu0
        %v4273 = vadd.f32 %v3627, %v4272
        %v4274 = vpop.f32.mrb[0].mxu0
        %v4275 = vadd.f32 %v3631, %v4274
        %4276 = vmatprep.mubr.bf16.mxu0 %v3853
        %4277 = vmatmul.mubr.bf16.gmra.mrb[0].mxu0 %v3852
        %v4278 = vpop.f32.mrb[0].mxu0
        %v4279 = vadd.f32 %v3627, %v4278
        %v4280 = vpop.f32.mrb[0].mxu0
        %v4281 = vadd.f32 %v3631, %v4280
        %v4282 = vpop.f32.mrb[0].mxu0
        %v4283 = vadd.f32 %v3627, %v4282
        %v4284 = vpop.f32.mrb[0].mxu0
        %v4285 = vadd.f32 %v3631, %v4284
        %4286 = vmatprep.mubr.bf16.mxu0 %v3855
        %4287 = vmatmul.mubr.bf16.gmra.mrb[0].mxu0 %v3854
        %v4288 = vpop.f32.mrb[0].mxu0
        %v4289 = vadd.f32 %v3627, %v4288
        %v4290 = vpop.f32.mrb[0].mxu0
        %v4291 = vadd.f32 %v3631, %v4290
        %v4292 = vpop.f32.mrb[0].mxu0
        %v4293 = vadd.f32 %v3627, %v4292
        %v4294 = vpop.f32.mrb[0].mxu0
        %v4295 = vadd.f32 %v3631, %v4294
        %4296 = vmatprep.mubr.bf16.mxu0 %v3857
        %4297 = vmatmul.mubr.bf16.gmra.mrb[0].mxu0 %v3856
        %v4298 = vpop.f32.mrb[0].mxu0
        %v4299 = vadd.f32 %v3627, %v4298
        %v4300 = vpop.f32.mrb[0].mxu0
        %v4301 = vadd.f32 %v3631, %v4300
        %v4302 = vpop.f32.mrb[0].mxu0
        %v4303 = vadd.f32 %v3627, %v4302
        %v4304 = vpop.f32.mrb[0].mxu0
        %v4305 = vadd.f32 %v3631, %v4304
        %4306 = vmatprep.mubr.bf16.mxu0 %v3859
        %4307 = vmatmul.mubr.bf16.gmra.mrb[0].mxu0 %v3858
        %v4308 = vpop.f32.mrb[0].mxu0
        %v4309 = vadd.f32 %v3627, %v4308
        %v4310 = vpop.f32.mrb[0].mxu0
        %v4311 = vadd.f32 %v3631, %v4310
        %v4312 = vpop.f32.mrb[0].mxu0
        %v4313 = vadd.f32 %v3627, %v4312
        %v4314 = vpop.f32.mrb[0].mxu0
        %v4315 = vadd.f32 %v3631, %v4314
        %4316 = vmatprep.mubr.bf16.mxu0 %v3861
        %4317 = vmatmul.mubr.bf16.gmra.mrb[0].mxu0 %v3860
        %v4318 = vpop.f32.mrb[0].mxu0
        %v4319 = vadd.f32 %v3627, %v4318
        %v4320 = vpop.f32.mrb[0].mxu0
        %v4321 = vadd.f32 %v3631, %v4320
        %v4322 = vpop.f32.mrb[0].mxu0
        %v4323 = vadd.f32 %v3627, %v4322
        %v4324 = vpop.f32.mrb[0].mxu0
        %v4325 = vadd.f32 %v3631, %v4324
        %4326 = vmatprep.mubr.bf16.mxu0 %v3863
        %4327 = vmatmul.mubr.bf16.gmra.mrb[0].mxu0 %v3862
        %v4328 = vpop.f32.mrb[0].mxu0
        %v4329 = vadd.f32 %v3627, %v4328
        %v4330 = vpop.f32.mrb[0].mxu0
        %v4331 = vadd.f32 %v3631, %v4330
        %v4332 = vpop.f32.mrb[0].mxu0
        %v4333 = vadd.f32 %v3627, %v4332
        %v4334 = vpop.f32.mrb[0].mxu0
        %v4335 = vadd.f32 %v3631, %v4334
        %4336 = vmatprep.mubr.bf16.mxu0 %v3865
        %4337 = vmatmul.mubr.bf16.gmra.mrb[0].mxu0 %v3864
        %v4338 = vpop.f32.mrb[0].mxu0
        %v4339 = vadd.f32 %v3627, %v4338
        %v4340 = vpop.f32.mrb[0].mxu0
        %v4341 = vadd.f32 %v3631, %v4340
        %v4342 = vpop.f32.mrb[0].mxu0
        %v4343 = vadd.f32 %v3627, %v4342
        %v4344 = vpop.f32.mrb[0].mxu0
        %v4345 = vadd.f32 %v3631, %v4344
        %4346 = vmatprep.mubr.bf16.mxu0 %v3867
        %4347 = vmatmul.mubr.bf16.gmra.mrb[0].mxu0 %v3866
        %v4348 = vpop.f32.mrb[0].mxu0
        %v4349 = vadd.f32 %v3627, %v4348
        %v4350 = vpop.f32.mrb[0].mxu0
        %v4351 = vadd.f32 %v3631, %v4350
        %v4352 = vpop.f32.mrb[0].mxu0
        %v4353 = vadd.f32 %v3627, %v4352
        %v4354 = vpop.f32.mrb[0].mxu0
        %v4355 = vadd.f32 %v3631, %v4354
        %4356 = vmatprep.mubr.bf16.mxu0 %v3869
        %4357 = vmatmul.mubr.bf16.gmra.mrb[0].mxu0 %v3868
        %v4358 = vpop.f32.mrb[0].mxu0
        %v4359 = vadd.f32 %v3627, %v4358
        %v4360 = vpop.f32.mrb[0].mxu0
        %v4361 = vadd.f32 %v3631, %v4360
        %v4362 = vpop.f32.mrb[0].mxu0
        %v4363 = vadd.f32 %v3627, %v4362
        %v4364 = vpop.f32.mrb[0].mxu0
        %v4365 = vadd.f32 %v3631, %v4364
        %4366 = vmatprep.mubr.bf16.mxu0 %v3871
        %4367 = vmatmul.mubr.bf16.gmra.mrb[0].mxu0 %v3870
        %v4368 = vpop.f32.mrb[0].mxu0
        %v4369 = vadd.f32 %v3627, %v4368
        %v4370 = vpop.f32.mrb[0].mxu0
        %v4371 = vadd.f32 %v3631, %v4370
        %v4372 = vpop.f32.mrb[0].mxu0
        %v4373 = vadd.f32 %v3627, %v4372
        %v4374 = vpop.f32.mrb[0].mxu0
        %v4375 = vadd.f32 %v3631, %v4374
        %4376 = vmatprep.mubr.bf16.mxu0 %v3873
        %4377 = vmatmul.mubr.bf16.gmra.mrb[0].mxu0 %v3872
        %v4378 = vpop.f32.mrb[0].mxu0
        %v4379 = vadd.f32 %v3627, %v4378
        %v4380 = vpop.f32.mrb[0].mxu0
        %v4381 = vadd.f32 %v3631, %v4380
        %v4382 = vpop.f32.mrb[0].mxu0
        %v4383 = vadd.f32 %v3627, %v4382
        %v4384 = vpop.f32.mrb[0].mxu0
        %v4385 = vadd.f32 %v3631, %v4384
        %4386 = vmatprep.mubr.bf16.mxu0 %v3875
        %4387 = vmatmul.mubr.bf16.gmra.mrb[0].mxu0 %v3874
        %v4388 = vpop.f32.mrb[0].mxu0
        %v4389 = vadd.f32 %v3627, %v4388
        %v4390 = vpop.f32.mrb[0].mxu0
        %v4391 = vadd.f32 %v3631, %v4390
        %v4392 = vpop.f32.mrb[0].mxu0
        %v4393 = vadd.f32 %v3627, %v4392
        %v4394 = vpop.f32.mrb[0].mxu0
        %v4395 = vadd.f32 %v3631, %v4394
        %4396 = vmatprep.mubr.bf16.mxu0 %v3877
        %4397 = vmatmul.mubr.bf16.gmra.mrb[0].mxu0 %v3876
        %v4398 = vpop.f32.mrb[0].mxu0
        %v4399 = vadd.f32 %v3627, %v4398
        %v4400 = vpop.f32.mrb[0].mxu0
        %v4401 = vadd.f32 %v3631, %v4400
        %v4402 = vpop.f32.mrb[0].mxu0
        %v4403 = vadd.f32 %v3627, %v4402
        %v4404 = vpop.f32.mrb[0].mxu0
        %v4405 = vadd.f32 %v3631, %v4404
        %4406 = vmatprep.mubr.bf16.mxu0 %v3879
        %4407 = vmatmul.mubr.bf16.gmra.mrb[0].mxu0 %v3878
        %v4408 = vpop.f32.mrb[0].mxu0
        %v4409 = vadd.f32 %v3627, %v4408
        %v4410 = vpop.f32.mrb[0].mxu0
        %v4411 = vadd.f32 %v3631, %v4410
        %v4412 = vpop.f32.mrb[0].mxu0
        %v4413 = vadd.f32 %v3627, %v4412
        %v4414 = vpop.f32.mrb[0].mxu0
        %v4415 = vadd.f32 %v3631, %v4414
        %4416 = vmatprep.mubr.bf16.mxu0 %v3881
        %4417 = vmatmul.mubr.bf16.gmra.mrb[0].mxu0 %v3880
        %v4418 = vpop.f32.mrb[0].mxu0
        %v4419 = vadd.f32 %v3627, %v4418
        %v4420 = vpop.f32.mrb[0].mxu0
        %v4421 = vadd.f32 %v3631, %v4420
        %v4422 = vpop.f32.mrb[0].mxu0
        %v4423 = vadd.f32 %v3627, %v4422
        %v4424 = vpop.f32.mrb[0].mxu0
        %v4425 = vadd.f32 %v3631, %v4424
        %4426 = vmatprep.mubr.bf16.mxu0 %v3883
        %4427 = vmatmul.mubr.bf16.gmra.mrb[0].mxu0 %v3882
        %v4428 = vpop.f32.mrb[0].mxu0
        %v4429 = vadd.f32 %v3627, %v4428
        %v4430 = vpop.f32.mrb[0].mxu0
        %v4431 = vadd.f32 %v3631, %v4430
        %v4432 = vpop.f32.mrb[0].mxu0
        %v4433 = vadd.f32 %v3627, %v4432
        %v4434 = vpop.f32.mrb[0].mxu0
        %v4435 = vadd.f32 %v3631, %v4434
        %4436 = vmatprep.mubr.bf16.mxu0 %v3885
        %4437 = vmatmul.mubr.bf16.gmra.mrb[0].mxu0 %v3884
        %v4438 = vpop.f32.mrb[0].mxu0
        %v4439 = vadd.f32 %v3627, %v4438
        %v4440 = vpop.f32.mrb[0].mxu0
        %v4441 = vadd.f32 %v3631, %v4440
        %v4442 = vpop.f32.mrb[0].mxu0
        %v4443 = vadd.f32 %v3627, %v4442
        %v4444 = vpop.f32.mrb[0].mxu0
        %v4445 = vadd.f32 %v3631, %v4444
        %4446 = vmatprep.mubr.bf16.mxu0 %v3887
        %4447 = vmatmul.mubr.bf16.gmra.mrb[0].mxu0 %v3886
        %v4448 = vpop.f32.mrb[0].mxu0
        %v4449 = vadd.f32 %v3627, %v4448
        %v4450 = vpop.f32.mrb[0].mxu0
        %v4451 = vadd.f32 %v3631, %v4450
        %v4452 = vpop.f32.mrb[0].mxu0
        %v4453 = vadd.f32 %v3627, %v4452
        %v4454 = vpop.f32.mrb[0].mxu0
        %v4455 = vadd.f32 %v3631, %v4454
        %4456 = vmatprep.mubr.bf16.mxu0 %v3889
        %4457 = vmatmul.mubr.bf16.gmra.mrb[0].mxu0 %v3888
        %v4458 = vpop.f32.mrb[0].mxu0
        %v4459 = vadd.f32 %v3627, %v4458
        %v4460 = vpop.f32.mrb[0].mxu0
        %v4461 = vadd.f32 %v3631, %v4460
        %v4462 = vpop.f32.mrb[0].mxu0
        %v4463 = vadd.f32 %v3627, %v4462
        %v4464 = vpop.f32.mrb[0].mxu0
        %v4465 = vadd.f32 %v3631, %v4464
        %4466 = vdwg.mxu0
        %v4467 = vpack.c.bf16 %v4153, %v4149
        %v4468 = vpack.c.bf16 %v4155, %v4151
        %v4469 = vpack.c.bf16 %v4163, %v4159
        %v4470 = vpack.c.bf16 %v4165, %v4161
        %v4471 = vpack.c.bf16 %v4173, %v4169
        %v4472 = vpack.c.bf16 %v4175, %v4171
        %v4473 = vpack.c.bf16 %v4183, %v4179
        %v4474 = vpack.c.bf16 %v4185, %v4181
        %v4475 = vpack.c.bf16 %v4193, %v4189
        %v4476 = vpack.c.bf16 %v4195, %v4191
        %v4477 = vpack.c.bf16 %v4203, %v4199
        %v4478 = vpack.c.bf16 %v4205, %v4201
        %v4479 = vpack.c.bf16 %v4213, %v4209
        %v4480 = vpack.c.bf16 %v4215, %v4211
        %v4481 = vpack.c.bf16 %v4223, %v4219
        %v4482 = vpack.c.bf16 %v4225, %v4221
        %v4483 = vpack.c.bf16 %v4233, %v4229
        %v4484 = vpack.c.bf16 %v4235, %v4231
        %v4485 = vpack.c.bf16 %v4243, %v4239
        %v4486 = vpack.c.bf16 %v4245, %v4241
        %v4487 = vpack.c.bf16 %v4253, %v4249
        %v4488 = vpack.c.bf16 %v4255, %v4251
        %v4489 = vpack.c.bf16 %v4263, %v4259
        %v4490 = vpack.c.bf16 %v4265, %v4261
        %v4491 = vpack.c.bf16 %v4273, %v4269
        %v4492 = vpack.c.bf16 %v4275, %v4271
        %v4493 = vpack.c.bf16 %v4283, %v4279
        %v4494 = vpack.c.bf16 %v4285, %v4281
        %v4495 = vpack.c.bf16 %v4293, %v4289
        %v4496 = vpack.c.bf16 %v4295, %v4291
        %v4497 = vpack.c.bf16 %v4303, %v4299
        %v4498 = vpack.c.bf16 %v4305, %v4301
        %v4499 = vpack.c.bf16 %v4313, %v4309
        %v4500 = vpack.c.bf16 %v4315, %v4311
        %v4501 = vpack.c.bf16 %v4323, %v4319
        %v4502 = vpack.c.bf16 %v4325, %v4321
        %v4503 = vpack.c.bf16 %v4333, %v4329
        %v4504 = vpack.c.bf16 %v4335, %v4331
        %v4505 = vpack.c.bf16 %v4343, %v4339
        %v4506 = vpack.c.bf16 %v4345, %v4341
        %v4507 = vpack.c.bf16 %v4353, %v4349
        %v4508 = vpack.c.bf16 %v4355, %v4351
        %v4509 = vpack.c.bf16 %v4363, %v4359
        %v4510 = vpack.c.bf16 %v4365, %v4361
        %v4511 = vpack.c.bf16 %v4373, %v4369
        %v4512 = vpack.c.bf16 %v4375, %v4371
        %v4513 = vpack.c.bf16 %v4383, %v4379
        %v4514 = vpack.c.bf16 %v4385, %v4381
        %v4515 = vpack.c.bf16 %v4393, %v4389
        %v4516 = vpack.c.bf16 %v4395, %v4391
        %v4517 = vpack.c.bf16 %v4403, %v4399
        %v4518 = vpack.c.bf16 %v4405, %v4401
        %v4519 = vpack.c.bf16 %v4413, %v4409
        %v4520 = vpack.c.bf16 %v4415, %v4411
        %v4521 = vpack.c.bf16 %v4423, %v4419
        %v4522 = vpack.c.bf16 %v4425, %v4421
        %v4523 = vpack.c.bf16 %v4433, %v4429
        %v4524 = vpack.c.bf16 %v4435, %v4431
        %v4525 = vpack.c.bf16 %v4443, %v4439
        %v4526 = vpack.c.bf16 %v4445, %v4441
        %v4527 = vpack.c.bf16 %v4453, %v4449
        %v4528 = vpack.c.bf16 %v4455, %v4451
        %v4529 = vpack.c.bf16 %v4463, %v4459
        %v4530 = vpack.c.bf16 %v4465, %v4461
        %v4595 = vunpack.c.l.b16 %v4467
        %v4596 = vunpack.c.l.b16 %v4468
        %v4597 = vunpack.c.h.b16 %v4467
        %v4598 = vunpack.c.h.b16 %v4468
        %v4599 = vunpack.c.l.b16 %v4469
        %v4600 = vunpack.c.l.b16 %v4470
        %v4601 = vunpack.c.h.b16 %v4469
        %v4602 = vunpack.c.h.b16 %v4470
        %v4603 = vunpack.c.l.b16 %v4471
        %v4604 = vunpack.c.l.b16 %v4472
        %v4605 = vunpack.c.h.b16 %v4471
        %v4606 = vunpack.c.h.b16 %v4472
        %v4607 = vunpack.c.l.b16 %v4473
        %v4608 = vunpack.c.l.b16 %v4474
        %v4609 = vunpack.c.h.b16 %v4473
        %v4610 = vunpack.c.h.b16 %v4474
        %v4611 = vunpack.c.l.b16 %v4475
        %v4612 = vunpack.c.l.b16 %v4476
        %v4613 = vunpack.c.h.b16 %v4475
        %v4614 = vunpack.c.h.b16 %v4476
        %v4615 = vunpack.c.l.b16 %v4477
        %v4616 = vunpack.c.l.b16 %v4478
        %v4617 = vunpack.c.h.b16 %v4477
        %v4618 = vunpack.c.h.b16 %v4478
        %v4619 = vunpack.c.l.b16 %v4479
        %v4620 = vunpack.c.l.b16 %v4480
        %v4621 = vunpack.c.h.b16 %v4479
        %v4622 = vunpack.c.h.b16 %v4480
        %v4623 = vunpack.c.l.b16 %v4481
        %v4624 = vunpack.c.l.b16 %v4482
        %v4625 = vunpack.c.h.b16 %v4481
        %v4626 = vunpack.c.h.b16 %v4482
        %v4627 = vunpack.c.l.b16 %v4483
        %v4628 = vunpack.c.l.b16 %v4484
        %v4629 = vunpack.c.h.b16 %v4483
        %v4630 = vunpack.c.h.b16 %v4484
        %v4631 = vunpack.c.l.b16 %v4485
        %v4632 = vunpack.c.l.b16 %v4486
        %v4633 = vunpack.c.h.b16 %v4485
        %v4634 = vunpack.c.h.b16 %v4486
        %v4635 = vunpack.c.l.b16 %v4487
        %v4636 = vunpack.c.l.b16 %v4488
        %v4637 = vunpack.c.h.b16 %v4487
        %v4638 = vunpack.c.h.b16 %v4488
        %v4639 = vunpack.c.l.b16 %v4489
        %v4640 = vunpack.c.l.b16 %v4490
        %v4641 = vunpack.c.h.b16 %v4489
        %v4642 = vunpack.c.h.b16 %v4490
        %v4643 = vunpack.c.l.b16 %v4491
        %v4644 = vunpack.c.l.b16 %v4492
        %v4645 = vunpack.c.h.b16 %v4491
        %v4646 = vunpack.c.h.b16 %v4492
        %v4647 = vunpack.c.l.b16 %v4493
        %v4648 = vunpack.c.l.b16 %v4494
        %v4649 = vunpack.c.h.b16 %v4493
        %v4650 = vunpack.c.h.b16 %v4494
        %v4651 = vunpack.c.l.b16 %v4495
        %v4652 = vunpack.c.l.b16 %v4496
        %v4653 = vunpack.c.h.b16 %v4495
        %v4654 = vunpack.c.h.b16 %v4496
        %v4655 = vunpack.c.l.b16 %v4497
        %v4656 = vunpack.c.l.b16 %v4498
        %v4657 = vunpack.c.h.b16 %v4497
        %v4658 = vunpack.c.h.b16 %v4498
        %v4659 = vunpack.c.l.b16 %v4499
        %v4660 = vunpack.c.l.b16 %v4500
        %v4661 = vunpack.c.h.b16 %v4499
        %v4662 = vunpack.c.h.b16 %v4500
        %v4663 = vunpack.c.l.b16 %v4501
        %v4664 = vunpack.c.l.b16 %v4502
        %v4665 = vunpack.c.h.b16 %v4501
        %v4666 = vunpack.c.h.b16 %v4502
        %v4667 = vunpack.c.l.b16 %v4503
        %v4668 = vunpack.c.l.b16 %v4504
        %v4669 = vunpack.c.h.b16 %v4503
        %v4670 = vunpack.c.h.b16 %v4504
        %v4671 = vunpack.c.l.b16 %v4505
        %v4672 = vunpack.c.l.b16 %v4506
        %v4673 = vunpack.c.h.b16 %v4505
        %v4674 = vunpack.c.h.b16 %v4506
        %v4675 = vunpack.c.l.b16 %v4507
        %v4676 = vunpack.c.l.b16 %v4508
        %v4677 = vunpack.c.h.b16 %v4507
        %v4678 = vunpack.c.h.b16 %v4508
        %v4679 = vunpack.c.l.b16 %v4509
        %v4680 = vunpack.c.l.b16 %v4510
        %v4681 = vunpack.c.h.b16 %v4509
        %v4682 = vunpack.c.h.b16 %v4510
        %v4683 = vunpack.c.l.b16 %v4511
        %v4684 = vunpack.c.l.b16 %v4512
        %v4685 = vunpack.c.h.b16 %v4511
        %v4686 = vunpack.c.h.b16 %v4512
        %v4687 = vunpack.c.l.b16 %v4513
        %v4688 = vunpack.c.l.b16 %v4514
        %v4689 = vunpack.c.h.b16 %v4513
        %v4690 = vunpack.c.h.b16 %v4514
        %v4691 = vunpack.c.l.b16 %v4515
        %v4692 = vunpack.c.l.b16 %v4516
        %v4693 = vunpack.c.h.b16 %v4515
        %v4694 = vunpack.c.h.b16 %v4516
        %v4695 = vunpack.c.l.b16 %v4517
        %v4696 = vunpack.c.l.b16 %v4518
        %v4697 = vunpack.c.h.b16 %v4517
        %v4698 = vunpack.c.h.b16 %v4518
        %v4699 = vunpack.c.l.b16 %v4519
        %v4700 = vunpack.c.l.b16 %v4520
        %v4701 = vunpack.c.h.b16 %v4519
        %v4702 = vunpack.c.h.b16 %v4520
        %v4703 = vunpack.c.l.b16 %v4521
        %v4704 = vunpack.c.l.b16 %v4522
        %v4705 = vunpack.c.h.b16 %v4521
        %v4706 = vunpack.c.h.b16 %v4522
        %v4707 = vunpack.c.l.b16 %v4523
        %v4708 = vunpack.c.l.b16 %v4524
        %v4709 = vunpack.c.h.b16 %v4523
        %v4710 = vunpack.c.h.b16 %v4524
        %v4711 = vunpack.c.l.b16 %v4525
        %v4712 = vunpack.c.l.b16 %v4526
        %v4713 = vunpack.c.h.b16 %v4525
        %v4714 = vunpack.c.h.b16 %v4526
        %v4715 = vunpack.c.l.b16 %v4527
        %v4716 = vunpack.c.l.b16 %v4528
        %v4717 = vunpack.c.h.b16 %v4527
        %v4718 = vunpack.c.h.b16 %v4528
        %v4719 = vunpack.c.l.b16 %v4529
        %v4720 = vunpack.c.l.b16 %v4530
        %v4721 = vunpack.c.h.b16 %v4529
        %v4722 = vunpack.c.h.b16 %v4530
        %v4723 = vpack.c.b16 %v4596, %v4595
        %v4724 = vpack.c.b16 %v4598, %v4597
        %v4725 = vpack.c.b16 %v4600, %v4599
        %v4726 = vpack.c.b16 %v4602, %v4601
        %v4727 = vpack.c.b16 %v4604, %v4603
        %v4728 = vpack.c.b16 %v4606, %v4605
        %v4729 = vpack.c.b16 %v4608, %v4607
        %v4730 = vpack.c.b16 %v4610, %v4609
        %v4731 = vpack.c.b16 %v4612, %v4611
        %v4732 = vpack.c.b16 %v4614, %v4613
        %v4733 = vpack.c.b16 %v4616, %v4615
        %v4734 = vpack.c.b16 %v4618, %v4617
        %v4735 = vpack.c.b16 %v4620, %v4619
        %v4736 = vpack.c.b16 %v4622, %v4621
        %v4737 = vpack.c.b16 %v4624, %v4623
        %v4738 = vpack.c.b16 %v4626, %v4625
        %v4739 = vpack.c.b16 %v4628, %v4627
        %v4740 = vpack.c.b16 %v4630, %v4629
        %v4741 = vpack.c.b16 %v4632, %v4631
        %v4742 = vpack.c.b16 %v4634, %v4633
        %v4743 = vpack.c.b16 %v4636, %v4635
        %v4744 = vpack.c.b16 %v4638, %v4637
        %v4745 = vpack.c.b16 %v4640, %v4639
        %v4746 = vpack.c.b16 %v4642, %v4641
        %v4747 = vpack.c.b16 %v4644, %v4643
        %v4748 = vpack.c.b16 %v4646, %v4645
        %v4749 = vpack.c.b16 %v4648, %v4647
        %v4750 = vpack.c.b16 %v4650, %v4649
        %v4751 = vpack.c.b16 %v4652, %v4651
        %v4752 = vpack.c.b16 %v4654, %v4653
        %v4753 = vpack.c.b16 %v4656, %v4655
        %v4754 = vpack.c.b16 %v4658, %v4657
        %v4755 = vpack.c.b16 %v4660, %v4659
        %v4756 = vpack.c.b16 %v4662, %v4661
        %v4757 = vpack.c.b16 %v4664, %v4663
        %v4758 = vpack.c.b16 %v4666, %v4665
        %v4759 = vpack.c.b16 %v4668, %v4667
        %v4760 = vpack.c.b16 %v4670, %v4669
        %v4761 = vpack.c.b16 %v4672, %v4671
        %v4762 = vpack.c.b16 %v4674, %v4673
        %v4763 = vpack.c.b16 %v4676, %v4675
        %v4764 = vpack.c.b16 %v4678, %v4677
        %v4765 = vpack.c.b16 %v4680, %v4679
        %v4766 = vpack.c.b16 %v4682, %v4681
        %v4767 = vpack.c.b16 %v4684, %v4683
        %v4768 = vpack.c.b16 %v4686, %v4685
        %v4769 = vpack.c.b16 %v4688, %v4687
        %v4770 = vpack.c.b16 %v4690, %v4689
        %v4771 = vpack.c.b16 %v4692, %v4691
        %v4772 = vpack.c.b16 %v4694, %v4693
        %v4773 = vpack.c.b16 %v4696, %v4695
        %v4774 = vpack.c.b16 %v4698, %v4697
        %v4775 = vpack.c.b16 %v4700, %v4699
        %v4776 = vpack.c.b16 %v4702, %v4701
        %v4777 = vpack.c.b16 %v4704, %v4703
        %v4778 = vpack.c.b16 %v4706, %v4705
        %v4779 = vpack.c.b16 %v4708, %v4707
        %v4780 = vpack.c.b16 %v4710, %v4709
        %v4781 = vpack.c.b16 %v4712, %v4711
        %v4782 = vpack.c.b16 %v4714, %v4713
        %v4783 = vpack.c.b16 %v4716, %v4715
        %v4784 = vpack.c.b16 %v4718, %v4717
        %v4785 = vpack.c.b16 %v4720, %v4719
        %v4786 = vpack.c.b16 %v4722, %v4721
        %4851 = vst [vmem:[%s613] sm:$0xff] %v4723
        %4852 = vst [vmem:[%s613 + $0x8] sm:$0xff] %v4724
        %4853 = vst [vmem:[%s613 + $0x10] sm:$0xff] %v4725
        %4854 = vst [vmem:[%s613 + $0x18] sm:$0xff] %v4726
        %4855 = vst [vmem:[%s613 + $0x20] sm:$0xff] %v4727
        %4856 = vst [vmem:[%s613 + $0x28] sm:$0xff] %v4728
        %4857 = vst [vmem:[%s613 + $0x30] sm:$0xff] %v4729
        %4858 = vst [vmem:[%s613 + $0x38] sm:$0xff] %v4730
        %4859 = vst [vmem:[%s613 + $0x40] sm:$0xff] %v4731
        %4860 = vst [vmem:[%s613 + $0x48] sm:$0xff] %v4732
        %4861 = vst [vmem:[%s613 + $0x50] sm:$0xff] %v4733
        %4862 = vst [vmem:[%s613 + $0x58] sm:$0xff] %v4734
        %4863 = vst [vmem:[%s613 + $0x60] sm:$0xff] %v4735
        %4864 = vst [vmem:[%s613 + $0x68] sm:$0xff] %v4736
        %4865 = vst [vmem:[%s613 + $0x70] sm:$0xff] %v4737
        %4866 = vst [vmem:[%s613 + $0x78] sm:$0xff] %v4738
        %4867 = vst [vmem:[%s613 + $0x80] sm:$0xff] %v4739
        %4868 = vst [vmem:[%s613 + $0x88] sm:$0xff] %v4740
        %4869 = vst [vmem:[%s613 + $0x90] sm:$0xff] %v4741
        %4870 = vst [vmem:[%s613 + $0x98] sm:$0xff] %v4742
        %4871 = vst [vmem:[%s613 + $0xa0] sm:$0xff] %v4743
        %4872 = vst [vmem:[%s613 + $0xa8] sm:$0xff] %v4744
        %4873 = vst [vmem:[%s613 + $0xb0] sm:$0xff] %v4745
        %4874 = vst [vmem:[%s613 + $0xb8] sm:$0xff] %v4746
        %4875 = vst [vmem:[%s613 + $0xc0] sm:$0xff] %v4747
        %4876 = vst [vmem:[%s613 + $0xc8] sm:$0xff] %v4748
        %4877 = vst [vmem:[%s613 + $0xd0] sm:$0xff] %v4749
        %4878 = vst [vmem:[%s613 + $0xd8] sm:$0xff] %v4750
        %4879 = vst [vmem:[%s613 + $0xe0] sm:$0xff] %v4751
        %4880 = vst [vmem:[%s613 + $0xe8] sm:$0xff] %v4752
        %4881 = vst [vmem:[%s613 + $0xf0] sm:$0xff] %v4753
        %4882 = vst [vmem:[%s613 + $0xf8] sm:$0xff] %v4754
        %4883 = vst [vmem:[%s613 + $0x100] sm:$0xff] %v4755
        %4884 = vst [vmem:[%s613 + $0x108] sm:$0xff] %v4756
        %4885 = vst [vmem:[%s613 + $0x110] sm:$0xff] %v4757
        %4886 = vst [vmem:[%s613 + $0x118] sm:$0xff] %v4758
        %4887 = vst [vmem:[%s613 + $0x120] sm:$0xff] %v4759
        %4888 = vst [vmem:[%s613 + $0x128] sm:$0xff] %v4760
        %4889 = vst [vmem:[%s613 + $0x130] sm:$0xff] %v4761
        %4890 = vst [vmem:[%s613 + $0x138] sm:$0xff] %v4762
        %4891 = vst [vmem:[%s613 + $0x140] sm:$0xff] %v4763
        %4892 = vst [vmem:[%s613 + $0x148] sm:$0xff] %v4764
        %4893 = vst [vmem:[%s613 + $0x150] sm:$0xff] %v4765
        %4894 = vst [vmem:[%s613 + $0x158] sm:$0xff] %v4766
        %4895 = vst [vmem:[%s613 + $0x160] sm:$0xff] %v4767
        %4896 = vst [vmem:[%s613 + $0x168] sm:$0xff] %v4768
        %4897 = vst [vmem:[%s613 + $0x170] sm:$0xff] %v4769
        %4898 = vst [vmem:[%s613 + $0x178] sm:$0xff] %v4770
        %4899 = vst [vmem:[%s613 + $0x180] sm:$0xff] %v4771
        %4900 = vst [vmem:[%s613 + $0x188] sm:$0xff] %v4772
        %4901 = vst [vmem:[%s613 + $0x190] sm:$0xff] %v4773
        %4902 = vst [vmem:[%s613 + $0x198] sm:$0xff] %v4774
        %4903 = vst [vmem:[%s613 + $0x1a0] sm:$0xff] %v4775
        %4904 = vst [vmem:[%s613 + $0x1a8] sm:$0xff] %v4776
        %4905 = vst [vmem:[%s613 + $0x1b0] sm:$0xff] %v4777
        %4906 = vst [vmem:[%s613 + $0x1b8] sm:$0xff] %v4778
        %4907 = vst [vmem:[%s613 + $0x1c0] sm:$0xff] %v4779
        %4908 = vst [vmem:[%s613 + $0x1c8] sm:$0xff] %v4780
        %4909 = vst [vmem:[%s613 + $0x1d0] sm:$0xff] %v4781
        %4910 = vst [vmem:[%s613 + $0x1d8] sm:$0xff] %v4782
        %4911 = vst [vmem:[%s613 + $0x1e0] sm:$0xff] %v4783
        %4912 = vst [vmem:[%s613 + $0x1e8] sm:$0xff] %v4784
        %4913 = vst [vmem:[%s613 + $0x1f0] sm:$0xff] %v4785
        %4914 = vst [vmem:[%s613 + $0x1f8] sm:$0xff] %v4786
        %s4915 = sand.u32 %s270, 1
        %s4916 = scalar_lea.sflag [#allocation4], %s4915
        %s4917 = sand.u32 %s270, 1
        %s4918 = smul.addr %s4917, 512
        %s4919 = scalar_lea.vmem [#allocation17], %s4918
        %s4920 = sand.u32 %s38, 1
        %s4921 = scalar_lea.sflag [#allocation19], %s4920
        %s4922 = sand.u32 %s298, 1
        %s4923 = smul.addr %s4922, 512
        %s4924 = scalar_lea.vmem [#allocation18], %s4923
        %s4925 = sand.u32 %s38, 1
        %s4926 = scalar_lea.sflag [#allocation19], %s4925
        %s4927 = sand.u32 %s326, 1
        %s4928 = smul.addr %s4927, 512
        %s4929 = scalar_lea.vmem [#allocation20], %s4928
        // Predicated region
        $region93: #{tpu_custom_call.1} parent=55 // pred_check
          %p4930 = pneg %p280
        $region94: #{tpu_custom_call.1} parent=55 // pred_check_branch
          %4932 = sbr.rel (%p4930) target = $region96
        $region95: #{tpu_custom_call.1} parent=55 // pred_region
          %s4933 = smul.u32 64, %s43
          %s4935 = ssub.s32 8192, 8192
          %4936 = vsyncadd %s4916, %s4935
          %s4937 = smul.addr %s4933, 2
          %s4938 = smul.addr %s42, 128
          %s4939 = sadd.s32 %s4937, %s4938
          %s4940 = smul.addr %s4939, 64
          %s4941 = scalar_lea.hbm %s9, %s4940
          %s4942 = sshll.u32 %s4919, 4
          %s4943 = int_to_ptr.vmem [resolvable:$true] %s4942
          %4948 = dma.vmem_to_hbm [thread:$0]  %s4943, 8192, %s4941, %s4916, 128, 128, 8
        $region96: #{tpu_custom_call.1} parent=55 // pred_fallthru
          _
        // Predicated region
        $region97: #{tpu_custom_call.1} parent=55 // pred_check
          %p4949 = pneg %p308
        $region98: #{tpu_custom_call.1} parent=55 // pred_check_branch
          %4951 = sbr.rel (%p4949) target = $region100
        $region99: #{tpu_custom_call.1} parent=55 // pred_region
          %s4952 = smul.u32 64, %s43
          %s4954 = ssub.s32 8192, 8192
          %4955 = vsyncadd %s4921, %s4954
          %s4956 = smul.addr %s4952, 2
          %s4957 = smul.addr %s42, 128
          %s4958 = sadd.s32 %s4956, %s4957
          %s4959 = smul.addr %s4958, 64
          %s4960 = scalar_lea.hbm %s10, %s4959
          %s4961 = sshll.u32 %s4924, 4
          %s4962 = int_to_ptr.vmem [resolvable:$true] %s4961
          %4967 = dma.vmem_to_hbm [thread:$0]  %s4962, 8192, %s4960, %s4921, 128, 128, 8
        $region100: #{tpu_custom_call.1} parent=55 // pred_fallthru
          _
        // Predicated region
        $region101: #{tpu_custom_call.1} parent=55 // pred_check
          %p4968 = pneg %p336
        $region102: #{tpu_custom_call.1} parent=55 // pred_check_branch
          %4970 = sbr.rel (%p4968) target = $region104
        $region103: #{tpu_custom_call.1} parent=55 // pred_region
          %s4971 = smul.u32 64, %s43
          %s4973 = ssub.s32 8192, 8192
          %4974 = vsyncadd %s4926, %s4973
          %s4975 = smul.addr %s4971, 2
          %s4976 = smul.addr %s42, 128
          %s4977 = sadd.s32 %s4975, %s4976
          %s4978 = smul.addr %s4977, 64
          %s4979 = scalar_lea.hbm %s11, %s4978
          %s4980 = sshll.u32 %s4929, 4
          %s4981 = int_to_ptr.vmem [resolvable:$true] %s4980
          %4986 = dma.vmem_to_hbm [thread:$0]  %s4981, 8192, %s4979, %s4926, 128, 128, 8
        $region104: #{tpu_custom_call.1} parent=55 // pred_fallthru
          _
      $region56: #{tpu_custom_call.1} parent=5 // pred_fallthru
        _
      %p4987 = scmp.le.s32.totalorder 2, %s33
      // Predicated region
      $region105: #{tpu_custom_call.1} parent=5 // pred_check
        %p4988 = pneg %p4987
      $region106: #{tpu_custom_call.1} parent=5 // pred_check_branch
        %4990 = sbr.rel (%p4988) target = $region108
      $region107: #{tpu_custom_call.1} parent=5 // pred_region
        %s4991 = ssub.s32 %s33, 2
        // Predicated region
        $region109: #{tpu_custom_call.1} parent=107 // pred_check
          %p4992 = pneg %p286
        $region110: #{tpu_custom_call.1} parent=107 // pred_check_branch
          %4994 = sbr.rel (%p4992) target = $region112
        $region111: #{tpu_custom_call.1} parent=107 // pred_region
          %s4995 = sand.u32 %s271, 1
          %s4996 = scalar_lea.sflag [#allocation4], %s4995
          %s4997 = sand.u32 %s271, 1
          %s4998 = smul.addr %s4997, 512
          %s4999 = scalar_lea.vmem [#allocation17], %s4998
          %5000 = dma.done %s4996, 8192
        $region112: #{tpu_custom_call.1} parent=107 // pred_fallthru
          _
        // Predicated region
        $region113: #{tpu_custom_call.1} parent=107 // pred_check
          %p5001 = pneg %p314
        $region114: #{tpu_custom_call.1} parent=107 // pred_check_branch
          %5003 = sbr.rel (%p5001) target = $region116
        $region115: #{tpu_custom_call.1} parent=107 // pred_region
          %s5004 = sand.u32 %s39, 1
          %s5005 = scalar_lea.sflag [#allocation19], %s5004
          %s5006 = sand.u32 %s299, 1
          %s5007 = smul.addr %s5006, 512
          %s5008 = scalar_lea.vmem [#allocation18], %s5007
          %5009 = dma.done %s5005, 8192
        $region116: #{tpu_custom_call.1} parent=107 // pred_fallthru
          _
        // Predicated region
        $region117: #{tpu_custom_call.1} parent=107 // pred_check
          %p5010 = pneg %p342
        $region118: #{tpu_custom_call.1} parent=107 // pred_check_branch
          %5012 = sbr.rel (%p5010) target = $region120
        $region119: #{tpu_custom_call.1} parent=107 // pred_region
          %s5013 = sand.u32 %s39, 1
          %s5014 = scalar_lea.sflag [#allocation19], %s5013
          %s5015 = sand.u32 %s327, 1
          %s5016 = smul.addr %s5015, 512
          %s5017 = scalar_lea.vmem [#allocation20], %s5016
          %5018 = dma.done %s5014, 8192
        $region120: #{tpu_custom_call.1} parent=107 // pred_fallthru
          _
      $region108: #{tpu_custom_call.1} parent=5 // pred_fallthru
        _
    $region6: #{tpu_custom_call.1} parent=1 // loop_footer
      %s37 = sadd.s32 1, %s33
    $region7: #{tpu_custom_call.1} parent=1 // loop_footer_branch
      %32 = sbr.rel target = $region3
    $region8: #{tpu_custom_call.1} parent=1 // loop_exit
      _
    %5019 = vsyncpa [#allocation3], 1
    %s5020 = scalar_lea.sflag [#allocation3], 1
    %5021 = vsyncpa %s5020, 1
    %5022 = vsyncpa [#allocation6], 1
    %s5023 = scalar_lea.sflag [#allocation6], 1
    %5024 = vsyncpa %s5023, 1
    %5025 = vsyncpa [#allocation9], 1
    %5026 = vsyncpa [#allocation12], 1
    %5027 = vsyncpa [#allocation15], 1
    %5028 = vsyncpa [#allocation4], 1
    %s5029 = scalar_lea.sflag [#allocation4], 1
    %5030 = vsyncpa %s5029, 1
    %5031 = vsyncpa [#allocation19], 1
    %s5032 = scalar_lea.sflag [#allocation19], 1
    %5033 = vsyncpa %s5032, 1

</llo_original>
